<compile_context>
chip_gen: v7x
topology: tpu7x:2x2x1
jax: 0.10.0
libtpu: 0.0.40
codegen_flags: <defaults>
</compile_context>

<pallas_src>
import functools

import jax
import jax.numpy as jnp
from jax import lax
from jax.experimental import pallas as pl
from jax.experimental.pallas import tpu as pltpu


# --------------------------------------------------------------------------
# helpers
# --------------------------------------------------------------------------
def _round_up(x, m):
    return (x + m - 1) // m * m


def _pad2d(a, rows, cols):
    r, c = a.shape
    return jnp.pad(a, ((0, rows - r), (0, cols - c)))


def _pick_block(n, cap=1024):
    # largest of {1024, 512, 256, 128} (<= cap) dividing n (n is multiple of 128)
    for b in (1024, 512, 256, 128):
        if b <= cap and n % b == 0:
            return b
    return n


@functools.lru_cache(maxsize=1)
def _vmem_budget():
    # Generation-aware scoped-VMEM limit: ~3/4 of physical VMEM, capped at
    # 100 MiB.  v7x (64 MiB phys) -> ~48 MiB; v5e/v6e (128 MiB) -> ~96 MiB.
    cap = 64 << 20
    try:
        info = pltpu.get_tpu_info()
        cap = int(getattr(info, "vmem_capacity_bytes", cap) or cap)
    except Exception:
        pass
    return int(min(cap * 3 // 4, 100 << 20))


def _cparams(semantics):
    return pltpu.CompilerParams(dimension_semantics=semantics,
                                vmem_limit_bytes=_vmem_budget())


# --------------------------------------------------------------------------
# Pallas kernels
# --------------------------------------------------------------------------
def _feat_transform_kernel(h_ref, w_ref, z_ref):
    # Z = H @ W  (bf16 MXU inputs, f32 accumulation, bf16 output)
    z_ref[...] = jnp.dot(h_ref[...], w_ref[...],
                         preferred_element_type=jnp.float32).astype(z_ref.dtype)


def _propagate_kernel(adj_ref, z_ref, b_ref, out_ref, acc_ref, *,
                      blk, z_resident, apply_relu):
    # out = maybe_relu(A_hat @ Z + b): K-tiled reduction, f32 VMEM accumulator.
    # If Z is fully VMEM-resident (constant index_map -> DMA'd once) slice the
    # current k-slab in-kernel instead of re-streaming it per i-tile.
    k = pl.program_id(1)

    @pl.when(k == 0)
    def _init():
        acc_ref[...] = jnp.zeros_like(acc_ref)

    if z_resident:
        z = z_ref[pl.ds(pl.multiple_of(k * blk, blk), blk), :]
    else:
        z = z_ref[...]
    acc_ref[...] += jnp.dot(adj_ref[...], z, preferred_element_type=jnp.float32)

    @pl.when(k == pl.num_programs(1) - 1)
    def _finalize():
        # NOTE: bias (and relu) also lands on zero-padded node rows; harmless
        # because padded adjacency columns are zero and padded rows are sliced
        # off, but do not reduce over the node axis of padded intermediates.
        out = acc_ref[...] + b_ref[...]
        if apply_relu:
            out = jnp.maximum(out, 0.0)
        out_ref[...] = out.astype(out_ref.dtype)


def _fused_gcn_kernel(adj_ref, h_ref, w_ref, b_ref, out_ref, acc_ref, *,
                      apply_relu):
    # Hidden layers (small fi): compute the Z k-slab on the fly (W resident)
    # so Z never round-trips HBM.  Recompute hides under the adj DMA.
    k = pl.program_id(1)

    @pl.when(k == 0)
    def _init():
        acc_ref[...] = jnp.zeros_like(acc_ref)

    z = jnp.dot(h_ref[...], w_ref[...],
                preferred_element_type=jnp.float32).astype(jnp.bfloat16)
    acc_ref[...] += jnp.dot(adj_ref[...], z, preferred_element_type=jnp.float32)

    @pl.when(k == pl.num_programs(1) - 1)
    def _finalize():
        out = acc_ref[...] + b_ref[...]
        if apply_relu:
            out = jnp.maximum(out, 0.0)
        out_ref[...] = out.astype(out_ref.dtype)


def _fused_dual_kernel(adj_ref, h_ref, w_ref, ba_ref, bs_ref, a_ref, hs_ref,
                       acc_ref, *, split_a, split_s):
    # One adjacency pass shared by the attr-decoder layer 1 (relu) and the
    # struct-decoder layer (no relu); W = concat(Wa1, Ws1) along fan-out.
    k = pl.program_id(1)

    @pl.when(k == 0)
    def _init():
        acc_ref[...] = jnp.zeros_like(acc_ref)

    z = jnp.dot(h_ref[...], w_ref[...],
                preferred_element_type=jnp.float32).astype(jnp.bfloat16)
    acc_ref[...] += jnp.dot(adj_ref[...], z, preferred_element_type=jnp.float32)

    @pl.when(k == pl.num_programs(1) - 1)
    def _finalize():
        a = acc_ref[:, pl.ds(0, split_a)] + ba_ref[...]
        a_ref[...] = jnp.maximum(a, 0.0).astype(a_ref.dtype)
        hs = acc_ref[:, pl.ds(split_a, split_s)] + bs_ref[...]
        hs_ref[...] = hs.astype(hs_ref.dtype)


def _gram_kernel(hl_ref, hr_ref, s_ref):
    # s_ tile = Hs[i-rows] @ Hs[j-rows]^T without materializing a transpose.
    s_ref[...] = lax.dot_general(
        hl_ref[...], hr_ref[...],
        dimension_numbers=(((1,), (1,)), ((), ())),
        preferred_element_type=jnp.float32)


# --------------------------------------------------------------------------
# pallas_call wrappers
# --------------------------------------------------------------------------
def _feat_transform(h_bf16, w_bf16, *, blk):
    n, fi = h_bf16.shape
    fo = w_bf16.shape[1]
    return pl.pallas_call(
        _feat_transform_kernel,
        out_shape=jax.ShapeDtypeStruct((n, fo), jnp.bfloat16),
        grid=(n // blk,),
        in_specs=[pl.BlockSpec((blk, fi), lambda i: (i, 0)),
                  pl.BlockSpec((fi, fo), lambda i: (0, 0))],
        out_specs=pl.BlockSpec((blk, fo), lambda i: (i, 0)),
        compiler_params=_cparams(("parallel",)),
    )(h_bf16, w_bf16)


def _propagate(adj_bf16, z_bf16, b, *, blk, apply_relu, out_dtype):
    n = adj_bf16.shape[0]
    fo = z_bf16.shape[1]
    # Keep Z fully resident when it fits comfortably (constant index_map ->
    # DMA'd once); otherwise stream k-slabs.  Budget 2x for buffer headroom.
    z_resident = (2 * n * fo * 2) <= (_vmem_budget() // 2)
    if z_resident:
        z_spec = pl.BlockSpec((n, fo), lambda i, k: (0, 0))
    else:
        z_spec = pl.BlockSpec((blk, fo), lambda i, k: (k, 0))
    return pl.pallas_call(
        functools.partial(_propagate_kernel, blk=blk, z_resident=z_resident,
                          apply_relu=apply_relu),
        out_shape=jax.ShapeDtypeStruct((n, fo), out_dtype),
        grid=(n // blk, n // blk),
        in_specs=[pl.BlockSpec((blk, blk), lambda i, k: (i, k)),   # adj streamed
                  z_spec,                                          # Z resident/slab
                  pl.BlockSpec((1, fo), lambda i, k: (0, 0))],     # bias resident
        out_specs=pl.BlockSpec((blk, fo), lambda i, k: (i, 0)),
        scratch_shapes=[pltpu.VMEM((blk, fo), jnp.float32)],
        compiler_params=_cparams(("parallel", "arbitrary")),
    )(adj_bf16, z_bf16, b)


def _fused_gcn(adj_bf16, h_bf16, w_bf16, b, *, blk, apply_relu, out_dtype):
    n = adj_bf16.shape[0]
    fi = h_bf16.shape[1]
    fo = w_bf16.shape[1]
    return pl.pallas_call(
        functools.partial(_fused_gcn_kernel, apply_relu=apply_relu),
        out_shape=jax.ShapeDtypeStruct((n, fo), out_dtype),
        grid=(n // blk, n // blk),
        in_specs=[pl.BlockSpec((blk, blk), lambda i, k: (i, k)),   # adj streamed
                  pl.BlockSpec((blk, fi), lambda i, k: (k, 0)),    # H k-slab
                  pl.BlockSpec((fi, fo), lambda i, k: (0, 0)),     # W resident
                  pl.BlockSpec((1, fo), lambda i, k: (0, 0))],     # bias resident
        out_specs=pl.BlockSpec((blk, fo), lambda i, k: (i, 0)),
        scratch_shapes=[pltpu.VMEM((blk, fo), jnp.float32)],
        compiler_params=_cparams(("parallel", "arbitrary")),
    )(adj_bf16, h_bf16, w_bf16, b)


def _fused_gcn_dual(adj_bf16, h_bf16, wa_bf16, ws_bf16, ba, bs, *, blk):
    n = adj_bf16.shape[0]
    fi = h_bf16.shape[1]
    fa = wa_bf16.shape[1]
    fs = ws_bf16.shape[1]
    w_cat = jnp.concatenate([wa_bf16, ws_bf16], axis=1)   # (fi, fa+fs)
    return pl.pallas_call(
        functools.partial(_fused_dual_kernel, split_a=fa, split_s=fs),
        out_shape=(jax.ShapeDtypeStruct((n, fa), jnp.bfloat16),
                   jax.ShapeDtypeStruct((n, fs), jnp.bfloat16)),
        grid=(n // blk, n // blk),
        in_specs=[pl.BlockSpec((blk, blk), lambda i, k: (i, k)),
                  pl.BlockSpec((blk, fi), lambda i, k: (k, 0)),
                  pl.BlockSpec((fi, fa + fs), lambda i, k: (0, 0)),
                  pl.BlockSpec((1, fa), lambda i, k: (0, 0)),
                  pl.BlockSpec((1, fs), lambda i, k: (0, 0))],
        out_specs=(pl.BlockSpec((blk, fa), lambda i, k: (i, 0)),
                   pl.BlockSpec((blk, fs), lambda i, k: (i, 0))),
        scratch_shapes=[pltpu.VMEM((blk, fa + fs), jnp.float32)],
        compiler_params=_cparams(("parallel", "arbitrary")),
    )(adj_bf16, h_bf16, w_cat, ba, bs)


def _gram(hs_bf16, *, blk_i, blk_j):
    n, f = hs_bf16.shape
    return pl.pallas_call(
        _gram_kernel,
        out_shape=jax.ShapeDtypeStruct((n, n), jnp.float32),
        grid=(n // blk_i, n // blk_j),
        in_specs=[pl.BlockSpec((blk_i, f), lambda i, j: (i, 0)),   # revisited per i
                  pl.BlockSpec((blk_j, f), lambda i, j: (j, 0))],  # streamed
        out_specs=pl.BlockSpec((blk_i, blk_j), lambda i, j: (i, j)),
        compiler_params=_cparams(("parallel", "parallel")),
    )(hs_bf16, hs_bf16)


# --------------------------------------------------------------------------
# Full DOMINANT forward
# --------------------------------------------------------------------------
def dominant_forward(x, adj, params):
    """x: [N, in_dim] f32, adj: [N, N] dense normalized adjacency,
    params: (We1,be1, We2,be2, Wa1,ba1, Wa2,ba2, Ws1,bs1)."""
    n, in_dim = x.shape
    hid = params[0].shape[1]

    # Pad nodes & feature dims to multiples of 128 (exact for this model:
    # zero-padded adj rows/cols and weight rows/cols contribute exactly 0).
    np_ = _round_up(n, 128)
    fip = _round_up(in_dim, 128)
    hp = _round_up(hid, 128)

    blk = _pick_block(np_, 1024)       # propagate / fused-GCN tile
    gblk_i = _pick_block(np_, 1024)    # gram: large hl tile (fewer hr re-streams)
    gblk_j = _pick_block(np_, 512)     # gram: moderate streamed hr tile

    bf = jnp.bfloat16
    adj_p = _pad2d(adj.astype(bf), np_, np_)        # streamed 4x; half bytes
    x_p = _pad2d(x, np_, fip).astype(bf)

    we1, be1, we2, be2, wa1, ba1, wa2, ba2, ws1, bs1 = params
    we1 = _pad2d(we1, fip, hp).astype(bf); be1 = _pad2d(be1, 1, hp)
    we2 = _pad2d(we2, hp, hp).astype(bf);  be2 = _pad2d(be2, 1, hp)
    wa1 = _pad2d(wa1, hp, hp).astype(bf);  ba1 = _pad2d(ba1, 1, hp)
    wa2 = _pad2d(wa2, hp, fip).astype(bf); ba2 = _pad2d(ba2, 1, fip)
    ws1 = _pad2d(ws1, hp, fip).astype(bf); bs1 = _pad2d(bs1, 1, fip)

    # TODO(synk): dropout between layers omitted (inference-mode identity).

    # Encoder layer 1: fi may be large -> split feat transform + propagate
    # (fusing would blow up recompute flops); Z kept VMEM-resident if it fits.
    z1 = _feat_transform(x_p, we1, blk=blk)
    h = _propagate(adj_p, z1, be1, blk=blk, apply_relu=True, out_dtype=bf)

    # Encoder layer 2 (hid->hid, no act): fused H@W + propagation.
    h = _fused_gcn(adj_p, h, we2, be2, blk=blk, apply_relu=False, out_dtype=bf)

    # Attr decoder layer 1 (relu) + struct decoder (no act): one adjacency pass.
    a, hs = _fused_gcn_dual(adj_p, h, wa1, ws1, ba1, bs1, blk=blk)

    # Attr decoder layer 2 (hid->in_dim, no act): final output in f32.
    x_rec = _fused_gcn(adj_p, a, wa2, ba2, blk=blk, apply_relu=False,
                       out_dtype=jnp.float32)

    # Structure decoder output: s_ = h_ @ h_.T
    s = _gram(hs, blk_i=gblk_i, blk_j=gblk_j)

    return x_rec[:n, :in_dim], s[:n, :n]


# --------------------------------------------------------------------------
# Glue: normalized adjacency + deterministic params + pure-JAX reference
# --------------------------------------------------------------------------
def normalized_adj(edge_index, num_nodes):
    src, dst = edge_index
    A = jnp.zeros((num_nodes, num_nodes), jnp.float32).at[src, dst].set(1.0)
    # idempotent self-loop add (guards against explicit self-loops in edge_index)
    A = jnp.maximum(A, jnp.eye(num_nodes, dtype=jnp.float32))
    d_inv_sqrt = 1.0 / jnp.sqrt(A.sum(axis=1))
    return A * d_inv_sqrt[:, None] * d_inv_sqrt[None, :]


def make_params(key, in_dim, hid_dim):
    """Glorot-ish init. Weights [fan_in, fan_out], biases [1, fan_out]."""
    shapes = [(in_dim, hid_dim), (hid_dim, hid_dim), (hid_dim, hid_dim),
              (hid_dim, in_dim), (hid_dim, in_dim)]
    keys = jax.random.split(key, len(shapes))
    params = []
    for k, (fi, fo) in zip(keys, shapes):
        scale = jnp.sqrt(2.0 / (fi + fo))
        params.append(jax.random.normal(k, (fi, fo), jnp.float32) * scale)
        params.append(jnp.zeros((1, fo), jnp.float32))
    return tuple(params)


def reference_forward(x, adj, params):
    """Pure-JAX reference mirroring the kernels' bf16-in / f32-accumulate /
    bf16-intermediate pattern."""
    adj_bf = adj.astype(jnp.bfloat16)

    def layer(h_bf, w, b, relu, out_dtype=jnp.bfloat16):
        z = jnp.dot(h_bf, w.astype(jnp.bfloat16),
                    preferred_element_type=jnp.float32).astype(jnp.bfloat16)
        out = jnp.dot(adj_bf, z, preferred_element_type=jnp.float32) + b
        if relu:
            out = jnp.maximum(out, 0.0)
        return out.astype(out_dtype)

    we1, be1, we2, be2, wa1, ba1, wa2, ba2, ws1, bs1 = params
    xb = x.astype(jnp.bfloat16)
    h = layer(xb, we1, be1, True)
    h = layer(h, we2, be2, False)
    a = layer(h, wa1, ba1, True)
    x_ = layer(a, wa2, ba2, False, out_dtype=jnp.float32)
    hs = layer(h, ws1, bs1, False)
    s_ = lax.dot_general(hs, hs, dimension_numbers=(((1,), (1,)), ((), ())),
                         preferred_element_type=jnp.float32)
    return x_, s_


if __name__ == "__main__":
    N, IN_DIM, HID_DIM = 16, 8, 32

    key = jax.random.PRNGKey(0)
    k_x, k_p = jax.random.split(key)

    # deterministic undirected ring graph
    src = jnp.arange(N, dtype=jnp.int32)
    dst = (src + 1) % N
    edge_index = jnp.stack([jnp.concatenate([src, dst]),
                            jnp.concatenate([dst, src])])          # [2, 2N]

    x = jax.random.normal(k_x, (N, IN_DIM), jnp.float32)
    adj = normalized_adj(edge_index, N)
    params = make_params(k_p, IN_DIM, HID_DIM)

    x_rec, s_rec = jax.jit(dominant_forward)(x, adj, params)
    jax.block_until_ready((x_rec, s_rec))

    x_ref, s_ref = reference_forward(x, adj, params)
    assert x_rec.shape == (N, IN_DIM) and s_rec.shape == (N, N)
    assert jnp.allclose(x_rec, x_ref, atol=2e-2, rtol=2e-2), \
        float(jnp.max(jnp.abs(x_rec - x_ref)))
    assert jnp.allclose(s_rec, s_ref, atol=2e-2, rtol=2e-2), \
        float(jnp.max(jnp.abs(s_rec - s_ref)))

    print("KERNEL_OK")
</pallas_src>

<mosaic_0001>
module attributes {stable_mosaic.version = 11 : i64} {
  func.func @_fused_dual_kernel(%arg0: i32, %arg1: i32, %arg2: memref<128x128xbf16, #tpu.memory_space<vmem>>, %arg3: memref<128x128xbf16, #tpu.memory_space<vmem>>, %arg4: memref<128x256xbf16, #tpu.memory_space<vmem>>, %arg5: memref<1x128xf32, #tpu.memory_space<vmem>>, %arg6: memref<1x128xf32, #tpu.memory_space<vmem>>, %arg7: memref<128x128xbf16, #tpu.memory_space<vmem>>, %arg8: memref<128x128xbf16, #tpu.memory_space<vmem>>, %arg9: memref<128x256xf32, #tpu.memory_space<vmem>>) attributes {dimension_semantics = [#tpu.dimension_semantics<parallel>, #tpu.dimension_semantics<arbitrary>], iteration_bounds = array<i64: 1, 1>, scalar_prefetch = 0 : i64, scratch_operands = 1 : i64, tpu.core_type = #tpu.core_type<tc>, window_params = [{transform_indices = @transform_0, window_bounds = array<i64: 128, 128>}, {transform_indices = @transform_1, window_bounds = array<i64: 128, 128>}, {pipeline_mode = #tpu.pipeline_mode<synchronous>, transform_indices = @transform_2, window_bounds = array<i64: 128, 256>}, {pipeline_mode = #tpu.pipeline_mode<synchronous>, transform_indices = @transform_3, window_bounds = array<i64: 1, 128>}, {pipeline_mode = #tpu.pipeline_mode<synchronous>, transform_indices = @transform_4, window_bounds = array<i64: 1, 128>}, {transform_indices = @transform_5, window_bounds = array<i64: 128, 128>}, {transform_indices = @transform_6, window_bounds = array<i64: 128, 128>}]} {
    %c0_i32 = arith.constant 0 : i32
    %0 = arith.cmpi eq, %arg1, %c0_i32 : i32
    %1 = arith.extui %0 : i1 to i32
    %c0_i32_0 = arith.constant 0 : i32
    %2 = arith.cmpi ne, %1, %c0_i32_0 : i32
    scf.if %2 {
      %cst_13 = arith.constant 0.000000e+00 : f32
      %15 = vector.broadcast %cst_13 : f32 to vector<128x256xf32>
      %c0_14 = arith.constant 0 : index
      %c0_15 = arith.constant 0 : index
      %16 = vector.load %arg9[%c0_14, %c0_15] : memref<128x256xf32, #tpu.memory_space<vmem>>, vector<128x256xf32>
      tpu.vector_store %arg9[%c0_14, %c0_15], %15 {strides = array<i32>} : memref<128x256xf32, #tpu.memory_space<vmem>>, vector<128x256xf32>,
    } else {
    }
    %c0 = arith.constant 0 : index
    %c0_1 = arith.constant 0 : index
    %3 = vector.load %arg3[%c0, %c0_1] : memref<128x128xbf16, #tpu.memory_space<vmem>>, vector<128x128xbf16>
    %c0_2 = arith.constant 0 : index
    %c0_3 = arith.constant 0 : index
    %4 = vector.load %arg4[%c0_2, %c0_3] : memref<128x256xbf16, #tpu.memory_space<vmem>>, vector<128x256xbf16>
    %cst = arith.constant dense<0.000000e+00> : vector<128x256xf32>
    %5 = tpu.matmul %3, %4, %cst {dimension_numbers = #tpu.dot_dimension_numbers<[1], [0], [0], [1], [0, 0, 1, 1], [], []>} : vector<128x128xbf16>, vector<128x256xbf16>, vector<128x256xf32> -> vector<128x256xf32>
    %6 = arith.truncf %5 : vector<128x256xf32> to vector<128x256xbf16>
    %c0_4 = arith.constant 0 : index
    %c0_5 = arith.constant 0 : index
    %7 = vector.load %arg9[%c0_4, %c0_5] : memref<128x256xf32, #tpu.memory_space<vmem>>, vector<128x256xf32>
    %c0_6 = arith.constant 0 : index
    %c0_7 = arith.constant 0 : index
    %8 = vector.load %arg2[%c0_6, %c0_7] : memref<128x128xbf16, #tpu.memory_space<vmem>>, vector<128x128xbf16>
    %cst_8 = arith.constant dense<0.000000e+00> : vector<128x256xf32>
    %9 = tpu.matmul %8, %6, %cst_8 {dimension_numbers = #tpu.dot_dimension_numbers<[1], [0], [0], [1], [0, 0, 1, 1], [], []>} : vector<128x128xbf16>, vector<128x256xbf16>, vector<128x256xf32> -> vector<128x256xf32>
    %10 = arith.addf %7, %9 : vector<128x256xf32>
    %c0_9 = arith.constant 0 : index
    %c0_10 = arith.constant 0 : index
    %11 = vector.load %arg9[%c0_9, %c0_10] : memref<128x256xf32, #tpu.memory_space<vmem>>, vector<128x256xf32>
    tpu.vector_store %arg9[%c0_9, %c0_10], %10 {strides = array<i32>} : memref<128x256xf32, #tpu.memory_space<vmem>>, vector<128x256xf32>,
    %c0_i32_11 = arith.constant 0 : i32
    %12 = arith.cmpi eq, %arg1, %c0_i32_11 : i32
    %13 = arith.extui %12 : i1 to i32
    %c0_i32_12 = arith.constant 0 : i32
    %14 = arith.cmpi ne, %13, %c0_i32_12 : i32
    scf.if %14 {
      %c0_13 = arith.constant 0 : index
      %c0_14 = arith.constant 0 : index
      %15 = vector.load %arg9[%c0_13, %c0_14] : memref<128x256xf32, #tpu.memory_space<vmem>>, vector<128x128xf32>
      %c0_15 = arith.constant 0 : index
      %c0_16 = arith.constant 0 : index
      %16 = vector.load %arg5[%c0_15, %c0_16] : memref<1x128xf32, #tpu.memory_space<vmem>>, vector<1x128xf32>
      %17 = vector.broadcast %16 : vector<1x128xf32> to vector<128x128xf32>
      %18 = arith.addf %15, %17 : vector<128x128xf32>
      %cst_17 = arith.constant 0.000000e+00 : f32
      %19 = vector.broadcast %cst_17 : f32 to vector<128x128xf32>
      %20 = arith.maximumf %18, %19 : vector<128x128xf32>
      %21 = arith.truncf %20 : vector<128x128xf32> to vector<128x128xbf16>
      %c0_18 = arith.constant 0 : index
      %c0_19 = arith.constant 0 : index
      %22 = vector.load %arg7[%c0_18, %c0_19] : memref<128x128xbf16, #tpu.memory_space<vmem>>, vector<128x128xbf16>
      tpu.vector_store %arg7[%c0_18, %c0_19], %21 {strides = array<i32>} : memref<128x128xbf16, #tpu.memory_space<vmem>>, vector<128x128xbf16>,
      %c0_20 = arith.constant 0 : index
      %c128 = arith.constant 128 : index
      %23 = vector.load %arg9[%c0_20, %c128] : memref<128x256xf32, #tpu.memory_space<vmem>>, vector<128x128xf32>
      %c0_21 = arith.constant 0 : index
      %c0_22 = arith.constant 0 : index
      %24 = vector.load %arg6[%c0_21, %c0_22] : memref<1x128xf32, #tpu.memory_space<vmem>>, vector<1x128xf32>
      %25 = vector.broadcast %24 : vector<1x128xf32> to vector<128x128xf32>
      %26 = arith.addf %23, %25 : vector<128x128xf32>
      %27 = arith.truncf %26 : vector<128x128xf32> to vector<128x128xbf16>
      %c0_23 = arith.constant 0 : index
      %c0_24 = arith.constant 0 : index
      %28 = vector.load %arg8[%c0_23, %c0_24] : memref<128x128xbf16, #tpu.memory_space<vmem>>, vector<128x128xbf16>
      tpu.vector_store %arg8[%c0_23, %c0_24], %27 {strides = array<i32>} : memref<128x128xbf16, #tpu.memory_space<vmem>>, vector<128x128xbf16>,
    } else {
    }
    return
  }
  func.func @transform_0(%arg0: i32, %arg1: i32) -> (i32, i32) {
    %c0_i32 = arith.constant 0 : i32
    return %arg0, %arg1 : i32, i32
  }
  func.func @transform_1(%arg0: i32, %arg1: i32) -> (i32, i32) {
    %c0_i32 = arith.constant 0 : i32
    %c0_i32_0 = arith.constant 0 : i32
    return %arg1, %c0_i32 : i32, i32
  }
  func.func @transform_2(%arg0: i32, %arg1: i32) -> (i32, i32) {
    %c0_i32 = arith.constant 0 : i32
    %c0_i32_0 = arith.constant 0 : i32
    %c0_i32_1 = arith.constant 0 : i32
    return %c0_i32, %c0_i32_0 : i32, i32
  }
  func.func @transform_3(%arg0: i32, %arg1: i32) -> (i32, i32) {
    %c0_i32 = arith.constant 0 : i32
    %c0_i32_0 = arith.constant 0 : i32
    %c0_i32_1 = arith.constant 0 : i32
    return %c0_i32, %c0_i32_0 : i32, i32
  }
  func.func @transform_4(%arg0: i32, %arg1: i32) -> (i32, i32) {
    %c0_i32 = arith.constant 0 : i32
    %c0_i32_0 = arith.constant 0 : i32
    %c0_i32_1 = arith.constant 0 : i32
    return %c0_i32, %c0_i32_0 : i32, i32
  }
  func.func @transform_5(%arg0: i32, %arg1: i32) -> (i32, i32) {
    %c0_i32 = arith.constant 0 : i32
    %c0_i32_0 = arith.constant 0 : i32
    return %arg0, %c0_i32 : i32, i32
  }
  func.func @transform_6(%arg0: i32, %arg1: i32) -> (i32, i32) {
    %c0_i32 = arith.constant 0 : i32
    %c0_i32_0 = arith.constant 0 : i32
    return %arg0, %c0_i32 : i32, i32
  }
}

module attributes {stable_mosaic.version = 11 : i64} {
  func.func @_propagate_kernel(%arg0: i32, %arg1: i32, %arg2: memref<128x128xbf16, #tpu.memory_space<vmem>>, %arg3: memref<128x128xbf16, #tpu.memory_space<vmem>>, %arg4: memref<1x128xf32, #tpu.memory_space<vmem>>, %arg5: memref<128x128xbf16, #tpu.memory_space<vmem>>, %arg6: memref<128x128xf32, #tpu.memory_space<vmem>>) attributes {dimension_semantics = [#tpu.dimension_semantics<parallel>, #tpu.dimension_semantics<arbitrary>], iteration_bounds = array<i64: 1, 1>, scalar_prefetch = 0 : i64, scratch_operands = 1 : i64, tpu.core_type = #tpu.core_type<tc>, window_params = [{transform_indices = @transform_0, window_bounds = array<i64: 128, 128>}, {pipeline_mode = #tpu.pipeline_mode<synchronous>, transform_indices = @transform_1, window_bounds = array<i64: 128, 128>}, {pipeline_mode = #tpu.pipeline_mode<synchronous>, transform_indices = @transform_2, window_bounds = array<i64: 1, 128>}, {transform_indices = @transform_3, window_bounds = array<i64: 128, 128>}]} {
    %c0_i32 = arith.constant 0 : i32
    %0 = arith.cmpi eq, %arg1, %c0_i32 : i32
    %1 = arith.extui %0 : i1 to i32
    %c0_i32_0 = arith.constant 0 : i32
    %2 = arith.cmpi ne, %1, %c0_i32_0 : i32
    scf.if %2 {
      %cst_9 = arith.constant 0.000000e+00 : f32
      %15 = vector.broadcast %cst_9 : f32 to vector<128x128xf32>
      %c0_10 = arith.constant 0 : index
      %c0_11 = arith.constant 0 : index
      %16 = vector.load %arg6[%c0_10, %c0_11] : memref<128x128xf32, #tpu.memory_space<vmem>>, vector<128x128xf32>
      tpu.vector_store %arg6[%c0_10, %c0_11], %15 {strides = array<i32>} : memref<128x128xf32, #tpu.memory_space<vmem>>, vector<128x128xf32>,
    } else {
    }
    %c128_i32 = arith.constant 128 : i32
    %3 = arith.muli %arg1, %c128_i32 : i32
    %4 = tpu.assume_multiple %3, 128 : i32
    %5 = arith.index_cast %4 : i32 to index
    %c0 = arith.constant 0 : index
    %6 = vector.load %arg3[%5, %c0] : memref<128x128xbf16, #tpu.memory_space<vmem>>, vector<128x128xbf16>
    %c0_1 = arith.constant 0 : index
    %c0_2 = arith.constant 0 : index
    %7 = vector.load %arg6[%c0_1, %c0_2] : memref<128x128xf32, #tpu.memory_space<vmem>>, vector<128x128xf32>
    %c0_3 = arith.constant 0 : index
    %c0_4 = arith.constant 0 : index
    %8 = vector.load %arg2[%c0_3, %c0_4] : memref<128x128xbf16, #tpu.memory_space<vmem>>, vector<128x128xbf16>
    %cst = arith.constant dense<0.000000e+00> : vector<128x128xf32>
    %9 = tpu.matmul %8, %6, %cst {dimension_numbers = #tpu.dot_dimension_numbers<[1], [0], [0], [1], [0, 0, 1, 1], [], []>} : vector<128x128xbf16>, vector<128x128xbf16>, vector<128x128xf32> -> vector<128x128xf32>
    %10 = arith.addf %7, %9 : vector<128x128xf32>
    %c0_5 = arith.constant 0 : index
    %c0_6 = arith.constant 0 : index
    %11 = vector.load %arg6[%c0_5, %c0_6] : memref<128x128xf32, #tpu.memory_space<vmem>>, vector<128x128xf32>
    tpu.vector_store %arg6[%c0_5, %c0_6], %10 {strides = array<i32>} : memref<128x128xf32, #tpu.memory_space<vmem>>, vector<128x128xf32>,
    %c0_i32_7 = arith.constant 0 : i32
    %12 = arith.cmpi eq, %arg1, %c0_i32_7 : i32
    %13 = arith.extui %12 : i1 to i32
    %c0_i32_8 = arith.constant 0 : i32
    %14 = arith.cmpi ne, %13, %c0_i32_8 : i32
    scf.if %14 {
      %c0_9 = arith.constant 0 : index
      %c0_10 = arith.constant 0 : index
      %15 = vector.load %arg6[%c0_9, %c0_10] : memref<128x128xf32, #tpu.memory_space<vmem>>, vector<128x128xf32>
      %c0_11 = arith.constant 0 : index
      %c0_12 = arith.constant 0 : index
      %16 = vector.load %arg4[%c0_11, %c0_12] : memref<1x128xf32, #tpu.memory_space<vmem>>, vector<1x128xf32>
      %17 = vector.broadcast %16 : vector<1x128xf32> to vector<128x128xf32>
      %18 = arith.addf %15, %17 : vector<128x128xf32>
      %cst_13 = arith.constant 0.000000e+00 : f32
      %19 = vector.broadcast %cst_13 : f32 to vector<128x128xf32>
      %20 = arith.maximumf %18, %19 : vector<128x128xf32>
      %21 = arith.truncf %20 : vector<128x128xf32> to vector<128x128xbf16>
      %c0_14 = arith.constant 0 : index
      %c0_15 = arith.constant 0 : index
      %22 = vector.load %arg5[%c0_14, %c0_15] : memref<128x128xbf16, #tpu.memory_space<vmem>>, vector<128x128xbf16>
      tpu.vector_store %arg5[%c0_14, %c0_15], %21 {strides = array<i32>} : memref<128x128xbf16, #tpu.memory_space<vmem>>, vector<128x128xbf16>,
    } else {
    }
    return
  }
  func.func @transform_0(%arg0: i32, %arg1: i32) -> (i32, i32) {
    %c0_i32 = arith.constant 0 : i32
    return %arg0, %arg1 : i32, i32
  }
  func.func @transform_1(%arg0: i32, %arg1: i32) -> (i32, i32) {
    %c0_i32 = arith.constant 0 : i32
    %c0_i32_0 = arith.constant 0 : i32
    %c0_i32_1 = arith.constant 0 : i32
    return %c0_i32, %c0_i32_0 : i32, i32
  }
  func.func @transform_2(%arg0: i32, %arg1: i32) -> (i32, i32) {
    %c0_i32 = arith.constant 0 : i32
    %c0_i32_0 = arith.constant 0 : i32
    %c0_i32_1 = arith.constant 0 : i32
    return %c0_i32, %c0_i32_0 : i32, i32
  }
  func.func @transform_3(%arg0: i32, %arg1: i32) -> (i32, i32) {
    %c0_i32 = arith.constant 0 : i32
    %c0_i32_0 = arith.constant 0 : i32
    return %arg0, %c0_i32 : i32, i32
  }
}

module attributes {stable_mosaic.version = 11 : i64} {
  func.func @_feat_transform_kernel(%arg0: i32, %arg1: memref<128x128xbf16, #tpu.memory_space<vmem>>, %arg2: memref<128x128xbf16, #tpu.memory_space<vmem>>, %arg3: memref<128x128xbf16, #tpu.memory_space<vmem>>) attributes {dimension_semantics = [#tpu.dimension_semantics<parallel>], iteration_bounds = array<i64: 1>, scalar_prefetch = 0 : i64, scratch_operands = 0 : i64, tpu.core_type = #tpu.core_type<tc>, window_params = [{transform_indices = @transform_0, window_bounds = array<i64: 128, 128>}, {pipeline_mode = #tpu.pipeline_mode<synchronous>, transform_indices = @transform_1, window_bounds = array<i64: 128, 128>}, {transform_indices = @transform_2, window_bounds = array<i64: 128, 128>}]} {
    %c0 = arith.constant 0 : index
    %c0_0 = arith.constant 0 : index
    %0 = vector.load %arg1[%c0, %c0_0] : memref<128x128xbf16, #tpu.memory_space<vmem>>, vector<128x128xbf16>
    %c0_1 = arith.constant 0 : index
    %c0_2 = arith.constant 0 : index
    %1 = vector.load %arg2[%c0_1, %c0_2] : memref<128x128xbf16, #tpu.memory_space<vmem>>, vector<128x128xbf16>
    %cst = arith.constant dense<0.000000e+00> : vector<128x128xf32>
    %2 = tpu.matmul %0, %1, %cst {dimension_numbers = #tpu.dot_dimension_numbers<[1], [0], [0], [1], [0, 0, 1, 1], [], []>} : vector<128x128xbf16>, vector<128x128xbf16>, vector<128x128xf32> -> vector<128x128xf32>
    %3 = arith.truncf %2 : vector<128x128xf32> to vector<128x128xbf16>
    %c0_3 = arith.constant 0 : index
    %c0_4 = arith.constant 0 : index
    %4 = vector.load %arg3[%c0_3, %c0_4] : memref<128x128xbf16, #tpu.memory_space<vmem>>, vector<128x128xbf16>
    tpu.vector_store %arg3[%c0_3, %c0_4], %3 {strides = array<i32>} : memref<128x128xbf16, #tpu.memory_space<vmem>>, vector<128x128xbf16>,
    return
  }
  func.func @transform_0(%arg0: i32) -> (i32, i32) {
    %c0_i32 = arith.constant 0 : i32
    %c0_i32_0 = arith.constant 0 : i32
    return %arg0, %c0_i32 : i32, i32
  }
  func.func @transform_1(%arg0: i32) -> (i32, i32) {
    %c0_i32 = arith.constant 0 : i32
    %c0_i32_0 = arith.constant 0 : i32
    %c0_i32_1 = arith.constant 0 : i32
    return %c0_i32, %c0_i32_0 : i32, i32
  }
  func.func @transform_2(%arg0: i32) -> (i32, i32) {
    %c0_i32 = arith.constant 0 : i32
    %c0_i32_0 = arith.constant 0 : i32
    return %arg0, %c0_i32 : i32, i32
  }
}

module attributes {stable_mosaic.version = 11 : i64} {
  func.func @_fused_gcn_kernel(%arg0: i32, %arg1: i32, %arg2: memref<128x128xbf16, #tpu.memory_space<vmem>>, %arg3: memref<128x128xbf16, #tpu.memory_space<vmem>>, %arg4: memref<128x128xbf16, #tpu.memory_space<vmem>>, %arg5: memref<1x128xf32, #tpu.memory_space<vmem>>, %arg6: memref<128x128xbf16, #tpu.memory_space<vmem>>, %arg7: memref<128x128xf32, #tpu.memory_space<vmem>>) attributes {dimension_semantics = [#tpu.dimension_semantics<parallel>, #tpu.dimension_semantics<arbitrary>], iteration_bounds = array<i64: 1, 1>, scalar_prefetch = 0 : i64, scratch_operands = 1 : i64, tpu.core_type = #tpu.core_type<tc>, window_params = [{transform_indices = @transform_0, window_bounds = array<i64: 128, 128>}, {transform_indices = @transform_1, window_bounds = array<i64: 128, 128>}, {pipeline_mode = #tpu.pipeline_mode<synchronous>, transform_indices = @transform_2, window_bounds = array<i64: 128, 128>}, {pipeline_mode = #tpu.pipeline_mode<synchronous>, transform_indices = @transform_3, window_bounds = array<i64: 1, 128>}, {transform_indices = @transform_4, window_bounds = array<i64: 128, 128>}]} {
    %c0_i32 = arith.constant 0 : i32
    %0 = arith.cmpi eq, %arg1, %c0_i32 : i32
    %1 = arith.extui %0 : i1 to i32
    %c0_i32_0 = arith.constant 0 : i32
    %2 = arith.cmpi ne, %1, %c0_i32_0 : i32
    scf.if %2 {
      %cst_13 = arith.constant 0.000000e+00 : f32
      %15 = vector.broadcast %cst_13 : f32 to vector<128x128xf32>
      %c0_14 = arith.constant 0 : index
      %c0_15 = arith.constant 0 : index
      %16 = vector.load %arg7[%c0_14, %c0_15] : memref<128x128xf32, #tpu.memory_space<vmem>>, vector<128x128xf32>
      tpu.vector_store %arg7[%c0_14, %c0_15], %15 {strides = array<i32>} : memref<128x128xf32, #tpu.memory_space<vmem>>, vector<128x128xf32>,
    } else {
    }
    %c0 = arith.constant 0 : index
    %c0_1 = arith.constant 0 : index
    %3 = vector.load %arg3[%c0, %c0_1] : memref<128x128xbf16, #tpu.memory_space<vmem>>, vector<128x128xbf16>
    %c0_2 = arith.constant 0 : index
    %c0_3 = arith.constant 0 : index
    %4 = vector.load %arg4[%c0_2, %c0_3] : memref<128x128xbf16, #tpu.memory_space<vmem>>, vector<128x128xbf16>
    %cst = arith.constant dense<0.000000e+00> : vector<128x128xf32>
    %5 = tpu.matmul %3, %4, %cst {dimension_numbers = #tpu.dot_dimension_numbers<[1], [0], [0], [1], [0, 0, 1, 1], [], []>} : vector<128x128xbf16>, vector<128x128xbf16>, vector<128x128xf32> -> vector<128x128xf32>
    %6 = arith.truncf %5 : vector<128x128xf32> to vector<128x128xbf16>
    %c0_4 = arith.constant 0 : index
    %c0_5 = arith.constant 0 : index
    %7 = vector.load %arg7[%c0_4, %c0_5] : memref<128x128xf32, #tpu.memory_space<vmem>>, vector<128x128xf32>
    %c0_6 = arith.constant 0 : index
    %c0_7 = arith.constant 0 : index
    %8 = vector.load %arg2[%c0_6, %c0_7] : memref<128x128xbf16, #tpu.memory_space<vmem>>, vector<128x128xbf16>
    %cst_8 = arith.constant dense<0.000000e+00> : vector<128x128xf32>
    %9 = tpu.matmul %8, %6, %cst_8 {dimension_numbers = #tpu.dot_dimension_numbers<[1], [0], [0], [1], [0, 0, 1, 1], [], []>} : vector<128x128xbf16>, vector<128x128xbf16>, vector<128x128xf32> -> vector<128x128xf32>
    %10 = arith.addf %7, %9 : vector<128x128xf32>
    %c0_9 = arith.constant 0 : index
    %c0_10 = arith.constant 0 : index
    %11 = vector.load %arg7[%c0_9, %c0_10] : memref<128x128xf32, #tpu.memory_space<vmem>>, vector<128x128xf32>
    tpu.vector_store %arg7[%c0_9, %c0_10], %10 {strides = array<i32>} : memref<128x128xf32, #tpu.memory_space<vmem>>, vector<128x128xf32>,
    %c0_i32_11 = arith.constant 0 : i32
    %12 = arith.cmpi eq, %arg1, %c0_i32_11 : i32
    %13 = arith.extui %12 : i1 to i32
    %c0_i32_12 = arith.constant 0 : i32
    %14 = arith.cmpi ne, %13, %c0_i32_12 : i32
    scf.if %14 {
      %c0_13 = arith.constant 0 : index
      %c0_14 = arith.constant 0 : index
      %15 = vector.load %arg7[%c0_13, %c0_14] : memref<128x128xf32, #tpu.memory_space<vmem>>, vector<128x128xf32>
      %c0_15 = arith.constant 0 : index
      %c0_16 = arith.constant 0 : index
      %16 = vector.load %arg5[%c0_15, %c0_16] : memref<1x128xf32, #tpu.memory_space<vmem>>, vector<1x128xf32>
      %17 = vector.broadcast %16 : vector<1x128xf32> to vector<128x128xf32>
      %18 = arith.addf %15, %17 : vector<128x128xf32>
      %19 = arith.truncf %18 : vector<128x128xf32> to vector<128x128xbf16>
      %c0_17 = arith.constant 0 : index
      %c0_18 = arith.constant 0 : index
      %20 = vector.load %arg6[%c0_17, %c0_18] : memref<128x128xbf16, #tpu.memory_space<vmem>>, vector<128x128xbf16>
      tpu.vector_store %arg6[%c0_17, %c0_18], %19 {strides = array<i32>} : memref<128x128xbf16, #tpu.memory_space<vmem>>, vector<128x128xbf16>,
    } else {
    }
    return
  }
  func.func @transform_0(%arg0: i32, %arg1: i32) -> (i32, i32) {
    %c0_i32 = arith.constant 0 : i32
    return %arg0, %arg1 : i32, i32
  }
  func.func @transform_1(%arg0: i32, %arg1: i32) -> (i32, i32) {
    %c0_i32 = arith.constant 0 : i32
    %c0_i32_0 = arith.constant 0 : i32
    return %arg1, %c0_i32 : i32, i32
  }
  func.func @transform_2(%arg0: i32, %arg1: i32) -> (i32, i32) {
    %c0_i32 = arith.constant 0 : i32
    %c0_i32_0 = arith.constant 0 : i32
    %c0_i32_1 = arith.constant 0 : i32
    return %c0_i32, %c0_i32_0 : i32, i32
  }
  func.func @transform_3(%arg0: i32, %arg1: i32) -> (i32, i32) {
    %c0_i32 = arith.constant 0 : i32
    %c0_i32_0 = arith.constant 0 : i32
    %c0_i32_1 = arith.constant 0 : i32
    return %c0_i32, %c0_i32_0 : i32, i32
  }
  func.func @transform_4(%arg0: i32, %arg1: i32) -> (i32, i32) {
    %c0_i32 = arith.constant 0 : i32
    %c0_i32_0 = arith.constant 0 : i32
    return %arg0, %c0_i32 : i32, i32
  }
}

module attributes {stable_mosaic.version = 11 : i64} {
  func.func @_fused_gcn_kernel(%arg0: i32, %arg1: i32, %arg2: memref<128x128xbf16, #tpu.memory_space<vmem>>, %arg3: memref<128x128xbf16, #tpu.memory_space<vmem>>, %arg4: memref<128x128xbf16, #tpu.memory_space<vmem>>, %arg5: memref<1x128xf32, #tpu.memory_space<vmem>>, %arg6: memref<128x128xf32, #tpu.memory_space<vmem>>, %arg7: memref<128x128xf32, #tpu.memory_space<vmem>>) attributes {dimension_semantics = [#tpu.dimension_semantics<parallel>, #tpu.dimension_semantics<arbitrary>], iteration_bounds = array<i64: 1, 1>, scalar_prefetch = 0 : i64, scratch_operands = 1 : i64, tpu.core_type = #tpu.core_type<tc>, window_params = [{transform_indices = @transform_0, window_bounds = array<i64: 128, 128>}, {transform_indices = @transform_1, window_bounds = array<i64: 128, 128>}, {pipeline_mode = #tpu.pipeline_mode<synchronous>, transform_indices = @transform_2, window_bounds = array<i64: 128, 128>}, {pipeline_mode = #tpu.pipeline_mode<synchronous>, transform_indices = @transform_3, window_bounds = array<i64: 1, 128>}, {transform_indices = @transform_4, window_bounds = array<i64: 128, 128>}]} {
    %c0_i32 = arith.constant 0 : i32
    %0 = arith.cmpi eq, %arg1, %c0_i32 : i32
    %1 = arith.extui %0 : i1 to i32
    %c0_i32_0 = arith.constant 0 : i32
    %2 = arith.cmpi ne, %1, %c0_i32_0 : i32
    scf.if %2 {
      %cst_13 = arith.constant 0.000000e+00 : f32
      %15 = vector.broadcast %cst_13 : f32 to vector<128x128xf32>
      %c0_14 = arith.constant 0 : index
      %c0_15 = arith.constant 0 : index
      %16 = vector.load %arg7[%c0_14, %c0_15] : memref<128x128xf32, #tpu.memory_space<vmem>>, vector<128x128xf32>
      tpu.vector_store %arg7[%c0_14, %c0_15], %15 {strides = array<i32>} : memref<128x128xf32, #tpu.memory_space<vmem>>, vector<128x128xf32>,
    } else {
    }
    %c0 = arith.constant 0 : index
    %c0_1 = arith.constant 0 : index
    %3 = vector.load %arg3[%c0, %c0_1] : memref<128x128xbf16, #tpu.memory_space<vmem>>, vector<128x128xbf16>
    %c0_2 = arith.constant 0 : index
    %c0_3 = arith.constant 0 : index
    %4 = vector.load %arg4[%c0_2, %c0_3] : memref<128x128xbf16, #tpu.memory_space<vmem>>, vector<128x128xbf16>
    %cst = arith.constant dense<0.000000e+00> : vector<128x128xf32>
    %5 = tpu.matmul %3, %4, %cst {dimension_numbers = #tpu.dot_dimension_numbers<[1], [0], [0], [1], [0, 0, 1, 1], [], []>} : vector<128x128xbf16>, vector<128x128xbf16>, vector<128x128xf32> -> vector<128x128xf32>
    %6 = arith.truncf %5 : vector<128x128xf32> to vector<128x128xbf16>
    %c0_4 = arith.constant 0 : index
    %c0_5 = arith.constant 0 : index
    %7 = vector.load %arg7[%c0_4, %c0_5] : memref<128x128xf32, #tpu.memory_space<vmem>>, vector<128x128xf32>
    %c0_6 = arith.constant 0 : index
    %c0_7 = arith.constant 0 : index
    %8 = vector.load %arg2[%c0_6, %c0_7] : memref<128x128xbf16, #tpu.memory_space<vmem>>, vector<128x128xbf16>
    %cst_8 = arith.constant dense<0.000000e+00> : vector<128x128xf32>
    %9 = tpu.matmul %8, %6, %cst_8 {dimension_numbers = #tpu.dot_dimension_numbers<[1], [0], [0], [1], [0, 0, 1, 1], [], []>} : vector<128x128xbf16>, vector<128x128xbf16>, vector<128x128xf32> -> vector<128x128xf32>
    %10 = arith.addf %7, %9 : vector<128x128xf32>
    %c0_9 = arith.constant 0 : index
    %c0_10 = arith.constant 0 : index
    %11 = vector.load %arg7[%c0_9, %c0_10] : memref<128x128xf32, #tpu.memory_space<vmem>>, vector<128x128xf32>
    tpu.vector_store %arg7[%c0_9, %c0_10], %10 {strides = array<i32>} : memref<128x128xf32, #tpu.memory_space<vmem>>, vector<128x128xf32>,
    %c0_i32_11 = arith.constant 0 : i32
    %12 = arith.cmpi eq, %arg1, %c0_i32_11 : i32
    %13 = arith.extui %12 : i1 to i32
    %c0_i32_12 = arith.constant 0 : i32
    %14 = arith.cmpi ne, %13, %c0_i32_12 : i32
    scf.if %14 {
      %c0_13 = arith.constant 0 : index
      %c0_14 = arith.constant 0 : index
      %15 = vector.load %arg7[%c0_13, %c0_14] : memref<128x128xf32, #tpu.memory_space<vmem>>, vector<128x128xf32>
      %c0_15 = arith.constant 0 : index
      %c0_16 = arith.constant 0 : index
      %16 = vector.load %arg5[%c0_15, %c0_16] : memref<1x128xf32, #tpu.memory_space<vmem>>, vector<1x128xf32>
      %17 = vector.broadcast %16 : vector<1x128xf32> to vector<128x128xf32>
      %18 = arith.addf %15, %17 : vector<128x128xf32>
      %c0_17 = arith.constant 0 : index
      %c0_18 = arith.constant 0 : index
      %19 = vector.load %arg6[%c0_17, %c0_18] : memref<128x128xf32, #tpu.memory_space<vmem>>, vector<128x128xf32>
      tpu.vector_store %arg6[%c0_17, %c0_18], %18 {strides = array<i32>} : memref<128x128xf32, #tpu.memory_space<vmem>>, vector<128x128xf32>,
    } else {
    }
    return
  }
  func.func @transform_0(%arg0: i32, %arg1: i32) -> (i32, i32) {
    %c0_i32 = arith.constant 0 : i32
    return %arg0, %arg1 : i32, i32
  }
  func.func @transform_1(%arg0: i32, %arg1: i32) -> (i32, i32) {
    %c0_i32 = arith.constant 0 : i32
    %c0_i32_0 = arith.constant 0 : i32
    return %arg1, %c0_i32 : i32, i32
  }
  func.func @transform_2(%arg0: i32, %arg1: i32) -> (i32, i32) {
    %c0_i32 = arith.constant 0 : i32
    %c0_i32_0 = arith.constant 0 : i32
    %c0_i32_1 = arith.constant 0 : i32
    return %c0_i32, %c0_i32_0 : i32, i32
  }
  func.func @transform_3(%arg0: i32, %arg1: i32) -> (i32, i32) {
    %c0_i32 = arith.constant 0 : i32
    %c0_i32_0 = arith.constant 0 : i32
    %c0_i32_1 = arith.constant 0 : i32
    return %c0_i32, %c0_i32_0 : i32, i32
  }
  func.func @transform_4(%arg0: i32, %arg1: i32) -> (i32, i32) {
    %c0_i32 = arith.constant 0 : i32
    %c0_i32_0 = arith.constant 0 : i32
    return %arg0, %c0_i32 : i32, i32
  }
}

module attributes {stable_mosaic.version = 11 : i64} {
  func.func @_gram_kernel(%arg0: i32, %arg1: i32, %arg2: memref<128x128xbf16, #tpu.memory_space<vmem>>, %arg3: memref<128x128xbf16, #tpu.memory_space<vmem>>, %arg4: memref<128x128xf32, #tpu.memory_space<vmem>>) attributes {dimension_semantics = [#tpu.dimension_semantics<parallel>, #tpu.dimension_semantics<parallel>], iteration_bounds = array<i64: 1, 1>, scalar_prefetch = 0 : i64, scratch_operands = 0 : i64, tpu.core_type = #tpu.core_type<tc>, window_params = [{transform_indices = @transform_0, window_bounds = array<i64: 128, 128>}, {transform_indices = @transform_1, window_bounds = array<i64: 128, 128>}, {transform_indices = @transform_2, window_bounds = array<i64: 128, 128>}]} {
    %c0 = arith.constant 0 : index
    %c0_0 = arith.constant 0 : index
    %0 = vector.load %arg2[%c0, %c0_0] : memref<128x128xbf16, #tpu.memory_space<vmem>>, vector<128x128xbf16>
    %c0_1 = arith.constant 0 : index
    %c0_2 = arith.constant 0 : index
    %1 = vector.load %arg3[%c0_1, %c0_2] : memref<128x128xbf16, #tpu.memory_space<vmem>>, vector<128x128xbf16>
    %cst = arith.constant dense<0.000000e+00> : vector<128x128xf32>
    %2 = tpu.matmul %0, %1, %cst {dimension_numbers = #tpu.dot_dimension_numbers<[1], [1], [0], [0], [0, 0, 1, 0], [], []>} : vector<128x128xbf16>, vector<128x128xbf16>, vector<128x128xf32> -> vector<128x128xf32>
    %c0_3 = arith.constant 0 : index
    %c0_4 = arith.constant 0 : index
    %3 = vector.load %arg4[%c0_3, %c0_4] : memref<128x128xf32, #tpu.memory_space<vmem>>, vector<128x128xf32>
    tpu.vector_store %arg4[%c0_3, %c0_4], %2 {strides = array<i32>} : memref<128x128xf32, #tpu.memory_space<vmem>>, vector<128x128xf32>,
    return
  }
  func.func @transform_0(%arg0: i32, %arg1: i32) -> (i32, i32) {
    %c0_i32 = arith.constant 0 : i32
    %c0_i32_0 = arith.constant 0 : i32
    return %arg0, %c0_i32 : i32, i32
  }
  func.func @transform_1(%arg0: i32, %arg1: i32) -> (i32, i32) {
    %c0_i32 = arith.constant 0 : i32
    %c0_i32_0 = arith.constant 0 : i32
    return %arg1, %c0_i32 : i32, i32
  }
  func.func @transform_2(%arg0: i32, %arg1: i32) -> (i32, i32) {
    %c0_i32 = arith.constant 0 : i32
    return %arg0, %arg1 : i32, i32
  }
}

</mosaic_0001>

<llo_original>
// kernel: dominant_forward.7
$region0: #{dominant_forward.7}
  #allocation0 [shape = 'u32[]', space=smem, size = 0x4, offset = 0x4, fixed_abs, tag = 'smem constant byte address 0x4 - core index']
  #allocation1 [shape = 'u32[144,128]{1,0:T(1,128)}', space=vmem, size = 0x12000, scoped, tag = 'internal scratch']
  #allocation2 [shape = 'f32[128,128]{1,0:T(8,128)}', space=vmem, size = 0x10000, scoped, tag = 'scratch operand']
  %s0 = inlined_call_operand.vmem [shape: bf16[128,128], index: 0, kind: input, shape index: {}]
  %s1 = inlined_call_operand.vmem [shape: bf16[128,128], index: 1, kind: input, shape index: {}]
  %s2 = inlined_call_operand.vmem [shape: f32[1,128], index: 2, kind: input, shape index: {}]
  %s3 = inlined_call_operand.vmem [shape: bf16[128,128], index: 3, kind: output, shape index: {}]
  %s4 = sld [smem:[#allocation0]]
  $region30: #{dominant_forward.7} parent=0
    _
  %s6 = ssub.s32 1, %s4
  %s7 = scalar_select 0, %s6, %s4
  // Predicated region
  $region2: #{dominant_forward.7} parent=0 // pred_check
    _
  $region3: #{dominant_forward.7} parent=0 // pred_check_branch
    %9 = sbr.rel (0) target = $region5
  $region4: #{dominant_forward.7} parent=0 // pred_region
    _
  $region5: #{dominant_forward.7} parent=0 // pred_fallthru
    _
  // Predicated region
  $region6: #{dominant_forward.7} parent=0 // pred_check
    _
  $region7: #{dominant_forward.7} parent=0 // pred_check_branch
    %11 = sbr.rel (0) target = $region9
  $region8: #{dominant_forward.7} parent=0 // pred_region
    _
  $region9: #{dominant_forward.7} parent=0 // pred_fallthru
    _
  // Predicated region
  $region10: #{dominant_forward.7} parent=0 // pred_check
    _
  $region11: #{dominant_forward.7} parent=0 // pred_check_branch
    %13 = sbr.rel (0) target = $region13
  $region12: #{dominant_forward.7} parent=0 // pred_region
    _
  $region13: #{dominant_forward.7} parent=0 // pred_fallthru
    _
  %p15 = scmp.eq.s32.totalorder 0, 0
  // Predicated region
  $region14: #{dominant_forward.7} parent=0 // pred_check
    %p16 = pneg %p15
  $region15: #{dominant_forward.7} parent=0 // pred_check_branch
    %18 = sbr.rel (%p16) target = $region17
  $region16: #{dominant_forward.7} parent=0 // pred_region
    %19 = vst [vmem:[#allocation2] sm:$0xff] 0.0
    %20 = vst [vmem:[#allocation2 + $0x8] sm:$0xff] 0.0
    %21 = vst [vmem:[#allocation2 + $0x10] sm:$0xff] 0.0
    %22 = vst [vmem:[#allocation2 + $0x18] sm:$0xff] 0.0
    %23 = vst [vmem:[#allocation2 + $0x20] sm:$0xff] 0.0
    %24 = vst [vmem:[#allocation2 + $0x28] sm:$0xff] 0.0
    %25 = vst [vmem:[#allocation2 + $0x30] sm:$0xff] 0.0
    %26 = vst [vmem:[#allocation2 + $0x38] sm:$0xff] 0.0
    %27 = vst [vmem:[#allocation2 + $0x40] sm:$0xff] 0.0
    %28 = vst [vmem:[#allocation2 + $0x48] sm:$0xff] 0.0
    %29 = vst [vmem:[#allocation2 + $0x50] sm:$0xff] 0.0
    %30 = vst [vmem:[#allocation2 + $0x58] sm:$0xff] 0.0
    %31 = vst [vmem:[#allocation2 + $0x60] sm:$0xff] 0.0
    %32 = vst [vmem:[#allocation2 + $0x68] sm:$0xff] 0.0
    %33 = vst [vmem:[#allocation2 + $0x70] sm:$0xff] 0.0
    %34 = vst [vmem:[#allocation2 + $0x78] sm:$0xff] 0.0
  $region17: #{dominant_forward.7} parent=0 // pred_fallthru
    _
  %s35 = smul.u32 0, 128
  %s36 = sshra.s32 %s35, 3
  %s37 = sand.u32 %s35, 7
  %s38 = smul.addr %s36, 4
  %s39 = scalar_lea.vmem %s1, %s38
  %v40 = vld [vmem:[%s39] sm:$0xf]
  %v41 = vld [vmem:[%s39 + $0x4] sm:$0xf]
  %v42 = vld [vmem:[%s39 + $0x8] sm:$0xf]
  %v43 = vld [vmem:[%s39 + $0xc] sm:$0xf]
  %v44 = vld [vmem:[%s39 + $0x10] sm:$0xf]
  %v45 = vld [vmem:[%s39 + $0x14] sm:$0xf]
  %v46 = vld [vmem:[%s39 + $0x18] sm:$0xf]
  %v47 = vld [vmem:[%s39 + $0x1c] sm:$0xf]
  %v48 = vld [vmem:[%s39 + $0x20] sm:$0xf]
  %v49 = vld [vmem:[%s39 + $0x24] sm:$0xf]
  %v50 = vld [vmem:[%s39 + $0x28] sm:$0xf]
  %v51 = vld [vmem:[%s39 + $0x2c] sm:$0xf]
  %v52 = vld [vmem:[%s39 + $0x30] sm:$0xf]
  %v53 = vld [vmem:[%s39 + $0x34] sm:$0xf]
  %v54 = vld [vmem:[%s39 + $0x38] sm:$0xf]
  %v55 = vld [vmem:[%s39 + $0x3c] sm:$0xf]
  %v56 = vld [vmem:[#allocation2] sm:$0xff]
  %v57 = vld [vmem:[#allocation2 + $0x8] sm:$0xff]
  %v58 = vld [vmem:[#allocation2 + $0x10] sm:$0xff]
  %v59 = vld [vmem:[#allocation2 + $0x18] sm:$0xff]
  %v60 = vld [vmem:[#allocation2 + $0x20] sm:$0xff]
  %v61 = vld [vmem:[#allocation2 + $0x28] sm:$0xff]
  %v62 = vld [vmem:[#allocation2 + $0x30] sm:$0xff]
  %v63 = vld [vmem:[#allocation2 + $0x38] sm:$0xff]
  %v64 = vld [vmem:[#allocation2 + $0x40] sm:$0xff]
  %v65 = vld [vmem:[#allocation2 + $0x48] sm:$0xff]
  %v66 = vld [vmem:[#allocation2 + $0x50] sm:$0xff]
  %v67 = vld [vmem:[#allocation2 + $0x58] sm:$0xff]
  %v68 = vld [vmem:[#allocation2 + $0x60] sm:$0xff]
  %v69 = vld [vmem:[#allocation2 + $0x68] sm:$0xff]
  %v70 = vld [vmem:[#allocation2 + $0x70] sm:$0xff]
  %v71 = vld [vmem:[#allocation2 + $0x78] sm:$0xff]
  %v72 = vld [vmem:[%s0] sm:$0xf]
  %v73 = vld [vmem:[%s0 + $0x4] sm:$0xf]
  %v74 = vld [vmem:[%s0 + $0x8] sm:$0xf]
  %v75 = vld [vmem:[%s0 + $0xc] sm:$0xf]
  %v76 = vld [vmem:[%s0 + $0x10] sm:$0xf]
  %v77 = vld [vmem:[%s0 + $0x14] sm:$0xf]
  %v78 = vld [vmem:[%s0 + $0x18] sm:$0xf]
  %v79 = vld [vmem:[%s0 + $0x1c] sm:$0xf]
  %v80 = vld [vmem:[%s0 + $0x20] sm:$0xf]
  %v81 = vld [vmem:[%s0 + $0x24] sm:$0xf]
  %v82 = vld [vmem:[%s0 + $0x28] sm:$0xf]
  %v83 = vld [vmem:[%s0 + $0x2c] sm:$0xf]
  %v84 = vld [vmem:[%s0 + $0x30] sm:$0xf]
  %v85 = vld [vmem:[%s0 + $0x34] sm:$0xf]
  %v86 = vld [vmem:[%s0 + $0x38] sm:$0xf]
  %v87 = vld [vmem:[%s0 + $0x3c] sm:$0xf]
  %v104 = vunpack.c.l.b16 %v72
  %v105 = vunpack.c.l.b16 %v73
  %v106 = vunpack.c.l.b16 %v74
  %v107 = vunpack.c.l.b16 %v75
  %v108 = vunpack.c.l.b16 %v76
  %v109 = vunpack.c.l.b16 %v77
  %v110 = vunpack.c.l.b16 %v78
  %v111 = vunpack.c.l.b16 %v79
  %v112 = vunpack.c.l.b16 %v80
  %v113 = vunpack.c.l.b16 %v81
  %v114 = vunpack.c.l.b16 %v82
  %v115 = vunpack.c.l.b16 %v83
  %v116 = vunpack.c.l.b16 %v84
  %v117 = vunpack.c.l.b16 %v85
  %v118 = vunpack.c.l.b16 %v86
  %v119 = vunpack.c.l.b16 %v87
  %v120 = vpack.c.b16 %v105, %v104
  %v121 = vpack.c.b16 %v107, %v106
  %v122 = vpack.c.b16 %v109, %v108
  %v123 = vpack.c.b16 %v111, %v110
  %v124 = vpack.c.b16 %v113, %v112
  %v125 = vpack.c.b16 %v115, %v114
  %v126 = vpack.c.b16 %v117, %v116
  %v127 = vpack.c.b16 %v119, %v118
  %v152 = vunpack.c.l.b16 %v40
  %v153 = vunpack.c.l.b16 %v41
  %v154 = vunpack.c.l.b16 %v42
  %v155 = vunpack.c.l.b16 %v43
  %v156 = vunpack.c.l.b16 %v44
  %v157 = vunpack.c.l.b16 %v45
  %v158 = vunpack.c.l.b16 %v46
  %v159 = vunpack.c.l.b16 %v47
  %v160 = vunpack.c.l.b16 %v48
  %v161 = vunpack.c.l.b16 %v49
  %v162 = vunpack.c.l.b16 %v50
  %v163 = vunpack.c.l.b16 %v51
  %v164 = vunpack.c.l.b16 %v52
  %v165 = vunpack.c.l.b16 %v53
  %v166 = vunpack.c.l.b16 %v54
  %v167 = vunpack.c.l.b16 %v55
  %v168 = vpack.c.b16 %v153, %v152
  %v169 = vpack.c.b16 %v155, %v154
  %v170 = vpack.c.b16 %v157, %v156
  %v171 = vpack.c.b16 %v159, %v158
  %v172 = vpack.c.b16 %v161, %v160
  %v173 = vpack.c.b16 %v163, %v162
  %v174 = vpack.c.b16 %v165, %v164
  %v175 = vpack.c.b16 %v167, %v166
  %184 = vmatprep.subr.bf16.mxu0 0
  %185 = vmatpush1.bf16.msra.mxu0 %v168
  %186 = vmatprep.subr.bf16.mxu0 0
  %187 = vmatpush1.bf16.msra.mxu0 %v169
  %188 = vmatprep.subr.bf16.mxu0 0
  %189 = vmatpush1.bf16.msra.mxu0 %v170
  %190 = vmatprep.subr.bf16.mxu0 0
  %191 = vmatpush1.bf16.msra.mxu0 %v171
  %192 = vmatprep.subr.bf16.mxu0 0
  %193 = vmatpush1.bf16.msra.mxu0 %v172
  %194 = vmatprep.subr.bf16.mxu0 0
  %195 = vmatpush1.bf16.msra.mxu0 %v173
  %196 = vmatprep.subr.bf16.mxu0 0
  %197 = vmatpush1.bf16.msra.mxu0 %v174
  %198 = vmatprep.subr.bf16.mxu0 0
  %199 = vmatpush1.bf16.msra.mxu0 %v175
  %200 = vmatprep.subr.bf16.mxu0 0
  %201 = vmatpush1.bf16.msra.mxu0 0
  %202 = vmatprep.subr.bf16.mxu0 0
  %203 = vmatpush1.bf16.msra.mxu0 0
  %204 = vmatprep.subr.bf16.mxu0 0
  %205 = vmatpush1.bf16.msra.mxu0 0
  %206 = vmatprep.subr.bf16.mxu0 0
  %207 = vmatpush1.bf16.msra.mxu0 0
  %208 = vmatprep.subr.bf16.mxu0 0
  %209 = vmatpush1.bf16.msra.mxu0 0
  %210 = vmatprep.subr.bf16.mxu0 0
  %211 = vmatpush1.bf16.msra.mxu0 0
  %212 = vmatprep.subr.bf16.mxu0 0
  %213 = vmatpush1.bf16.msra.mxu0 0
  %214 = vmatprep.subr.bf16.mxu0 0
  %215 = vmatpush1.bf16.msra.mxu0 0
  %216 = vmatprep.mubr.bf16.mxu0 0
  %217 = vmatmul.mubr.bf16.gmra.mrb[0].mxu0 %v120
  %v218 = vpop.f32.mrb[0].mxu0
  %v219 = vadd.f32 0.0, %v218
  %v220 = vpop.f32.mrb[0].mxu0
  %v221 = vpop.f32.mrb[0].mxu0
  %v222 = vadd.f32 0.0, %v221
  %v223 = vpop.f32.mrb[0].mxu0
  %224 = vmatprep.mubr.bf16.mxu0 0
  %225 = vmatmul.mubr.bf16.gmra.mrb[0].mxu0 %v121
  %v226 = vpop.f32.mrb[0].mxu0
  %v227 = vadd.f32 0.0, %v226
  %v228 = vpop.f32.mrb[0].mxu0
  %v229 = vpop.f32.mrb[0].mxu0
  %v230 = vadd.f32 0.0, %v229
  %v231 = vpop.f32.mrb[0].mxu0
  %232 = vmatprep.mubr.bf16.mxu0 0
  %233 = vmatmul.mubr.bf16.gmra.mrb[0].mxu0 %v122
  %v234 = vpop.f32.mrb[0].mxu0
  %v235 = vadd.f32 0.0, %v234
  %v236 = vpop.f32.mrb[0].mxu0
  %v237 = vpop.f32.mrb[0].mxu0
  %v238 = vadd.f32 0.0, %v237
  %v239 = vpop.f32.mrb[0].mxu0
  %240 = vmatprep.mubr.bf16.mxu0 0
  %241 = vmatmul.mubr.bf16.gmra.mrb[0].mxu0 %v123
  %v242 = vpop.f32.mrb[0].mxu0
  %v243 = vadd.f32 0.0, %v242
  %v244 = vpop.f32.mrb[0].mxu0
  %v245 = vpop.f32.mrb[0].mxu0
  %v246 = vadd.f32 0.0, %v245
  %v247 = vpop.f32.mrb[0].mxu0
  %248 = vmatprep.mubr.bf16.mxu0 0
  %249 = vmatmul.mubr.bf16.gmra.mrb[0].mxu0 %v124
  %v250 = vpop.f32.mrb[0].mxu0
  %v251 = vadd.f32 0.0, %v250
  %v252 = vpop.f32.mrb[0].mxu0
  %v253 = vpop.f32.mrb[0].mxu0
  %v254 = vadd.f32 0.0, %v253
  %v255 = vpop.f32.mrb[0].mxu0
  %256 = vmatprep.mubr.bf16.mxu0 0
  %257 = vmatmul.mubr.bf16.gmra.mrb[0].mxu0 %v125
  %v258 = vpop.f32.mrb[0].mxu0
  %v259 = vadd.f32 0.0, %v258
  %v260 = vpop.f32.mrb[0].mxu0
  %v261 = vpop.f32.mrb[0].mxu0
  %v262 = vadd.f32 0.0, %v261
  %v263 = vpop.f32.mrb[0].mxu0
  %264 = vmatprep.mubr.bf16.mxu0 0
  %265 = vmatmul.mubr.bf16.gmra.mrb[0].mxu0 %v126
  %v266 = vpop.f32.mrb[0].mxu0
  %v267 = vadd.f32 0.0, %v266
  %v268 = vpop.f32.mrb[0].mxu0
  %v269 = vpop.f32.mrb[0].mxu0
  %v270 = vadd.f32 0.0, %v269
  %v271 = vpop.f32.mrb[0].mxu0
  %272 = vmatprep.mubr.bf16.mxu0 0
  %273 = vmatmul.mubr.bf16.gmra.mrb[0].mxu0 %v127
  %v274 = vpop.f32.mrb[0].mxu0
  %v275 = vadd.f32 0.0, %v274
  %v276 = vpop.f32.mrb[0].mxu0
  %v277 = vpop.f32.mrb[0].mxu0
  %v278 = vadd.f32 0.0, %v277
  %v279 = vpop.f32.mrb[0].mxu0
  %280 = vdwg.mxu0
  %v281 = vadd.f32 %v56, %v219
  %v282 = vadd.f32 %v57, %v222
  %v283 = vadd.f32 %v58, %v227
  %v284 = vadd.f32 %v59, %v230
  %v285 = vadd.f32 %v60, %v235
  %v286 = vadd.f32 %v61, %v238
  %v287 = vadd.f32 %v62, %v243
  %v288 = vadd.f32 %v63, %v246
  %v289 = vadd.f32 %v64, %v251
  %v290 = vadd.f32 %v65, %v254
  %v291 = vadd.f32 %v66, %v259
  %v292 = vadd.f32 %v67, %v262
  %v293 = vadd.f32 %v68, %v267
  %v294 = vadd.f32 %v69, %v270
  %v295 = vadd.f32 %v70, %v275
  %v296 = vadd.f32 %v71, %v278
  %297 = vst [vmem:[#allocation2] sm:$0xff] %v281
  %298 = vst [vmem:[#allocation2 + $0x8] sm:$0xff] %v282
  %299 = vst [vmem:[#allocation2 + $0x10] sm:$0xff] %v283
  %300 = vst [vmem:[#allocation2 + $0x18] sm:$0xff] %v284
  %301 = vst [vmem:[#allocation2 + $0x20] sm:$0xff] %v285
  %302 = vst [vmem:[#allocation2 + $0x28] sm:$0xff] %v286
  %303 = vst [vmem:[#allocation2 + $0x30] sm:$0xff] %v287
  %304 = vst [vmem:[#allocation2 + $0x38] sm:$0xff] %v288
  %305 = vst [vmem:[#allocation2 + $0x40] sm:$0xff] %v289
  %306 = vst [vmem:[#allocation2 + $0x48] sm:$0xff] %v290
  %307 = vst [vmem:[#allocation2 + $0x50] sm:$0xff] %v291
  %308 = vst [vmem:[#allocation2 + $0x58] sm:$0xff] %v292
  %309 = vst [vmem:[#allocation2 + $0x60] sm:$0xff] %v293
  %310 = vst [vmem:[#allocation2 + $0x68] sm:$0xff] %v294
  %311 = vst [vmem:[#allocation2 + $0x70] sm:$0xff] %v295
  %312 = vst [vmem:[#allocation2 + $0x78] sm:$0xff] %v296
  // Predicated region
  $region18: #{dominant_forward.7} parent=0 // pred_check
    %p313 = pneg %p15
  $region19: #{dominant_forward.7} parent=0 // pred_check_branch
    %315 = sbr.rel (%p313) target = $region21
  $region20: #{dominant_forward.7} parent=0 // pred_region
    %v316 = vld [vmem:[#allocation2] sm:$0xff]
    %v317 = vld [vmem:[#allocation2 + $0x8] sm:$0xff]
    %v318 = vld [vmem:[#allocation2 + $0x10] sm:$0xff]
    %v319 = vld [vmem:[#allocation2 + $0x18] sm:$0xff]
    %v320 = vld [vmem:[#allocation2 + $0x20] sm:$0xff]
    %v321 = vld [vmem:[#allocation2 + $0x28] sm:$0xff]
    %v322 = vld [vmem:[#allocation2 + $0x30] sm:$0xff]
    %v323 = vld [vmem:[#allocation2 + $0x38] sm:$0xff]
    %v324 = vld [vmem:[#allocation2 + $0x40] sm:$0xff]
    %v325 = vld [vmem:[#allocation2 + $0x48] sm:$0xff]
    %v326 = vld [vmem:[#allocation2 + $0x50] sm:$0xff]
    %v327 = vld [vmem:[#allocation2 + $0x58] sm:$0xff]
    %v328 = vld [vmem:[#allocation2 + $0x60] sm:$0xff]
    %v329 = vld [vmem:[#allocation2 + $0x68] sm:$0xff]
    %v330 = vld [vmem:[#allocation2 + $0x70] sm:$0xff]
    %v331 = vld [vmem:[#allocation2 + $0x78] sm:$0xff]
    %v332 = vld [vmem:[%s2] sm:$0x1]
    %v334 = vlaneseq
    %v335 = vshrl.u32 %v334, 7
    %v336 = vsub.s32 0, %v335
    %v337 = vrot.slane %v332, %v336
    %v339 = vadd.f32 %v316, %v337
    %v340 = vadd.f32 %v317, %v337
    %v341 = vadd.f32 %v318, %v337
    %v342 = vadd.f32 %v319, %v337
    %v343 = vadd.f32 %v320, %v337
    %v344 = vadd.f32 %v321, %v337
    %v345 = vadd.f32 %v322, %v337
    %v346 = vadd.f32 %v323, %v337
    %v347 = vadd.f32 %v324, %v337
    %v348 = vadd.f32 %v325, %v337
    %v349 = vadd.f32 %v326, %v337
    %v350 = vadd.f32 %v327, %v337
    %v351 = vadd.f32 %v328, %v337
    %v352 = vadd.f32 %v329, %v337
    %v353 = vadd.f32 %v330, %v337
    %v354 = vadd.f32 %v331, %v337
    %v355 = vmax.f32 %v339, 0.0
    %v356 = vmax.f32 %v340, 0.0
    %v357 = vmax.f32 %v341, 0.0
    %v358 = vmax.f32 %v342, 0.0
    %v359 = vmax.f32 %v343, 0.0
    %v360 = vmax.f32 %v344, 0.0
    %v361 = vmax.f32 %v345, 0.0
    %v362 = vmax.f32 %v346, 0.0
    %v363 = vmax.f32 %v347, 0.0
    %v364 = vmax.f32 %v348, 0.0
    %v365 = vmax.f32 %v349, 0.0
    %v366 = vmax.f32 %v350, 0.0
    %v367 = vmax.f32 %v351, 0.0
    %v368 = vmax.f32 %v352, 0.0
    %v369 = vmax.f32 %v353, 0.0
    %v370 = vmax.f32 %v354, 0.0
    %v371 = vpack.c.bf16 %v356, %v355
    %v372 = vpack.c.bf16 %v358, %v357
    %v373 = vpack.c.bf16 %v360, %v359
    %v374 = vpack.c.bf16 %v362, %v361
    %v375 = vpack.c.bf16 %v364, %v363
    %v376 = vpack.c.bf16 %v366, %v365
    %v377 = vpack.c.bf16 %v368, %v367
    %v378 = vpack.c.bf16 %v370, %v369
    %v387 = vunpack.c.l.b16 %v371
    %v388 = vunpack.c.h.b16 %v371
    %v389 = vunpack.c.l.b16 %v372
    %v390 = vunpack.c.h.b16 %v372
    %v391 = vunpack.c.l.b16 %v373
    %v392 = vunpack.c.h.b16 %v373
    %v393 = vunpack.c.l.b16 %v374
    %v394 = vunpack.c.h.b16 %v374
    %v395 = vunpack.c.l.b16 %v375
    %v396 = vunpack.c.h.b16 %v375
    %v397 = vunpack.c.l.b16 %v376
    %v398 = vunpack.c.h.b16 %v376
    %v399 = vunpack.c.l.b16 %v377
    %v400 = vunpack.c.h.b16 %v377
    %v401 = vunpack.c.l.b16 %v378
    %v402 = vunpack.c.h.b16 %v378
    %v403 = vpack.c.b16 %v387, %v387
    %v404 = vpack.c.b16 %v388, %v388
    %v405 = vpack.c.b16 %v389, %v389
    %v406 = vpack.c.b16 %v390, %v390
    %v407 = vpack.c.b16 %v391, %v391
    %v408 = vpack.c.b16 %v392, %v392
    %v409 = vpack.c.b16 %v393, %v393
    %v410 = vpack.c.b16 %v394, %v394
    %v411 = vpack.c.b16 %v395, %v395
    %v412 = vpack.c.b16 %v396, %v396
    %v413 = vpack.c.b16 %v397, %v397
    %v414 = vpack.c.b16 %v398, %v398
    %v415 = vpack.c.b16 %v399, %v399
    %v416 = vpack.c.b16 %v400, %v400
    %v417 = vpack.c.b16 %v401, %v401
    %v418 = vpack.c.b16 %v402, %v402
    %435 = vst [vmem:[%s3] sm:$0xf] %v403
    %436 = vst [vmem:[%s3 + $0x4] sm:$0xf] %v404
    %437 = vst [vmem:[%s3 + $0x8] sm:$0xf] %v405
    %438 = vst [vmem:[%s3 + $0xc] sm:$0xf] %v406
    %439 = vst [vmem:[%s3 + $0x10] sm:$0xf] %v407
    %440 = vst [vmem:[%s3 + $0x14] sm:$0xf] %v408
    %441 = vst [vmem:[%s3 + $0x18] sm:$0xf] %v409
    %442 = vst [vmem:[%s3 + $0x1c] sm:$0xf] %v410
    %443 = vst [vmem:[%s3 + $0x20] sm:$0xf] %v411
    %444 = vst [vmem:[%s3 + $0x24] sm:$0xf] %v412
    %445 = vst [vmem:[%s3 + $0x28] sm:$0xf] %v413
    %446 = vst [vmem:[%s3 + $0x2c] sm:$0xf] %v414
    %447 = vst [vmem:[%s3 + $0x30] sm:$0xf] %v415
    %448 = vst [vmem:[%s3 + $0x34] sm:$0xf] %v416
    %449 = vst [vmem:[%s3 + $0x38] sm:$0xf] %v417
    %450 = vst [vmem:[%s3 + $0x3c] sm:$0xf] %v418
  $region21: #{dominant_forward.7} parent=0 // pred_fallthru
    _
  // Predicated region
  $region22: #{dominant_forward.7} parent=0 // pred_check
    _
  $region23: #{dominant_forward.7} parent=0 // pred_check_branch
    %452 = sbr.rel (0) target = $region25
  $region24: #{dominant_forward.7} parent=0 // pred_region
    _
  $region25: #{dominant_forward.7} parent=0 // pred_fallthru
    _
  // Predicated region
  $region26: #{dominant_forward.7} parent=0 // pred_check
    _
  $region27: #{dominant_forward.7} parent=0 // pred_check_branch
    %454 = sbr.rel (0) target = $region29
  $region28: #{dominant_forward.7} parent=0 // pred_region
    _
  $region29: #{dominant_forward.7} parent=0 // pred_fallthru
    _

// kernel: dominant_forward.6
$region0: #{dominant_forward.6}
  #allocation0 [shape = 'u32[]', space=smem, size = 0x4, offset = 0x4, fixed_abs, tag = 'smem constant byte address 0x4 - core index']
  #allocation1 [shape = 'u32[144,128]{1,0:T(1,128)}', space=vmem, size = 0x12000, scoped, tag = 'internal scratch']
  %s0 = inlined_call_operand.vmem [shape: bf16[128,128], index: 0, kind: input, shape index: {}]
  %s1 = inlined_call_operand.vmem [shape: bf16[128,128], index: 1, kind: input, shape index: {}]
  %s2 = inlined_call_operand.vmem [shape: bf16[128,128], index: 2, kind: output, shape index: {}]
  %s3 = sld [smem:[#allocation0]]
  $region18: #{dominant_forward.6} parent=0
    _
  %s5 = ssub.s32 1, %s3
  %s6 = scalar_select 0, %s5, %s3
  // Predicated region
  $region2: #{dominant_forward.6} parent=0 // pred_check
    _
  $region3: #{dominant_forward.6} parent=0 // pred_check_branch
    %8 = sbr.rel (0) target = $region5
  $region4: #{dominant_forward.6} parent=0 // pred_region
    _
  $region5: #{dominant_forward.6} parent=0 // pred_fallthru
    _
  // Predicated region
  $region6: #{dominant_forward.6} parent=0 // pred_check
    _
  $region7: #{dominant_forward.6} parent=0 // pred_check_branch
    %10 = sbr.rel (0) target = $region9
  $region8: #{dominant_forward.6} parent=0 // pred_region
    _
  $region9: #{dominant_forward.6} parent=0 // pred_fallthru
    _
  %v12 = vld [vmem:[%s0] sm:$0xf]
  %v13 = vld [vmem:[%s0 + $0x4] sm:$0xf]
  %v14 = vld [vmem:[%s0 + $0x8] sm:$0xf]
  %v15 = vld [vmem:[%s0 + $0xc] sm:$0xf]
  %v16 = vld [vmem:[%s0 + $0x10] sm:$0xf]
  %v17 = vld [vmem:[%s0 + $0x14] sm:$0xf]
  %v18 = vld [vmem:[%s0 + $0x18] sm:$0xf]
  %v19 = vld [vmem:[%s0 + $0x1c] sm:$0xf]
  %v20 = vld [vmem:[%s0 + $0x20] sm:$0xf]
  %v21 = vld [vmem:[%s0 + $0x24] sm:$0xf]
  %v22 = vld [vmem:[%s0 + $0x28] sm:$0xf]
  %v23 = vld [vmem:[%s0 + $0x2c] sm:$0xf]
  %v24 = vld [vmem:[%s0 + $0x30] sm:$0xf]
  %v25 = vld [vmem:[%s0 + $0x34] sm:$0xf]
  %v26 = vld [vmem:[%s0 + $0x38] sm:$0xf]
  %v27 = vld [vmem:[%s0 + $0x3c] sm:$0xf]
  %v28 = vld [vmem:[%s1] sm:$0xf]
  %v29 = vld [vmem:[%s1 + $0x4] sm:$0xf]
  %v30 = vld [vmem:[%s1 + $0x8] sm:$0xf]
  %v31 = vld [vmem:[%s1 + $0xc] sm:$0xf]
  %v32 = vld [vmem:[%s1 + $0x10] sm:$0xf]
  %v33 = vld [vmem:[%s1 + $0x14] sm:$0xf]
  %v34 = vld [vmem:[%s1 + $0x18] sm:$0xf]
  %v35 = vld [vmem:[%s1 + $0x1c] sm:$0xf]
  %v36 = vld [vmem:[%s1 + $0x20] sm:$0xf]
  %v37 = vld [vmem:[%s1 + $0x24] sm:$0xf]
  %v38 = vld [vmem:[%s1 + $0x28] sm:$0xf]
  %v39 = vld [vmem:[%s1 + $0x2c] sm:$0xf]
  %v40 = vld [vmem:[%s1 + $0x30] sm:$0xf]
  %v41 = vld [vmem:[%s1 + $0x34] sm:$0xf]
  %v42 = vld [vmem:[%s1 + $0x38] sm:$0xf]
  %v43 = vld [vmem:[%s1 + $0x3c] sm:$0xf]
  %v60 = vunpack.c.l.b16 %v12
  %v61 = vunpack.c.l.b16 %v13
  %v62 = vunpack.c.l.b16 %v14
  %v63 = vunpack.c.l.b16 %v15
  %v64 = vunpack.c.l.b16 %v16
  %v65 = vunpack.c.l.b16 %v17
  %v66 = vunpack.c.l.b16 %v18
  %v67 = vunpack.c.l.b16 %v19
  %v68 = vunpack.c.l.b16 %v20
  %v69 = vunpack.c.l.b16 %v21
  %v70 = vunpack.c.l.b16 %v22
  %v71 = vunpack.c.l.b16 %v23
  %v72 = vunpack.c.l.b16 %v24
  %v73 = vunpack.c.l.b16 %v25
  %v74 = vunpack.c.l.b16 %v26
  %v75 = vunpack.c.l.b16 %v27
  %v76 = vpack.c.b16 %v61, %v60
  %v77 = vpack.c.b16 %v63, %v62
  %v78 = vpack.c.b16 %v65, %v64
  %v79 = vpack.c.b16 %v67, %v66
  %v80 = vpack.c.b16 %v69, %v68
  %v81 = vpack.c.b16 %v71, %v70
  %v82 = vpack.c.b16 %v73, %v72
  %v83 = vpack.c.b16 %v75, %v74
  %v108 = vunpack.c.l.b16 %v28
  %v109 = vunpack.c.l.b16 %v29
  %v110 = vunpack.c.l.b16 %v30
  %v111 = vunpack.c.l.b16 %v31
  %v112 = vunpack.c.l.b16 %v32
  %v113 = vunpack.c.l.b16 %v33
  %v114 = vunpack.c.l.b16 %v34
  %v115 = vunpack.c.l.b16 %v35
  %v116 = vunpack.c.l.b16 %v36
  %v117 = vunpack.c.l.b16 %v37
  %v118 = vunpack.c.l.b16 %v38
  %v119 = vunpack.c.l.b16 %v39
  %v120 = vunpack.c.l.b16 %v40
  %v121 = vunpack.c.l.b16 %v41
  %v122 = vunpack.c.l.b16 %v42
  %v123 = vunpack.c.l.b16 %v43
  %v124 = vpack.c.b16 %v109, %v108
  %v125 = vpack.c.b16 %v111, %v110
  %v126 = vpack.c.b16 %v113, %v112
  %v127 = vpack.c.b16 %v115, %v114
  %v128 = vpack.c.b16 %v117, %v116
  %v129 = vpack.c.b16 %v119, %v118
  %v130 = vpack.c.b16 %v121, %v120
  %v131 = vpack.c.b16 %v123, %v122
  %140 = vmatprep.subr.bf16.mxu0 0
  %141 = vmatpush1.bf16.msra.mxu0 %v124
  %142 = vmatprep.subr.bf16.mxu0 0
  %143 = vmatpush1.bf16.msra.mxu0 %v125
  %144 = vmatprep.subr.bf16.mxu0 0
  %145 = vmatpush1.bf16.msra.mxu0 %v126
  %146 = vmatprep.subr.bf16.mxu0 0
  %147 = vmatpush1.bf16.msra.mxu0 %v127
  %148 = vmatprep.subr.bf16.mxu0 0
  %149 = vmatpush1.bf16.msra.mxu0 %v128
  %150 = vmatprep.subr.bf16.mxu0 0
  %151 = vmatpush1.bf16.msra.mxu0 %v129
  %152 = vmatprep.subr.bf16.mxu0 0
  %153 = vmatpush1.bf16.msra.mxu0 %v130
  %154 = vmatprep.subr.bf16.mxu0 0
  %155 = vmatpush1.bf16.msra.mxu0 %v131
  %156 = vmatprep.subr.bf16.mxu0 0
  %157 = vmatpush1.bf16.msra.mxu0 0
  %158 = vmatprep.subr.bf16.mxu0 0
  %159 = vmatpush1.bf16.msra.mxu0 0
  %160 = vmatprep.subr.bf16.mxu0 0
  %161 = vmatpush1.bf16.msra.mxu0 0
  %162 = vmatprep.subr.bf16.mxu0 0
  %163 = vmatpush1.bf16.msra.mxu0 0
  %164 = vmatprep.subr.bf16.mxu0 0
  %165 = vmatpush1.bf16.msra.mxu0 0
  %166 = vmatprep.subr.bf16.mxu0 0
  %167 = vmatpush1.bf16.msra.mxu0 0
  %168 = vmatprep.subr.bf16.mxu0 0
  %169 = vmatpush1.bf16.msra.mxu0 0
  %170 = vmatprep.subr.bf16.mxu0 0
  %171 = vmatpush1.bf16.msra.mxu0 0
  %172 = vmatprep.mubr.bf16.mxu0 0
  %173 = vmatmul.mubr.bf16.gmra.mrb[0].mxu0 %v76
  %v174 = vpop.f32.mrb[0].mxu0
  %v175 = vadd.f32 0.0, %v174
  %v176 = vpop.f32.mrb[0].mxu0
  %v177 = vpop.f32.mrb[0].mxu0
  %v178 = vadd.f32 0.0, %v177
  %v179 = vpop.f32.mrb[0].mxu0
  %180 = vmatprep.mubr.bf16.mxu0 0
  %181 = vmatmul.mubr.bf16.gmra.mrb[0].mxu0 %v77
  %v182 = vpop.f32.mrb[0].mxu0
  %v183 = vadd.f32 0.0, %v182
  %v184 = vpop.f32.mrb[0].mxu0
  %v185 = vpop.f32.mrb[0].mxu0
  %v186 = vadd.f32 0.0, %v185
  %v187 = vpop.f32.mrb[0].mxu0
  %188 = vmatprep.mubr.bf16.mxu0 0
  %189 = vmatmul.mubr.bf16.gmra.mrb[0].mxu0 %v78
  %v190 = vpop.f32.mrb[0].mxu0
  %v191 = vadd.f32 0.0, %v190
  %v192 = vpop.f32.mrb[0].mxu0
  %v193 = vpop.f32.mrb[0].mxu0
  %v194 = vadd.f32 0.0, %v193
  %v195 = vpop.f32.mrb[0].mxu0
  %196 = vmatprep.mubr.bf16.mxu0 0
  %197 = vmatmul.mubr.bf16.gmra.mrb[0].mxu0 %v79
  %v198 = vpop.f32.mrb[0].mxu0
  %v199 = vadd.f32 0.0, %v198
  %v200 = vpop.f32.mrb[0].mxu0
  %v201 = vpop.f32.mrb[0].mxu0
  %v202 = vadd.f32 0.0, %v201
  %v203 = vpop.f32.mrb[0].mxu0
  %204 = vmatprep.mubr.bf16.mxu0 0
  %205 = vmatmul.mubr.bf16.gmra.mrb[0].mxu0 %v80
  %v206 = vpop.f32.mrb[0].mxu0
  %v207 = vadd.f32 0.0, %v206
  %v208 = vpop.f32.mrb[0].mxu0
  %v209 = vpop.f32.mrb[0].mxu0
  %v210 = vadd.f32 0.0, %v209
  %v211 = vpop.f32.mrb[0].mxu0
  %212 = vmatprep.mubr.bf16.mxu0 0
  %213 = vmatmul.mubr.bf16.gmra.mrb[0].mxu0 %v81
  %v214 = vpop.f32.mrb[0].mxu0
  %v215 = vadd.f32 0.0, %v214
  %v216 = vpop.f32.mrb[0].mxu0
  %v217 = vpop.f32.mrb[0].mxu0
  %v218 = vadd.f32 0.0, %v217
  %v219 = vpop.f32.mrb[0].mxu0
  %220 = vmatprep.mubr.bf16.mxu0 0
  %221 = vmatmul.mubr.bf16.gmra.mrb[0].mxu0 %v82
  %v222 = vpop.f32.mrb[0].mxu0
  %v223 = vadd.f32 0.0, %v222
  %v224 = vpop.f32.mrb[0].mxu0
  %v225 = vpop.f32.mrb[0].mxu0
  %v226 = vadd.f32 0.0, %v225
  %v227 = vpop.f32.mrb[0].mxu0
  %228 = vmatprep.mubr.bf16.mxu0 0
  %229 = vmatmul.mubr.bf16.gmra.mrb[0].mxu0 %v83
  %v230 = vpop.f32.mrb[0].mxu0
  %v231 = vadd.f32 0.0, %v230
  %v232 = vpop.f32.mrb[0].mxu0
  %v233 = vpop.f32.mrb[0].mxu0
  %v234 = vadd.f32 0.0, %v233
  %v235 = vpop.f32.mrb[0].mxu0
  %236 = vdwg.mxu0
  %v237 = vpack.c.bf16 %v178, %v175
  %v238 = vpack.c.bf16 %v186, %v183
  %v239 = vpack.c.bf16 %v194, %v191
  %v240 = vpack.c.bf16 %v202, %v199
  %v241 = vpack.c.bf16 %v210, %v207
  %v242 = vpack.c.bf16 %v218, %v215
  %v243 = vpack.c.bf16 %v226, %v223
  %v244 = vpack.c.bf16 %v234, %v231
  %v253 = vunpack.c.l.b16 %v237
  %v254 = vunpack.c.h.b16 %v237
  %v255 = vunpack.c.l.b16 %v238
  %v256 = vunpack.c.h.b16 %v238
  %v257 = vunpack.c.l.b16 %v239
  %v258 = vunpack.c.h.b16 %v239
  %v259 = vunpack.c.l.b16 %v240
  %v260 = vunpack.c.h.b16 %v240
  %v261 = vunpack.c.l.b16 %v241
  %v262 = vunpack.c.h.b16 %v241
  %v263 = vunpack.c.l.b16 %v242
  %v264 = vunpack.c.h.b16 %v242
  %v265 = vunpack.c.l.b16 %v243
  %v266 = vunpack.c.h.b16 %v243
  %v267 = vunpack.c.l.b16 %v244
  %v268 = vunpack.c.h.b16 %v244
  %v269 = vpack.c.b16 %v253, %v253
  %v270 = vpack.c.b16 %v254, %v254
  %v271 = vpack.c.b16 %v255, %v255
  %v272 = vpack.c.b16 %v256, %v256
  %v273 = vpack.c.b16 %v257, %v257
  %v274 = vpack.c.b16 %v258, %v258
  %v275 = vpack.c.b16 %v259, %v259
  %v276 = vpack.c.b16 %v260, %v260
  %v277 = vpack.c.b16 %v261, %v261
  %v278 = vpack.c.b16 %v262, %v262
  %v279 = vpack.c.b16 %v263, %v263
  %v280 = vpack.c.b16 %v264, %v264
  %v281 = vpack.c.b16 %v265, %v265
  %v282 = vpack.c.b16 %v266, %v266
  %v283 = vpack.c.b16 %v267, %v267
  %v284 = vpack.c.b16 %v268, %v268
  %301 = vst [vmem:[%s2] sm:$0xf] %v269
  %302 = vst [vmem:[%s2 + $0x4] sm:$0xf] %v270
  %303 = vst [vmem:[%s2 + $0x8] sm:$0xf] %v271
  %304 = vst [vmem:[%s2 + $0xc] sm:$0xf] %v272
  %305 = vst [vmem:[%s2 + $0x10] sm:$0xf] %v273
  %306 = vst [vmem:[%s2 + $0x14] sm:$0xf] %v274
  %307 = vst [vmem:[%s2 + $0x18] sm:$0xf] %v275
  %308 = vst [vmem:[%s2 + $0x1c] sm:$0xf] %v276
  %309 = vst [vmem:[%s2 + $0x20] sm:$0xf] %v277
  %310 = vst [vmem:[%s2 + $0x24] sm:$0xf] %v278
  %311 = vst [vmem:[%s2 + $0x28] sm:$0xf] %v279
  %312 = vst [vmem:[%s2 + $0x2c] sm:$0xf] %v280
  %313 = vst [vmem:[%s2 + $0x30] sm:$0xf] %v281
  %314 = vst [vmem:[%s2 + $0x34] sm:$0xf] %v282
  %315 = vst [vmem:[%s2 + $0x38] sm:$0xf] %v283
  %316 = vst [vmem:[%s2 + $0x3c] sm:$0xf] %v284
  // Predicated region
  $region10: #{dominant_forward.6} parent=0 // pred_check
    _
  $region11: #{dominant_forward.6} parent=0 // pred_check_branch
    %318 = sbr.rel (0) target = $region13
  $region12: #{dominant_forward.6} parent=0 // pred_region
    _
  $region13: #{dominant_forward.6} parent=0 // pred_fallthru
    _
  // Predicated region
  $region14: #{dominant_forward.6} parent=0 // pred_check
    _
  $region15: #{dominant_forward.6} parent=0 // pred_check_branch
    %320 = sbr.rel (0) target = $region17
  $region16: #{dominant_forward.6} parent=0 // pred_region
    _
  $region17: #{dominant_forward.6} parent=0 // pred_fallthru
    _

// kernel: dominant_forward.8
$region0: #{dominant_forward.8}
  #allocation0 [shape = 'u32[]', space=smem, size = 0x4, offset = 0x4, fixed_abs, tag = 'smem constant byte address 0x4 - core index']
  #allocation1 [shape = 'u32[144,128]{1,0:T(1,128)}', space=vmem, size = 0x12000, scoped, tag = 'internal scratch']
  #allocation2 [shape = 'f32[128,128]{1,0:T(8,128)}', space=vmem, size = 0x10000, scoped, tag = 'scratch operand']
  %s0 = inlined_call_operand.vmem [shape: bf16[128,128], index: 0, kind: input, shape index: {}]
  %s1 = inlined_call_operand.vmem [shape: bf16[128,128], index: 1, kind: input, shape index: {}]
  %s2 = inlined_call_operand.vmem [shape: bf16[128,128], index: 2, kind: input, shape index: {}]
  %s3 = inlined_call_operand.vmem [shape: f32[1,128], index: 3, kind: input, shape index: {}]
  %s4 = inlined_call_operand.vmem [shape: bf16[128,128], index: 4, kind: output, shape index: {}]
  %s5 = sld [smem:[#allocation0]]
  $region34: #{dominant_forward.8} parent=0
    _
  %s7 = ssub.s32 1, %s5
  %s8 = scalar_select 0, %s7, %s5
  // Predicated region
  $region2: #{dominant_forward.8} parent=0 // pred_check
    _
  $region3: #{dominant_forward.8} parent=0 // pred_check_branch
    %10 = sbr.rel (0) target = $region5
  $region4: #{dominant_forward.8} parent=0 // pred_region
    _
  $region5: #{dominant_forward.8} parent=0 // pred_fallthru
    _
  // Predicated region
  $region6: #{dominant_forward.8} parent=0 // pred_check
    _
  $region7: #{dominant_forward.8} parent=0 // pred_check_branch
    %12 = sbr.rel (0) target = $region9
  $region8: #{dominant_forward.8} parent=0 // pred_region
    _
  $region9: #{dominant_forward.8} parent=0 // pred_fallthru
    _
  // Predicated region
  $region10: #{dominant_forward.8} parent=0 // pred_check
    _
  $region11: #{dominant_forward.8} parent=0 // pred_check_branch
    %14 = sbr.rel (0) target = $region13
  $region12: #{dominant_forward.8} parent=0 // pred_region
    _
  $region13: #{dominant_forward.8} parent=0 // pred_fallthru
    _
  // Predicated region
  $region14: #{dominant_forward.8} parent=0 // pred_check
    _
  $region15: #{dominant_forward.8} parent=0 // pred_check_branch
    %16 = sbr.rel (0) target = $region17
  $region16: #{dominant_forward.8} parent=0 // pred_region
    _
  $region17: #{dominant_forward.8} parent=0 // pred_fallthru
    _
  %p18 = scmp.eq.s32.totalorder 0, 0
  // Predicated region
  $region18: #{dominant_forward.8} parent=0 // pred_check
    %p19 = pneg %p18
  $region19: #{dominant_forward.8} parent=0 // pred_check_branch
    %21 = sbr.rel (%p19) target = $region21
  $region20: #{dominant_forward.8} parent=0 // pred_region
    %22 = vst [vmem:[#allocation2] sm:$0xff] 0.0
    %23 = vst [vmem:[#allocation2 + $0x8] sm:$0xff] 0.0
    %24 = vst [vmem:[#allocation2 + $0x10] sm:$0xff] 0.0
    %25 = vst [vmem:[#allocation2 + $0x18] sm:$0xff] 0.0
    %26 = vst [vmem:[#allocation2 + $0x20] sm:$0xff] 0.0
    %27 = vst [vmem:[#allocation2 + $0x28] sm:$0xff] 0.0
    %28 = vst [vmem:[#allocation2 + $0x30] sm:$0xff] 0.0
    %29 = vst [vmem:[#allocation2 + $0x38] sm:$0xff] 0.0
    %30 = vst [vmem:[#allocation2 + $0x40] sm:$0xff] 0.0
    %31 = vst [vmem:[#allocation2 + $0x48] sm:$0xff] 0.0
    %32 = vst [vmem:[#allocation2 + $0x50] sm:$0xff] 0.0
    %33 = vst [vmem:[#allocation2 + $0x58] sm:$0xff] 0.0
    %34 = vst [vmem:[#allocation2 + $0x60] sm:$0xff] 0.0
    %35 = vst [vmem:[#allocation2 + $0x68] sm:$0xff] 0.0
    %36 = vst [vmem:[#allocation2 + $0x70] sm:$0xff] 0.0
    %37 = vst [vmem:[#allocation2 + $0x78] sm:$0xff] 0.0
  $region21: #{dominant_forward.8} parent=0 // pred_fallthru
    _
  %v38 = vld [vmem:[%s1] sm:$0xf]
  %v39 = vld [vmem:[%s1 + $0x4] sm:$0xf]
  %v40 = vld [vmem:[%s1 + $0x8] sm:$0xf]
  %v41 = vld [vmem:[%s1 + $0xc] sm:$0xf]
  %v42 = vld [vmem:[%s1 + $0x10] sm:$0xf]
  %v43 = vld [vmem:[%s1 + $0x14] sm:$0xf]
  %v44 = vld [vmem:[%s1 + $0x18] sm:$0xf]
  %v45 = vld [vmem:[%s1 + $0x1c] sm:$0xf]
  %v46 = vld [vmem:[%s1 + $0x20] sm:$0xf]
  %v47 = vld [vmem:[%s1 + $0x24] sm:$0xf]
  %v48 = vld [vmem:[%s1 + $0x28] sm:$0xf]
  %v49 = vld [vmem:[%s1 + $0x2c] sm:$0xf]
  %v50 = vld [vmem:[%s1 + $0x30] sm:$0xf]
  %v51 = vld [vmem:[%s1 + $0x34] sm:$0xf]
  %v52 = vld [vmem:[%s1 + $0x38] sm:$0xf]
  %v53 = vld [vmem:[%s1 + $0x3c] sm:$0xf]
  %v54 = vld [vmem:[%s2] sm:$0xf]
  %v55 = vld [vmem:[%s2 + $0x4] sm:$0xf]
  %v56 = vld [vmem:[%s2 + $0x8] sm:$0xf]
  %v57 = vld [vmem:[%s2 + $0xc] sm:$0xf]
  %v58 = vld [vmem:[%s2 + $0x10] sm:$0xf]
  %v59 = vld [vmem:[%s2 + $0x14] sm:$0xf]
  %v60 = vld [vmem:[%s2 + $0x18] sm:$0xf]
  %v61 = vld [vmem:[%s2 + $0x1c] sm:$0xf]
  %v62 = vld [vmem:[%s2 + $0x20] sm:$0xf]
  %v63 = vld [vmem:[%s2 + $0x24] sm:$0xf]
  %v64 = vld [vmem:[%s2 + $0x28] sm:$0xf]
  %v65 = vld [vmem:[%s2 + $0x2c] sm:$0xf]
  %v66 = vld [vmem:[%s2 + $0x30] sm:$0xf]
  %v67 = vld [vmem:[%s2 + $0x34] sm:$0xf]
  %v68 = vld [vmem:[%s2 + $0x38] sm:$0xf]
  %v69 = vld [vmem:[%s2 + $0x3c] sm:$0xf]
  %v86 = vunpack.c.l.b16 %v38
  %v87 = vunpack.c.l.b16 %v39
  %v88 = vunpack.c.l.b16 %v40
  %v89 = vunpack.c.l.b16 %v41
  %v90 = vunpack.c.l.b16 %v42
  %v91 = vunpack.c.l.b16 %v43
  %v92 = vunpack.c.l.b16 %v44
  %v93 = vunpack.c.l.b16 %v45
  %v94 = vunpack.c.l.b16 %v46
  %v95 = vunpack.c.l.b16 %v47
  %v96 = vunpack.c.l.b16 %v48
  %v97 = vunpack.c.l.b16 %v49
  %v98 = vunpack.c.l.b16 %v50
  %v99 = vunpack.c.l.b16 %v51
  %v100 = vunpack.c.l.b16 %v52
  %v101 = vunpack.c.l.b16 %v53
  %v102 = vpack.c.b16 %v87, %v86
  %v103 = vpack.c.b16 %v89, %v88
  %v104 = vpack.c.b16 %v91, %v90
  %v105 = vpack.c.b16 %v93, %v92
  %v106 = vpack.c.b16 %v95, %v94
  %v107 = vpack.c.b16 %v97, %v96
  %v108 = vpack.c.b16 %v99, %v98
  %v109 = vpack.c.b16 %v101, %v100
  %v134 = vunpack.c.l.b16 %v54
  %v135 = vunpack.c.l.b16 %v55
  %v136 = vunpack.c.l.b16 %v56
  %v137 = vunpack.c.l.b16 %v57
  %v138 = vunpack.c.l.b16 %v58
  %v139 = vunpack.c.l.b16 %v59
  %v140 = vunpack.c.l.b16 %v60
  %v141 = vunpack.c.l.b16 %v61
  %v142 = vunpack.c.l.b16 %v62
  %v143 = vunpack.c.l.b16 %v63
  %v144 = vunpack.c.l.b16 %v64
  %v145 = vunpack.c.l.b16 %v65
  %v146 = vunpack.c.l.b16 %v66
  %v147 = vunpack.c.l.b16 %v67
  %v148 = vunpack.c.l.b16 %v68
  %v149 = vunpack.c.l.b16 %v69
  %v150 = vpack.c.b16 %v135, %v134
  %v151 = vpack.c.b16 %v137, %v136
  %v152 = vpack.c.b16 %v139, %v138
  %v153 = vpack.c.b16 %v141, %v140
  %v154 = vpack.c.b16 %v143, %v142
  %v155 = vpack.c.b16 %v145, %v144
  %v156 = vpack.c.b16 %v147, %v146
  %v157 = vpack.c.b16 %v149, %v148
  %166 = vmatprep.subr.bf16.mxu0 0
  %167 = vmatpush1.bf16.msra.mxu0 %v150
  %168 = vmatprep.subr.bf16.mxu0 0
  %169 = vmatpush1.bf16.msra.mxu0 %v151
  %170 = vmatprep.subr.bf16.mxu0 0
  %171 = vmatpush1.bf16.msra.mxu0 %v152
  %172 = vmatprep.subr.bf16.mxu0 0
  %173 = vmatpush1.bf16.msra.mxu0 %v153
  %174 = vmatprep.subr.bf16.mxu0 0
  %175 = vmatpush1.bf16.msra.mxu0 %v154
  %176 = vmatprep.subr.bf16.mxu0 0
  %177 = vmatpush1.bf16.msra.mxu0 %v155
  %178 = vmatprep.subr.bf16.mxu0 0
  %179 = vmatpush1.bf16.msra.mxu0 %v156
  %180 = vmatprep.subr.bf16.mxu0 0
  %181 = vmatpush1.bf16.msra.mxu0 %v157
  %182 = vmatprep.subr.bf16.mxu0 0
  %183 = vmatpush1.bf16.msra.mxu0 0
  %184 = vmatprep.subr.bf16.mxu0 0
  %185 = vmatpush1.bf16.msra.mxu0 0
  %186 = vmatprep.subr.bf16.mxu0 0
  %187 = vmatpush1.bf16.msra.mxu0 0
  %188 = vmatprep.subr.bf16.mxu0 0
  %189 = vmatpush1.bf16.msra.mxu0 0
  %190 = vmatprep.subr.bf16.mxu0 0
  %191 = vmatpush1.bf16.msra.mxu0 0
  %192 = vmatprep.subr.bf16.mxu0 0
  %193 = vmatpush1.bf16.msra.mxu0 0
  %194 = vmatprep.subr.bf16.mxu0 0
  %195 = vmatpush1.bf16.msra.mxu0 0
  %196 = vmatprep.subr.bf16.mxu0 0
  %197 = vmatpush1.bf16.msra.mxu0 0
  %198 = vmatprep.mubr.bf16.mxu0 0
  %199 = vmatmul.mubr.bf16.gmra.mrb[0].mxu0 %v102
  %v200 = vpop.f32.mrb[0].mxu0
  %v201 = vadd.f32 0.0, %v200
  %v202 = vpop.f32.mrb[0].mxu0
  %v203 = vpop.f32.mrb[0].mxu0
  %v204 = vadd.f32 0.0, %v203
  %v205 = vpop.f32.mrb[0].mxu0
  %206 = vmatprep.mubr.bf16.mxu0 0
  %207 = vmatmul.mubr.bf16.gmra.mrb[0].mxu0 %v103
  %v208 = vpop.f32.mrb[0].mxu0
  %v209 = vadd.f32 0.0, %v208
  %v210 = vpop.f32.mrb[0].mxu0
  %v211 = vpop.f32.mrb[0].mxu0
  %v212 = vadd.f32 0.0, %v211
  %v213 = vpop.f32.mrb[0].mxu0
  %214 = vmatprep.mubr.bf16.mxu0 0
  %215 = vmatmul.mubr.bf16.gmra.mrb[0].mxu0 %v104
  %v216 = vpop.f32.mrb[0].mxu0
  %v217 = vadd.f32 0.0, %v216
  %v218 = vpop.f32.mrb[0].mxu0
  %v219 = vpop.f32.mrb[0].mxu0
  %v220 = vadd.f32 0.0, %v219
  %v221 = vpop.f32.mrb[0].mxu0
  %222 = vmatprep.mubr.bf16.mxu0 0
  %223 = vmatmul.mubr.bf16.gmra.mrb[0].mxu0 %v105
  %v224 = vpop.f32.mrb[0].mxu0
  %v225 = vadd.f32 0.0, %v224
  %v226 = vpop.f32.mrb[0].mxu0
  %v227 = vpop.f32.mrb[0].mxu0
  %v228 = vadd.f32 0.0, %v227
  %v229 = vpop.f32.mrb[0].mxu0
  %230 = vmatprep.mubr.bf16.mxu0 0
  %231 = vmatmul.mubr.bf16.gmra.mrb[0].mxu0 %v106
  %v232 = vpop.f32.mrb[0].mxu0
  %v233 = vadd.f32 0.0, %v232
  %v234 = vpop.f32.mrb[0].mxu0
  %v235 = vpop.f32.mrb[0].mxu0
  %v236 = vadd.f32 0.0, %v235
  %v237 = vpop.f32.mrb[0].mxu0
  %238 = vmatprep.mubr.bf16.mxu0 0
  %239 = vmatmul.mubr.bf16.gmra.mrb[0].mxu0 %v107
  %v240 = vpop.f32.mrb[0].mxu0
  %v241 = vadd.f32 0.0, %v240
  %v242 = vpop.f32.mrb[0].mxu0
  %v243 = vpop.f32.mrb[0].mxu0
  %v244 = vadd.f32 0.0, %v243
  %v245 = vpop.f32.mrb[0].mxu0
  %246 = vmatprep.mubr.bf16.mxu0 0
  %247 = vmatmul.mubr.bf16.gmra.mrb[0].mxu0 %v108
  %v248 = vpop.f32.mrb[0].mxu0
  %v249 = vadd.f32 0.0, %v248
  %v250 = vpop.f32.mrb[0].mxu0
  %v251 = vpop.f32.mrb[0].mxu0
  %v252 = vadd.f32 0.0, %v251
  %v253 = vpop.f32.mrb[0].mxu0
  %254 = vmatprep.mubr.bf16.mxu0 0
  %255 = vmatmul.mubr.bf16.gmra.mrb[0].mxu0 %v109
  %v256 = vpop.f32.mrb[0].mxu0
  %v257 = vadd.f32 0.0, %v256
  %v258 = vpop.f32.mrb[0].mxu0
  %v259 = vpop.f32.mrb[0].mxu0
  %v260 = vadd.f32 0.0, %v259
  %v261 = vpop.f32.mrb[0].mxu0
  %262 = vdwg.mxu0
  %v263 = vpack.c.bf16 %v204, %v201
  %v264 = vpack.c.bf16 %v212, %v209
  %v265 = vpack.c.bf16 %v220, %v217
  %v266 = vpack.c.bf16 %v228, %v225
  %v267 = vpack.c.bf16 %v236, %v233
  %v268 = vpack.c.bf16 %v244, %v241
  %v269 = vpack.c.bf16 %v252, %v249
  %v270 = vpack.c.bf16 %v260, %v257
  %v271 = vld [vmem:[#allocation2] sm:$0xff]
  %v272 = vld [vmem:[#allocation2 + $0x8] sm:$0xff]
  %v273 = vld [vmem:[#allocation2 + $0x10] sm:$0xff]
  %v274 = vld [vmem:[#allocation2 + $0x18] sm:$0xff]
  %v275 = vld [vmem:[#allocation2 + $0x20] sm:$0xff]
  %v276 = vld [vmem:[#allocation2 + $0x28] sm:$0xff]
  %v277 = vld [vmem:[#allocation2 + $0x30] sm:$0xff]
  %v278 = vld [vmem:[#allocation2 + $0x38] sm:$0xff]
  %v279 = vld [vmem:[#allocation2 + $0x40] sm:$0xff]
  %v280 = vld [vmem:[#allocation2 + $0x48] sm:$0xff]
  %v281 = vld [vmem:[#allocation2 + $0x50] sm:$0xff]
  %v282 = vld [vmem:[#allocation2 + $0x58] sm:$0xff]
  %v283 = vld [vmem:[#allocation2 + $0x60] sm:$0xff]
  %v284 = vld [vmem:[#allocation2 + $0x68] sm:$0xff]
  %v285 = vld [vmem:[#allocation2 + $0x70] sm:$0xff]
  %v286 = vld [vmem:[#allocation2 + $0x78] sm:$0xff]
  %v287 = vld [vmem:[%s0] sm:$0xf]
  %v288 = vld [vmem:[%s0 + $0x4] sm:$0xf]
  %v289 = vld [vmem:[%s0 + $0x8] sm:$0xf]
  %v290 = vld [vmem:[%s0 + $0xc] sm:$0xf]
  %v291 = vld [vmem:[%s0 + $0x10] sm:$0xf]
  %v292 = vld [vmem:[%s0 + $0x14] sm:$0xf]
  %v293 = vld [vmem:[%s0 + $0x18] sm:$0xf]
  %v294 = vld [vmem:[%s0 + $0x1c] sm:$0xf]
  %v295 = vld [vmem:[%s0 + $0x20] sm:$0xf]
  %v296 = vld [vmem:[%s0 + $0x24] sm:$0xf]
  %v297 = vld [vmem:[%s0 + $0x28] sm:$0xf]
  %v298 = vld [vmem:[%s0 + $0x2c] sm:$0xf]
  %v299 = vld [vmem:[%s0 + $0x30] sm:$0xf]
  %v300 = vld [vmem:[%s0 + $0x34] sm:$0xf]
  %v301 = vld [vmem:[%s0 + $0x38] sm:$0xf]
  %v302 = vld [vmem:[%s0 + $0x3c] sm:$0xf]
  %v319 = vunpack.c.l.b16 %v287
  %v320 = vunpack.c.l.b16 %v288
  %v321 = vunpack.c.l.b16 %v289
  %v322 = vunpack.c.l.b16 %v290
  %v323 = vunpack.c.l.b16 %v291
  %v324 = vunpack.c.l.b16 %v292
  %v325 = vunpack.c.l.b16 %v293
  %v326 = vunpack.c.l.b16 %v294
  %v327 = vunpack.c.l.b16 %v295
  %v328 = vunpack.c.l.b16 %v296
  %v329 = vunpack.c.l.b16 %v297
  %v330 = vunpack.c.l.b16 %v298
  %v331 = vunpack.c.l.b16 %v299
  %v332 = vunpack.c.l.b16 %v300
  %v333 = vunpack.c.l.b16 %v301
  %v334 = vunpack.c.l.b16 %v302
  %v335 = vpack.c.b16 %v320, %v319
  %v336 = vpack.c.b16 %v322, %v321
  %v337 = vpack.c.b16 %v324, %v323
  %v338 = vpack.c.b16 %v326, %v325
  %v339 = vpack.c.b16 %v328, %v327
  %v340 = vpack.c.b16 %v330, %v329
  %v341 = vpack.c.b16 %v332, %v331
  %v342 = vpack.c.b16 %v334, %v333
  %351 = vmatprep.subr.bf16.mxu0 0
  %352 = vmatpush1.bf16.msra.mxu0 %v263
  %353 = vmatprep.subr.bf16.mxu0 0
  %354 = vmatpush1.bf16.msra.mxu0 %v264
  %355 = vmatprep.subr.bf16.mxu0 0
  %356 = vmatpush1.bf16.msra.mxu0 %v265
  %357 = vmatprep.subr.bf16.mxu0 0
  %358 = vmatpush1.bf16.msra.mxu0 %v266
  %359 = vmatprep.subr.bf16.mxu0 0
  %360 = vmatpush1.bf16.msra.mxu0 %v267
  %361 = vmatprep.subr.bf16.mxu0 0
  %362 = vmatpush1.bf16.msra.mxu0 %v268
  %363 = vmatprep.subr.bf16.mxu0 0
  %364 = vmatpush1.bf16.msra.mxu0 %v269
  %365 = vmatprep.subr.bf16.mxu0 0
  %366 = vmatpush1.bf16.msra.mxu0 %v270
  %367 = vmatprep.subr.bf16.mxu0 0
  %368 = vmatpush1.bf16.msra.mxu0 0
  %369 = vmatprep.subr.bf16.mxu0 0
  %370 = vmatpush1.bf16.msra.mxu0 0
  %371 = vmatprep.subr.bf16.mxu0 0
  %372 = vmatpush1.bf16.msra.mxu0 0
  %373 = vmatprep.subr.bf16.mxu0 0
  %374 = vmatpush1.bf16.msra.mxu0 0
  %375 = vmatprep.subr.bf16.mxu0 0
  %376 = vmatpush1.bf16.msra.mxu0 0
  %377 = vmatprep.subr.bf16.mxu0 0
  %378 = vmatpush1.bf16.msra.mxu0 0
  %379 = vmatprep.subr.bf16.mxu0 0
  %380 = vmatpush1.bf16.msra.mxu0 0
  %381 = vmatprep.subr.bf16.mxu0 0
  %382 = vmatpush1.bf16.msra.mxu0 0
  %383 = vmatprep.mubr.bf16.mxu0 0
  %384 = vmatmul.mubr.bf16.gmra.mrb[0].mxu0 %v335
  %v385 = vpop.f32.mrb[0].mxu0
  %v386 = vadd.f32 0.0, %v385
  %v387 = vpop.f32.mrb[0].mxu0
  %v388 = vpop.f32.mrb[0].mxu0
  %v389 = vadd.f32 0.0, %v388
  %v390 = vpop.f32.mrb[0].mxu0
  %391 = vmatprep.mubr.bf16.mxu0 0
  %392 = vmatmul.mubr.bf16.gmra.mrb[0].mxu0 %v336
  %v393 = vpop.f32.mrb[0].mxu0
  %v394 = vadd.f32 0.0, %v393
  %v395 = vpop.f32.mrb[0].mxu0
  %v396 = vpop.f32.mrb[0].mxu0
  %v397 = vadd.f32 0.0, %v396
  %v398 = vpop.f32.mrb[0].mxu0
  %399 = vmatprep.mubr.bf16.mxu0 0
  %400 = vmatmul.mubr.bf16.gmra.mrb[0].mxu0 %v337
  %v401 = vpop.f32.mrb[0].mxu0
  %v402 = vadd.f32 0.0, %v401
  %v403 = vpop.f32.mrb[0].mxu0
  %v404 = vpop.f32.mrb[0].mxu0
  %v405 = vadd.f32 0.0, %v404
  %v406 = vpop.f32.mrb[0].mxu0
  %407 = vmatprep.mubr.bf16.mxu0 0
  %408 = vmatmul.mubr.bf16.gmra.mrb[0].mxu0 %v338
  %v409 = vpop.f32.mrb[0].mxu0
  %v410 = vadd.f32 0.0, %v409
  %v411 = vpop.f32.mrb[0].mxu0
  %v412 = vpop.f32.mrb[0].mxu0
  %v413 = vadd.f32 0.0, %v412
  %v414 = vpop.f32.mrb[0].mxu0
  %415 = vmatprep.mubr.bf16.mxu0 0
  %416 = vmatmul.mubr.bf16.gmra.mrb[0].mxu0 %v339
  %v417 = vpop.f32.mrb[0].mxu0
  %v418 = vadd.f32 0.0, %v417
  %v419 = vpop.f32.mrb[0].mxu0
  %v420 = vpop.f32.mrb[0].mxu0
  %v421 = vadd.f32 0.0, %v420
  %v422 = vpop.f32.mrb[0].mxu0
  %423 = vmatprep.mubr.bf16.mxu0 0
  %424 = vmatmul.mubr.bf16.gmra.mrb[0].mxu0 %v340
  %v425 = vpop.f32.mrb[0].mxu0
  %v426 = vadd.f32 0.0, %v425
  %v427 = vpop.f32.mrb[0].mxu0
  %v428 = vpop.f32.mrb[0].mxu0
  %v429 = vadd.f32 0.0, %v428
  %v430 = vpop.f32.mrb[0].mxu0
  %431 = vmatprep.mubr.bf16.mxu0 0
  %432 = vmatmul.mubr.bf16.gmra.mrb[0].mxu0 %v341
  %v433 = vpop.f32.mrb[0].mxu0
  %v434 = vadd.f32 0.0, %v433
  %v435 = vpop.f32.mrb[0].mxu0
  %v436 = vpop.f32.mrb[0].mxu0
  %v437 = vadd.f32 0.0, %v436
  %v438 = vpop.f32.mrb[0].mxu0
  %439 = vmatprep.mubr.bf16.mxu0 0
  %440 = vmatmul.mubr.bf16.gmra.mrb[0].mxu0 %v342
  %v441 = vpop.f32.mrb[0].mxu0
  %v442 = vadd.f32 0.0, %v441
  %v443 = vpop.f32.mrb[0].mxu0
  %v444 = vpop.f32.mrb[0].mxu0
  %v445 = vadd.f32 0.0, %v444
  %v446 = vpop.f32.mrb[0].mxu0
  %447 = vdwg.mxu0
  %v448 = vadd.f32 %v271, %v386
  %v449 = vadd.f32 %v272, %v389
  %v450 = vadd.f32 %v273, %v394
  %v451 = vadd.f32 %v274, %v397
  %v452 = vadd.f32 %v275, %v402
  %v453 = vadd.f32 %v276, %v405
  %v454 = vadd.f32 %v277, %v410
  %v455 = vadd.f32 %v278, %v413
  %v456 = vadd.f32 %v279, %v418
  %v457 = vadd.f32 %v280, %v421
  %v458 = vadd.f32 %v281, %v426
  %v459 = vadd.f32 %v282, %v429
  %v460 = vadd.f32 %v283, %v434
  %v461 = vadd.f32 %v284, %v437
  %v462 = vadd.f32 %v285, %v442
  %v463 = vadd.f32 %v286, %v445
  %464 = vst [vmem:[#allocation2] sm:$0xff] %v448
  %465 = vst [vmem:[#allocation2 + $0x8] sm:$0xff] %v449
  %466 = vst [vmem:[#allocation2 + $0x10] sm:$0xff] %v450
  %467 = vst [vmem:[#allocation2 + $0x18] sm:$0xff] %v451
  %468 = vst [vmem:[#allocation2 + $0x20] sm:$0xff] %v452
  %469 = vst [vmem:[#allocation2 + $0x28] sm:$0xff] %v453
  %470 = vst [vmem:[#allocation2 + $0x30] sm:$0xff] %v454
  %471 = vst [vmem:[#allocation2 + $0x38] sm:$0xff] %v455
  %472 = vst [vmem:[#allocation2 + $0x40] sm:$0xff] %v456
  %473 = vst [vmem:[#allocation2 + $0x48] sm:$0xff] %v457
  %474 = vst [vmem:[#allocation2 + $0x50] sm:$0xff] %v458
  %475 = vst [vmem:[#allocation2 + $0x58] sm:$0xff] %v459
  %476 = vst [vmem:[#allocation2 + $0x60] sm:$0xff] %v460
  %477 = vst [vmem:[#allocation2 + $0x68] sm:$0xff] %v461
  %478 = vst [vmem:[#allocation2 + $0x70] sm:$0xff] %v462
  %479 = vst [vmem:[#allocation2 + $0x78] sm:$0xff] %v463
  // Predicated region
  $region22: #{dominant_forward.8} parent=0 // pred_check
    %p480 = pneg %p18
  $region23: #{dominant_forward.8} parent=0 // pred_check_branch
    %482 = sbr.rel (%p480) target = $region25
  $region24: #{dominant_forward.8} parent=0 // pred_region
    %v483 = vld [vmem:[#allocation2] sm:$0xff]
    %v484 = vld [vmem:[#allocation2 + $0x8] sm:$0xff]
    %v485 = vld [vmem:[#allocation2 + $0x10] sm:$0xff]
    %v486 = vld [vmem:[#allocation2 + $0x18] sm:$0xff]
    %v487 = vld [vmem:[#allocation2 + $0x20] sm:$0xff]
    %v488 = vld [vmem:[#allocation2 + $0x28] sm:$0xff]
    %v489 = vld [vmem:[#allocation2 + $0x30] sm:$0xff]
    %v490 = vld [vmem:[#allocation2 + $0x38] sm:$0xff]
    %v491 = vld [vmem:[#allocation2 + $0x40] sm:$0xff]
    %v492 = vld [vmem:[#allocation2 + $0x48] sm:$0xff]
    %v493 = vld [vmem:[#allocation2 + $0x50] sm:$0xff]
    %v494 = vld [vmem:[#allocation2 + $0x58] sm:$0xff]
    %v495 = vld [vmem:[#allocation2 + $0x60] sm:$0xff]
    %v496 = vld [vmem:[#allocation2 + $0x68] sm:$0xff]
    %v497 = vld [vmem:[#allocation2 + $0x70] sm:$0xff]
    %v498 = vld [vmem:[#allocation2 + $0x78] sm:$0xff]
    %v499 = vld [vmem:[%s3] sm:$0x1]
    %v501 = vlaneseq
    %v502 = vshrl.u32 %v501, 7
    %v503 = vsub.s32 0, %v502
    %v504 = vrot.slane %v499, %v503
    %v506 = vadd.f32 %v483, %v504
    %v507 = vadd.f32 %v484, %v504
    %v508 = vadd.f32 %v485, %v504
    %v509 = vadd.f32 %v486, %v504
    %v510 = vadd.f32 %v487, %v504
    %v511 = vadd.f32 %v488, %v504
    %v512 = vadd.f32 %v489, %v504
    %v513 = vadd.f32 %v490, %v504
    %v514 = vadd.f32 %v491, %v504
    %v515 = vadd.f32 %v492, %v504
    %v516 = vadd.f32 %v493, %v504
    %v517 = vadd.f32 %v494, %v504
    %v518 = vadd.f32 %v495, %v504
    %v519 = vadd.f32 %v496, %v504
    %v520 = vadd.f32 %v497, %v504
    %v521 = vadd.f32 %v498, %v504
    %v522 = vpack.c.bf16 %v507, %v506
    %v523 = vpack.c.bf16 %v509, %v508
    %v524 = vpack.c.bf16 %v511, %v510
    %v525 = vpack.c.bf16 %v513, %v512
    %v526 = vpack.c.bf16 %v515, %v514
    %v527 = vpack.c.bf16 %v517, %v516
    %v528 = vpack.c.bf16 %v519, %v518
    %v529 = vpack.c.bf16 %v521, %v520
    %v538 = vunpack.c.l.b16 %v522
    %v539 = vunpack.c.h.b16 %v522
    %v540 = vunpack.c.l.b16 %v523
    %v541 = vunpack.c.h.b16 %v523
    %v542 = vunpack.c.l.b16 %v524
    %v543 = vunpack.c.h.b16 %v524
    %v544 = vunpack.c.l.b16 %v525
    %v545 = vunpack.c.h.b16 %v525
    %v546 = vunpack.c.l.b16 %v526
    %v547 = vunpack.c.h.b16 %v526
    %v548 = vunpack.c.l.b16 %v527
    %v549 = vunpack.c.h.b16 %v527
    %v550 = vunpack.c.l.b16 %v528
    %v551 = vunpack.c.h.b16 %v528
    %v552 = vunpack.c.l.b16 %v529
    %v553 = vunpack.c.h.b16 %v529
    %v554 = vpack.c.b16 %v538, %v538
    %v555 = vpack.c.b16 %v539, %v539
    %v556 = vpack.c.b16 %v540, %v540
    %v557 = vpack.c.b16 %v541, %v541
    %v558 = vpack.c.b16 %v542, %v542
    %v559 = vpack.c.b16 %v543, %v543
    %v560 = vpack.c.b16 %v544, %v544
    %v561 = vpack.c.b16 %v545, %v545
    %v562 = vpack.c.b16 %v546, %v546
    %v563 = vpack.c.b16 %v547, %v547
    %v564 = vpack.c.b16 %v548, %v548
    %v565 = vpack.c.b16 %v549, %v549
    %v566 = vpack.c.b16 %v550, %v550
    %v567 = vpack.c.b16 %v551, %v551
    %v568 = vpack.c.b16 %v552, %v552
    %v569 = vpack.c.b16 %v553, %v553
    %586 = vst [vmem:[%s4] sm:$0xf] %v554
    %587 = vst [vmem:[%s4 + $0x4] sm:$0xf] %v555
    %588 = vst [vmem:[%s4 + $0x8] sm:$0xf] %v556
    %589 = vst [vmem:[%s4 + $0xc] sm:$0xf] %v557
    %590 = vst [vmem:[%s4 + $0x10] sm:$0xf] %v558
    %591 = vst [vmem:[%s4 + $0x14] sm:$0xf] %v559
    %592 = vst [vmem:[%s4 + $0x18] sm:$0xf] %v560
    %593 = vst [vmem:[%s4 + $0x1c] sm:$0xf] %v561
    %594 = vst [vmem:[%s4 + $0x20] sm:$0xf] %v562
    %595 = vst [vmem:[%s4 + $0x24] sm:$0xf] %v563
    %596 = vst [vmem:[%s4 + $0x28] sm:$0xf] %v564
    %597 = vst [vmem:[%s4 + $0x2c] sm:$0xf] %v565
    %598 = vst [vmem:[%s4 + $0x30] sm:$0xf] %v566
    %599 = vst [vmem:[%s4 + $0x34] sm:$0xf] %v567
    %600 = vst [vmem:[%s4 + $0x38] sm:$0xf] %v568
    %601 = vst [vmem:[%s4 + $0x3c] sm:$0xf] %v569
  $region25: #{dominant_forward.8} parent=0 // pred_fallthru
    _
  // Predicated region
  $region26: #{dominant_forward.8} parent=0 // pred_check
    _
  $region27: #{dominant_forward.8} parent=0 // pred_check_branch
    %603 = sbr.rel (0) target = $region29
  $region28: #{dominant_forward.8} parent=0 // pred_region
    _
  $region29: #{dominant_forward.8} parent=0 // pred_fallthru
    _
  // Predicated region
  $region30: #{dominant_forward.8} parent=0 // pred_check
    _
  $region31: #{dominant_forward.8} parent=0 // pred_check_branch
    %605 = sbr.rel (0) target = $region33
  $region32: #{dominant_forward.8} parent=0 // pred_region
    _
  $region33: #{dominant_forward.8} parent=0 // pred_fallthru
    _

// kernel: dominant_forward.9
$region0: #{dominant_forward.9}
  #allocation0 [shape = 'u32[]', space=smem, size = 0x4, offset = 0x4, fixed_abs, tag = 'smem constant byte address 0x4 - core index']
  #allocation1 [shape = 'u32[144,128]{1,0:T(1,128)}', space=vmem, size = 0x12000, scoped, tag = 'internal scratch']
  #allocation2 [shape = 'f32[128,256]{1,0:T(8,128)}', space=vmem, size = 0x20000, scoped, tag = 'scratch operand']
  %s0 = inlined_call_operand.vmem [shape: bf16[128,128], index: 0, kind: input, shape index: {}]
  %s1 = inlined_call_operand.vmem [shape: bf16[128,128], index: 1, kind: input, shape index: {}]
  %s2 = inlined_call_operand.vmem [shape: bf16[128,256], index: 2, kind: input, shape index: {}]
  %s3 = inlined_call_operand.vmem [shape: f32[1,128], index: 3, kind: input, shape index: {}]
  %s4 = inlined_call_operand.vmem [shape: f32[1,128], index: 4, kind: input, shape index: {}]
  %s5 = inlined_call_operand.vmem [shape: bf16[128,128], index: 5, kind: output, shape index: {0}]
  %s6 = inlined_call_operand.vmem [shape: bf16[128,128], index: 6, kind: output, shape index: {1}]
  %7 = xla_tuple %s5, %s6
  %s8 = sld [smem:[#allocation0]]
  $region46: #{dominant_forward.9} parent=0
    _
  %s10 = ssub.s32 1, %s8
  %s11 = scalar_select 0, %s10, %s8
  // Predicated region
  $region2: #{dominant_forward.9} parent=0 // pred_check
    _
  $region3: #{dominant_forward.9} parent=0 // pred_check_branch
    %13 = sbr.rel (0) target = $region5
  $region4: #{dominant_forward.9} parent=0 // pred_region
    _
  $region5: #{dominant_forward.9} parent=0 // pred_fallthru
    _
  // Predicated region
  $region6: #{dominant_forward.9} parent=0 // pred_check
    _
  $region7: #{dominant_forward.9} parent=0 // pred_check_branch
    %15 = sbr.rel (0) target = $region9
  $region8: #{dominant_forward.9} parent=0 // pred_region
    _
  $region9: #{dominant_forward.9} parent=0 // pred_fallthru
    _
  // Predicated region
  $region10: #{dominant_forward.9} parent=0 // pred_check
    _
  $region11: #{dominant_forward.9} parent=0 // pred_check_branch
    %17 = sbr.rel (0) target = $region13
  $region12: #{dominant_forward.9} parent=0 // pred_region
    _
  $region13: #{dominant_forward.9} parent=0 // pred_fallthru
    _
  // Predicated region
  $region14: #{dominant_forward.9} parent=0 // pred_check
    _
  $region15: #{dominant_forward.9} parent=0 // pred_check_branch
    %19 = sbr.rel (0) target = $region17
  $region16: #{dominant_forward.9} parent=0 // pred_region
    _
  $region17: #{dominant_forward.9} parent=0 // pred_fallthru
    _
  // Predicated region
  $region18: #{dominant_forward.9} parent=0 // pred_check
    _
  $region19: #{dominant_forward.9} parent=0 // pred_check_branch
    %21 = sbr.rel (0) target = $region21
  $region20: #{dominant_forward.9} parent=0 // pred_region
    _
  $region21: #{dominant_forward.9} parent=0 // pred_fallthru
    _
  %p23 = scmp.eq.s32.totalorder 0, 0
  // Predicated region
  $region22: #{dominant_forward.9} parent=0 // pred_check
    %p24 = pneg %p23
  $region23: #{dominant_forward.9} parent=0 // pred_check_branch
    %26 = sbr.rel (%p24) target = $region25
  $region24: #{dominant_forward.9} parent=0 // pred_region
    %27 = vst [vmem:[#allocation2] sm:$0xff] 0.0
    %28 = vst [vmem:[#allocation2 + $0x8] sm:$0xff] 0.0
    %29 = vst [vmem:[#allocation2 + $0x10] sm:$0xff] 0.0
    %30 = vst [vmem:[#allocation2 + $0x18] sm:$0xff] 0.0
    %31 = vst [vmem:[#allocation2 + $0x20] sm:$0xff] 0.0
    %32 = vst [vmem:[#allocation2 + $0x28] sm:$0xff] 0.0
    %33 = vst [vmem:[#allocation2 + $0x30] sm:$0xff] 0.0
    %34 = vst [vmem:[#allocation2 + $0x38] sm:$0xff] 0.0
    %35 = vst [vmem:[#allocation2 + $0x40] sm:$0xff] 0.0
    %36 = vst [vmem:[#allocation2 + $0x48] sm:$0xff] 0.0
    %37 = vst [vmem:[#allocation2 + $0x50] sm:$0xff] 0.0
    %38 = vst [vmem:[#allocation2 + $0x58] sm:$0xff] 0.0
    %39 = vst [vmem:[#allocation2 + $0x60] sm:$0xff] 0.0
    %40 = vst [vmem:[#allocation2 + $0x68] sm:$0xff] 0.0
    %41 = vst [vmem:[#allocation2 + $0x70] sm:$0xff] 0.0
    %42 = vst [vmem:[#allocation2 + $0x78] sm:$0xff] 0.0
    %43 = vst [vmem:[#allocation2 + $0x80] sm:$0xff] 0.0
    %44 = vst [vmem:[#allocation2 + $0x88] sm:$0xff] 0.0
    %45 = vst [vmem:[#allocation2 + $0x90] sm:$0xff] 0.0
    %46 = vst [vmem:[#allocation2 + $0x98] sm:$0xff] 0.0
    %47 = vst [vmem:[#allocation2 + $0xa0] sm:$0xff] 0.0
    %48 = vst [vmem:[#allocation2 + $0xa8] sm:$0xff] 0.0
    %49 = vst [vmem:[#allocation2 + $0xb0] sm:$0xff] 0.0
    %50 = vst [vmem:[#allocation2 + $0xb8] sm:$0xff] 0.0
    %51 = vst [vmem:[#allocation2 + $0xc0] sm:$0xff] 0.0
    %52 = vst [vmem:[#allocation2 + $0xc8] sm:$0xff] 0.0
    %53 = vst [vmem:[#allocation2 + $0xd0] sm:$0xff] 0.0
    %54 = vst [vmem:[#allocation2 + $0xd8] sm:$0xff] 0.0
    %55 = vst [vmem:[#allocation2 + $0xe0] sm:$0xff] 0.0
    %56 = vst [vmem:[#allocation2 + $0xe8] sm:$0xff] 0.0
    %57 = vst [vmem:[#allocation2 + $0xf0] sm:$0xff] 0.0
    %58 = vst [vmem:[#allocation2 + $0xf8] sm:$0xff] 0.0
  $region25: #{dominant_forward.9} parent=0 // pred_fallthru
    _
  %v59 = vld [vmem:[%s1] sm:$0xf]
  %v60 = vld [vmem:[%s1 + $0x4] sm:$0xf]
  %v61 = vld [vmem:[%s1 + $0x8] sm:$0xf]
  %v62 = vld [vmem:[%s1 + $0xc] sm:$0xf]
  %v63 = vld [vmem:[%s1 + $0x10] sm:$0xf]
  %v64 = vld [vmem:[%s1 + $0x14] sm:$0xf]
  %v65 = vld [vmem:[%s1 + $0x18] sm:$0xf]
  %v66 = vld [vmem:[%s1 + $0x1c] sm:$0xf]
  %v67 = vld [vmem:[%s1 + $0x20] sm:$0xf]
  %v68 = vld [vmem:[%s1 + $0x24] sm:$0xf]
  %v69 = vld [vmem:[%s1 + $0x28] sm:$0xf]
  %v70 = vld [vmem:[%s1 + $0x2c] sm:$0xf]
  %v71 = vld [vmem:[%s1 + $0x30] sm:$0xf]
  %v72 = vld [vmem:[%s1 + $0x34] sm:$0xf]
  %v73 = vld [vmem:[%s1 + $0x38] sm:$0xf]
  %v74 = vld [vmem:[%s1 + $0x3c] sm:$0xf]
  %v75 = vld [vmem:[%s2] sm:$0xff]
  %v76 = vld [vmem:[%s2 + $0x8] sm:$0xff]
  %v77 = vld [vmem:[%s2 + $0x10] sm:$0xff]
  %v78 = vld [vmem:[%s2 + $0x18] sm:$0xff]
  %v79 = vld [vmem:[%s2 + $0x20] sm:$0xff]
  %v80 = vld [vmem:[%s2 + $0x28] sm:$0xff]
  %v81 = vld [vmem:[%s2 + $0x30] sm:$0xff]
  %v82 = vld [vmem:[%s2 + $0x38] sm:$0xff]
  %v83 = vld [vmem:[%s2 + $0x40] sm:$0xff]
  %v84 = vld [vmem:[%s2 + $0x48] sm:$0xff]
  %v85 = vld [vmem:[%s2 + $0x50] sm:$0xff]
  %v86 = vld [vmem:[%s2 + $0x58] sm:$0xff]
  %v87 = vld [vmem:[%s2 + $0x60] sm:$0xff]
  %v88 = vld [vmem:[%s2 + $0x68] sm:$0xff]
  %v89 = vld [vmem:[%s2 + $0x70] sm:$0xff]
  %v90 = vld [vmem:[%s2 + $0x78] sm:$0xff]
  %v107 = vunpack.c.l.b16 %v59
  %v108 = vunpack.c.l.b16 %v60
  %v109 = vunpack.c.l.b16 %v61
  %v110 = vunpack.c.l.b16 %v62
  %v111 = vunpack.c.l.b16 %v63
  %v112 = vunpack.c.l.b16 %v64
  %v113 = vunpack.c.l.b16 %v65
  %v114 = vunpack.c.l.b16 %v66
  %v115 = vunpack.c.l.b16 %v67
  %v116 = vunpack.c.l.b16 %v68
  %v117 = vunpack.c.l.b16 %v69
  %v118 = vunpack.c.l.b16 %v70
  %v119 = vunpack.c.l.b16 %v71
  %v120 = vunpack.c.l.b16 %v72
  %v121 = vunpack.c.l.b16 %v73
  %v122 = vunpack.c.l.b16 %v74
  %v123 = vpack.c.b16 %v108, %v107
  %v124 = vpack.c.b16 %v110, %v109
  %v125 = vpack.c.b16 %v112, %v111
  %v126 = vpack.c.b16 %v114, %v113
  %v127 = vpack.c.b16 %v116, %v115
  %v128 = vpack.c.b16 %v118, %v117
  %v129 = vpack.c.b16 %v120, %v119
  %v130 = vpack.c.b16 %v122, %v121
  %v155 = vunpack.c.l.b16 %v75
  %v156 = vunpack.c.h.b16 %v75
  %v157 = vunpack.c.l.b16 %v76
  %v158 = vunpack.c.h.b16 %v76
  %v159 = vunpack.c.l.b16 %v77
  %v160 = vunpack.c.h.b16 %v77
  %v161 = vunpack.c.l.b16 %v78
  %v162 = vunpack.c.h.b16 %v78
  %v163 = vunpack.c.l.b16 %v79
  %v164 = vunpack.c.h.b16 %v79
  %v165 = vunpack.c.l.b16 %v80
  %v166 = vunpack.c.h.b16 %v80
  %v167 = vunpack.c.l.b16 %v81
  %v168 = vunpack.c.h.b16 %v81
  %v169 = vunpack.c.l.b16 %v82
  %v170 = vunpack.c.h.b16 %v82
  %v171 = vunpack.c.l.b16 %v83
  %v172 = vunpack.c.h.b16 %v83
  %v173 = vunpack.c.l.b16 %v84
  %v174 = vunpack.c.h.b16 %v84
  %v175 = vunpack.c.l.b16 %v85
  %v176 = vunpack.c.h.b16 %v85
  %v177 = vunpack.c.l.b16 %v86
  %v178 = vunpack.c.h.b16 %v86
  %v179 = vunpack.c.l.b16 %v87
  %v180 = vunpack.c.h.b16 %v87
  %v181 = vunpack.c.l.b16 %v88
  %v182 = vunpack.c.h.b16 %v88
  %v183 = vunpack.c.l.b16 %v89
  %v184 = vunpack.c.h.b16 %v89
  %v185 = vunpack.c.l.b16 %v90
  %v186 = vunpack.c.h.b16 %v90
  %v187 = vpack.c.b16 %v157, %v155
  %v188 = vpack.c.b16 %v158, %v156
  %v189 = vpack.c.b16 %v161, %v159
  %v190 = vpack.c.b16 %v162, %v160
  %v191 = vpack.c.b16 %v165, %v163
  %v192 = vpack.c.b16 %v166, %v164
  %v193 = vpack.c.b16 %v169, %v167
  %v194 = vpack.c.b16 %v170, %v168
  %v195 = vpack.c.b16 %v173, %v171
  %v196 = vpack.c.b16 %v174, %v172
  %v197 = vpack.c.b16 %v177, %v175
  %v198 = vpack.c.b16 %v178, %v176
  %v199 = vpack.c.b16 %v181, %v179
  %v200 = vpack.c.b16 %v182, %v180
  %v201 = vpack.c.b16 %v185, %v183
  %v202 = vpack.c.b16 %v186, %v184
  %219 = vmatprep.subr.bf16.mxu0 %v188
  %220 = vmatpush1.bf16.msra.mxu0 %v187
  %221 = vmatprep.subr.bf16.mxu0 %v190
  %222 = vmatpush1.bf16.msra.mxu0 %v189
  %223 = vmatprep.subr.bf16.mxu0 %v192
  %224 = vmatpush1.bf16.msra.mxu0 %v191
  %225 = vmatprep.subr.bf16.mxu0 %v194
  %226 = vmatpush1.bf16.msra.mxu0 %v193
  %227 = vmatprep.subr.bf16.mxu0 %v196
  %228 = vmatpush1.bf16.msra.mxu0 %v195
  %229 = vmatprep.subr.bf16.mxu0 %v198
  %230 = vmatpush1.bf16.msra.mxu0 %v197
  %231 = vmatprep.subr.bf16.mxu0 %v200
  %232 = vmatpush1.bf16.msra.mxu0 %v199
  %233 = vmatprep.subr.bf16.mxu0 %v202
  %234 = vmatpush1.bf16.msra.mxu0 %v201
  %235 = vmatprep.subr.bf16.mxu0 0
  %236 = vmatpush1.bf16.msra.mxu0 0
  %237 = vmatprep.subr.bf16.mxu0 0
  %238 = vmatpush1.bf16.msra.mxu0 0
  %239 = vmatprep.subr.bf16.mxu0 0
  %240 = vmatpush1.bf16.msra.mxu0 0
  %241 = vmatprep.subr.bf16.mxu0 0
  %242 = vmatpush1.bf16.msra.mxu0 0
  %243 = vmatprep.subr.bf16.mxu0 0
  %244 = vmatpush1.bf16.msra.mxu0 0
  %245 = vmatprep.subr.bf16.mxu0 0
  %246 = vmatpush1.bf16.msra.mxu0 0
  %247 = vmatprep.subr.bf16.mxu0 0
  %248 = vmatpush1.bf16.msra.mxu0 0
  %249 = vmatprep.subr.bf16.mxu0 0
  %250 = vmatpush1.bf16.msra.mxu0 0
  %251 = vmatprep.mubr.bf16.mxu0 0
  %252 = vmatmul.mubr.bf16.gmra.mrb[0].mxu0 %v123
  %v253 = vpop.f32.mrb[0].mxu0
  %v254 = vadd.f32 0.0, %v253
  %v255 = vpop.f32.mrb[0].mxu0
  %v256 = vadd.f32 0.0, %v255
  %v257 = vpop.f32.mrb[0].mxu0
  %v258 = vadd.f32 0.0, %v257
  %v259 = vpop.f32.mrb[0].mxu0
  %v260 = vadd.f32 0.0, %v259
  %261 = vmatprep.mubr.bf16.mxu0 0
  %262 = vmatmul.mubr.bf16.gmra.mrb[0].mxu0 %v124
  %v263 = vpop.f32.mrb[0].mxu0
  %v264 = vadd.f32 0.0, %v263
  %v265 = vpop.f32.mrb[0].mxu0
  %v266 = vadd.f32 0.0, %v265
  %v267 = vpop.f32.mrb[0].mxu0
  %v268 = vadd.f32 0.0, %v267
  %v269 = vpop.f32.mrb[0].mxu0
  %v270 = vadd.f32 0.0, %v269
  %271 = vmatprep.mubr.bf16.mxu0 0
  %272 = vmatmul.mubr.bf16.gmra.mrb[0].mxu0 %v125
  %v273 = vpop.f32.mrb[0].mxu0
  %v274 = vadd.f32 0.0, %v273
  %v275 = vpop.f32.mrb[0].mxu0
  %v276 = vadd.f32 0.0, %v275
  %v277 = vpop.f32.mrb[0].mxu0
  %v278 = vadd.f32 0.0, %v277
  %v279 = vpop.f32.mrb[0].mxu0
  %v280 = vadd.f32 0.0, %v279
  %281 = vmatprep.mubr.bf16.mxu0 0
  %282 = vmatmul.mubr.bf16.gmra.mrb[0].mxu0 %v126
  %v283 = vpop.f32.mrb[0].mxu0
  %v284 = vadd.f32 0.0, %v283
  %v285 = vpop.f32.mrb[0].mxu0
  %v286 = vadd.f32 0.0, %v285
  %v287 = vpop.f32.mrb[0].mxu0
  %v288 = vadd.f32 0.0, %v287
  %v289 = vpop.f32.mrb[0].mxu0
  %v290 = vadd.f32 0.0, %v289
  %291 = vmatprep.mubr.bf16.mxu0 0
  %292 = vmatmul.mubr.bf16.gmra.mrb[0].mxu0 %v127
  %v293 = vpop.f32.mrb[0].mxu0
  %v294 = vadd.f32 0.0, %v293
  %v295 = vpop.f32.mrb[0].mxu0
  %v296 = vadd.f32 0.0, %v295
  %v297 = vpop.f32.mrb[0].mxu0
  %v298 = vadd.f32 0.0, %v297
  %v299 = vpop.f32.mrb[0].mxu0
  %v300 = vadd.f32 0.0, %v299
  %301 = vmatprep.mubr.bf16.mxu0 0
  %302 = vmatmul.mubr.bf16.gmra.mrb[0].mxu0 %v128
  %v303 = vpop.f32.mrb[0].mxu0
  %v304 = vadd.f32 0.0, %v303
  %v305 = vpop.f32.mrb[0].mxu0
  %v306 = vadd.f32 0.0, %v305
  %v307 = vpop.f32.mrb[0].mxu0
  %v308 = vadd.f32 0.0, %v307
  %v309 = vpop.f32.mrb[0].mxu0
  %v310 = vadd.f32 0.0, %v309
  %311 = vmatprep.mubr.bf16.mxu0 0
  %312 = vmatmul.mubr.bf16.gmra.mrb[0].mxu0 %v129
  %v313 = vpop.f32.mrb[0].mxu0
  %v314 = vadd.f32 0.0, %v313
  %v315 = vpop.f32.mrb[0].mxu0
  %v316 = vadd.f32 0.0, %v315
  %v317 = vpop.f32.mrb[0].mxu0
  %v318 = vadd.f32 0.0, %v317
  %v319 = vpop.f32.mrb[0].mxu0
  %v320 = vadd.f32 0.0, %v319
  %321 = vmatprep.mubr.bf16.mxu0 0
  %322 = vmatmul.mubr.bf16.gmra.mrb[0].mxu0 %v130
  %v323 = vpop.f32.mrb[0].mxu0
  %v324 = vadd.f32 0.0, %v323
  %v325 = vpop.f32.mrb[0].mxu0
  %v326 = vadd.f32 0.0, %v325
  %v327 = vpop.f32.mrb[0].mxu0
  %v328 = vadd.f32 0.0, %v327
  %v329 = vpop.f32.mrb[0].mxu0
  %v330 = vadd.f32 0.0, %v329
  %331 = vdwg.mxu0
  %v332 = vpack.c.bf16 %v258, %v254
  %v333 = vpack.c.bf16 %v260, %v256
  %v334 = vpack.c.bf16 %v268, %v264
  %v335 = vpack.c.bf16 %v270, %v266
  %v336 = vpack.c.bf16 %v278, %v274
  %v337 = vpack.c.bf16 %v280, %v276
  %v338 = vpack.c.bf16 %v288, %v284
  %v339 = vpack.c.bf16 %v290, %v286
  %v340 = vpack.c.bf16 %v298, %v294
  %v341 = vpack.c.bf16 %v300, %v296
  %v342 = vpack.c.bf16 %v308, %v304
  %v343 = vpack.c.bf16 %v310, %v306
  %v344 = vpack.c.bf16 %v318, %v314
  %v345 = vpack.c.bf16 %v320, %v316
  %v346 = vpack.c.bf16 %v328, %v324
  %v347 = vpack.c.bf16 %v330, %v326
  %v348 = vld [vmem:[#allocation2] sm:$0xff]
  %v349 = vld [vmem:[#allocation2 + $0x8] sm:$0xff]
  %v350 = vld [vmem:[#allocation2 + $0x10] sm:$0xff]
  %v351 = vld [vmem:[#allocation2 + $0x18] sm:$0xff]
  %v352 = vld [vmem:[#allocation2 + $0x20] sm:$0xff]
  %v353 = vld [vmem:[#allocation2 + $0x28] sm:$0xff]
  %v354 = vld [vmem:[#allocation2 + $0x30] sm:$0xff]
  %v355 = vld [vmem:[#allocation2 + $0x38] sm:$0xff]
  %v356 = vld [vmem:[#allocation2 + $0x40] sm:$0xff]
  %v357 = vld [vmem:[#allocation2 + $0x48] sm:$0xff]
  %v358 = vld [vmem:[#allocation2 + $0x50] sm:$0xff]
  %v359 = vld [vmem:[#allocation2 + $0x58] sm:$0xff]
  %v360 = vld [vmem:[#allocation2 + $0x60] sm:$0xff]
  %v361 = vld [vmem:[#allocation2 + $0x68] sm:$0xff]
  %v362 = vld [vmem:[#allocation2 + $0x70] sm:$0xff]
  %v363 = vld [vmem:[#allocation2 + $0x78] sm:$0xff]
  %v364 = vld [vmem:[#allocation2 + $0x80] sm:$0xff]
  %v365 = vld [vmem:[#allocation2 + $0x88] sm:$0xff]
  %v366 = vld [vmem:[#allocation2 + $0x90] sm:$0xff]
  %v367 = vld [vmem:[#allocation2 + $0x98] sm:$0xff]
  %v368 = vld [vmem:[#allocation2 + $0xa0] sm:$0xff]
  %v369 = vld [vmem:[#allocation2 + $0xa8] sm:$0xff]
  %v370 = vld [vmem:[#allocation2 + $0xb0] sm:$0xff]
  %v371 = vld [vmem:[#allocation2 + $0xb8] sm:$0xff]
  %v372 = vld [vmem:[#allocation2 + $0xc0] sm:$0xff]
  %v373 = vld [vmem:[#allocation2 + $0xc8] sm:$0xff]
  %v374 = vld [vmem:[#allocation2 + $0xd0] sm:$0xff]
  %v375 = vld [vmem:[#allocation2 + $0xd8] sm:$0xff]
  %v376 = vld [vmem:[#allocation2 + $0xe0] sm:$0xff]
  %v377 = vld [vmem:[#allocation2 + $0xe8] sm:$0xff]
  %v378 = vld [vmem:[#allocation2 + $0xf0] sm:$0xff]
  %v379 = vld [vmem:[#allocation2 + $0xf8] sm:$0xff]
  %v380 = vld [vmem:[%s0] sm:$0xf]
  %v381 = vld [vmem:[%s0 + $0x4] sm:$0xf]
  %v382 = vld [vmem:[%s0 + $0x8] sm:$0xf]
  %v383 = vld [vmem:[%s0 + $0xc] sm:$0xf]
  %v384 = vld [vmem:[%s0 + $0x10] sm:$0xf]
  %v385 = vld [vmem:[%s0 + $0x14] sm:$0xf]
  %v386 = vld [vmem:[%s0 + $0x18] sm:$0xf]
  %v387 = vld [vmem:[%s0 + $0x1c] sm:$0xf]
  %v388 = vld [vmem:[%s0 + $0x20] sm:$0xf]
  %v389 = vld [vmem:[%s0 + $0x24] sm:$0xf]
  %v390 = vld [vmem:[%s0 + $0x28] sm:$0xf]
  %v391 = vld [vmem:[%s0 + $0x2c] sm:$0xf]
  %v392 = vld [vmem:[%s0 + $0x30] sm:$0xf]
  %v393 = vld [vmem:[%s0 + $0x34] sm:$0xf]
  %v394 = vld [vmem:[%s0 + $0x38] sm:$0xf]
  %v395 = vld [vmem:[%s0 + $0x3c] sm:$0xf]
  %v412 = vunpack.c.l.b16 %v380
  %v413 = vunpack.c.l.b16 %v381
  %v414 = vunpack.c.l.b16 %v382
  %v415 = vunpack.c.l.b16 %v383
  %v416 = vunpack.c.l.b16 %v384
  %v417 = vunpack.c.l.b16 %v385
  %v418 = vunpack.c.l.b16 %v386
  %v419 = vunpack.c.l.b16 %v387
  %v420 = vunpack.c.l.b16 %v388
  %v421 = vunpack.c.l.b16 %v389
  %v422 = vunpack.c.l.b16 %v390
  %v423 = vunpack.c.l.b16 %v391
  %v424 = vunpack.c.l.b16 %v392
  %v425 = vunpack.c.l.b16 %v393
  %v426 = vunpack.c.l.b16 %v394
  %v427 = vunpack.c.l.b16 %v395
  %v428 = vpack.c.b16 %v413, %v412
  %v429 = vpack.c.b16 %v415, %v414
  %v430 = vpack.c.b16 %v417, %v416
  %v431 = vpack.c.b16 %v419, %v418
  %v432 = vpack.c.b16 %v421, %v420
  %v433 = vpack.c.b16 %v423, %v422
  %v434 = vpack.c.b16 %v425, %v424
  %v435 = vpack.c.b16 %v427, %v426
  %444 = vmatprep.subr.bf16.mxu0 %v333
  %445 = vmatpush1.bf16.msra.mxu0 %v332
  %446 = vmatprep.subr.bf16.mxu0 %v335
  %447 = vmatpush1.bf16.msra.mxu0 %v334
  %448 = vmatprep.subr.bf16.mxu0 %v337
  %449 = vmatpush1.bf16.msra.mxu0 %v336
  %450 = vmatprep.subr.bf16.mxu0 %v339
  %451 = vmatpush1.bf16.msra.mxu0 %v338
  %452 = vmatprep.subr.bf16.mxu0 %v341
  %453 = vmatpush1.bf16.msra.mxu0 %v340
  %454 = vmatprep.subr.bf16.mxu0 %v343
  %455 = vmatpush1.bf16.msra.mxu0 %v342
  %456 = vmatprep.subr.bf16.mxu0 %v345
  %457 = vmatpush1.bf16.msra.mxu0 %v344
  %458 = vmatprep.subr.bf16.mxu0 %v347
  %459 = vmatpush1.bf16.msra.mxu0 %v346
  %460 = vmatprep.subr.bf16.mxu0 0
  %461 = vmatpush1.bf16.msra.mxu0 0
  %462 = vmatprep.subr.bf16.mxu0 0
  %463 = vmatpush1.bf16.msra.mxu0 0
  %464 = vmatprep.subr.bf16.mxu0 0
  %465 = vmatpush1.bf16.msra.mxu0 0
  %466 = vmatprep.subr.bf16.mxu0 0
  %467 = vmatpush1.bf16.msra.mxu0 0
  %468 = vmatprep.subr.bf16.mxu0 0
  %469 = vmatpush1.bf16.msra.mxu0 0
  %470 = vmatprep.subr.bf16.mxu0 0
  %471 = vmatpush1.bf16.msra.mxu0 0
  %472 = vmatprep.subr.bf16.mxu0 0
  %473 = vmatpush1.bf16.msra.mxu0 0
  %474 = vmatprep.subr.bf16.mxu0 0
  %475 = vmatpush1.bf16.msra.mxu0 0
  %476 = vmatprep.mubr.bf16.mxu0 0
  %477 = vmatmul.mubr.bf16.gmra.mrb[0].mxu0 %v428
  %v478 = vpop.f32.mrb[0].mxu0
  %v479 = vadd.f32 0.0, %v478
  %v480 = vpop.f32.mrb[0].mxu0
  %v481 = vadd.f32 0.0, %v480
  %v482 = vpop.f32.mrb[0].mxu0
  %v483 = vadd.f32 0.0, %v482
  %v484 = vpop.f32.mrb[0].mxu0
  %v485 = vadd.f32 0.0, %v484
  %486 = vmatprep.mubr.bf16.mxu0 0
  %487 = vmatmul.mubr.bf16.gmra.mrb[0].mxu0 %v429
  %v488 = vpop.f32.mrb[0].mxu0
  %v489 = vadd.f32 0.0, %v488
  %v490 = vpop.f32.mrb[0].mxu0
  %v491 = vadd.f32 0.0, %v490
  %v492 = vpop.f32.mrb[0].mxu0
  %v493 = vadd.f32 0.0, %v492
  %v494 = vpop.f32.mrb[0].mxu0
  %v495 = vadd.f32 0.0, %v494
  %496 = vmatprep.mubr.bf16.mxu0 0
  %497 = vmatmul.mubr.bf16.gmra.mrb[0].mxu0 %v430
  %v498 = vpop.f32.mrb[0].mxu0
  %v499 = vadd.f32 0.0, %v498
  %v500 = vpop.f32.mrb[0].mxu0
  %v501 = vadd.f32 0.0, %v500
  %v502 = vpop.f32.mrb[0].mxu0
  %v503 = vadd.f32 0.0, %v502
  %v504 = vpop.f32.mrb[0].mxu0
  %v505 = vadd.f32 0.0, %v504
  %506 = vmatprep.mubr.bf16.mxu0 0
  %507 = vmatmul.mubr.bf16.gmra.mrb[0].mxu0 %v431
  %v508 = vpop.f32.mrb[0].mxu0
  %v509 = vadd.f32 0.0, %v508
  %v510 = vpop.f32.mrb[0].mxu0
  %v511 = vadd.f32 0.0, %v510
  %v512 = vpop.f32.mrb[0].mxu0
  %v513 = vadd.f32 0.0, %v512
  %v514 = vpop.f32.mrb[0].mxu0
  %v515 = vadd.f32 0.0, %v514
  %516 = vmatprep.mubr.bf16.mxu0 0
  %517 = vmatmul.mubr.bf16.gmra.mrb[0].mxu0 %v432
  %v518 = vpop.f32.mrb[0].mxu0
  %v519 = vadd.f32 0.0, %v518
  %v520 = vpop.f32.mrb[0].mxu0
  %v521 = vadd.f32 0.0, %v520
  %v522 = vpop.f32.mrb[0].mxu0
  %v523 = vadd.f32 0.0, %v522
  %v524 = vpop.f32.mrb[0].mxu0
  %v525 = vadd.f32 0.0, %v524
  %526 = vmatprep.mubr.bf16.mxu0 0
  %527 = vmatmul.mubr.bf16.gmra.mrb[0].mxu0 %v433
  %v528 = vpop.f32.mrb[0].mxu0
  %v529 = vadd.f32 0.0, %v528
  %v530 = vpop.f32.mrb[0].mxu0
  %v531 = vadd.f32 0.0, %v530
  %v532 = vpop.f32.mrb[0].mxu0
  %v533 = vadd.f32 0.0, %v532
  %v534 = vpop.f32.mrb[0].mxu0
  %v535 = vadd.f32 0.0, %v534
  %536 = vmatprep.mubr.bf16.mxu0 0
  %537 = vmatmul.mubr.bf16.gmra.mrb[0].mxu0 %v434
  %v538 = vpop.f32.mrb[0].mxu0
  %v539 = vadd.f32 0.0, %v538
  %v540 = vpop.f32.mrb[0].mxu0
  %v541 = vadd.f32 0.0, %v540
  %v542 = vpop.f32.mrb[0].mxu0
  %v543 = vadd.f32 0.0, %v542
  %v544 = vpop.f32.mrb[0].mxu0
  %v545 = vadd.f32 0.0, %v544
  %546 = vmatprep.mubr.bf16.mxu0 0
  %547 = vmatmul.mubr.bf16.gmra.mrb[0].mxu0 %v435
  %v548 = vpop.f32.mrb[0].mxu0
  %v549 = vadd.f32 0.0, %v548
  %v550 = vpop.f32.mrb[0].mxu0
  %v551 = vadd.f32 0.0, %v550
  %v552 = vpop.f32.mrb[0].mxu0
  %v553 = vadd.f32 0.0, %v552
  %v554 = vpop.f32.mrb[0].mxu0
  %v555 = vadd.f32 0.0, %v554
  %556 = vdwg.mxu0
  %v557 = vadd.f32 %v348, %v479
  %v558 = vadd.f32 %v349, %v481
  %v559 = vadd.f32 %v350, %v483
  %v560 = vadd.f32 %v351, %v485
  %v561 = vadd.f32 %v352, %v489
  %v562 = vadd.f32 %v353, %v491
  %v563 = vadd.f32 %v354, %v493
  %v564 = vadd.f32 %v355, %v495
  %v565 = vadd.f32 %v356, %v499
  %v566 = vadd.f32 %v357, %v501
  %v567 = vadd.f32 %v358, %v503
  %v568 = vadd.f32 %v359, %v505
  %v569 = vadd.f32 %v360, %v509
  %v570 = vadd.f32 %v361, %v511
  %v571 = vadd.f32 %v362, %v513
  %v572 = vadd.f32 %v363, %v515
  %v573 = vadd.f32 %v364, %v519
  %v574 = vadd.f32 %v365, %v521
  %v575 = vadd.f32 %v366, %v523
  %v576 = vadd.f32 %v367, %v525
  %v577 = vadd.f32 %v368, %v529
  %v578 = vadd.f32 %v369, %v531
  %v579 = vadd.f32 %v370, %v533
  %v580 = vadd.f32 %v371, %v535
  %v581 = vadd.f32 %v372, %v539
  %v582 = vadd.f32 %v373, %v541
  %v583 = vadd.f32 %v374, %v543
  %v584 = vadd.f32 %v375, %v545
  %v585 = vadd.f32 %v376, %v549
  %v586 = vadd.f32 %v377, %v551
  %v587 = vadd.f32 %v378, %v553
  %v588 = vadd.f32 %v379, %v555
  %589 = vst [vmem:[#allocation2] sm:$0xff] %v557
  %590 = vst [vmem:[#allocation2 + $0x8] sm:$0xff] %v558
  %591 = vst [vmem:[#allocation2 + $0x10] sm:$0xff] %v559
  %592 = vst [vmem:[#allocation2 + $0x18] sm:$0xff] %v560
  %593 = vst [vmem:[#allocation2 + $0x20] sm:$0xff] %v561
  %594 = vst [vmem:[#allocation2 + $0x28] sm:$0xff] %v562
  %595 = vst [vmem:[#allocation2 + $0x30] sm:$0xff] %v563
  %596 = vst [vmem:[#allocation2 + $0x38] sm:$0xff] %v564
  %597 = vst [vmem:[#allocation2 + $0x40] sm:$0xff] %v565
  %598 = vst [vmem:[#allocation2 + $0x48] sm:$0xff] %v566
  %599 = vst [vmem:[#allocation2 + $0x50] sm:$0xff] %v567
  %600 = vst [vmem:[#allocation2 + $0x58] sm:$0xff] %v568
  %601 = vst [vmem:[#allocation2 + $0x60] sm:$0xff] %v569
  %602 = vst [vmem:[#allocation2 + $0x68] sm:$0xff] %v570
  %603 = vst [vmem:[#allocation2 + $0x70] sm:$0xff] %v571
  %604 = vst [vmem:[#allocation2 + $0x78] sm:$0xff] %v572
  %605 = vst [vmem:[#allocation2 + $0x80] sm:$0xff] %v573
  %606 = vst [vmem:[#allocation2 + $0x88] sm:$0xff] %v574
  %607 = vst [vmem:[#allocation2 + $0x90] sm:$0xff] %v575
  %608 = vst [vmem:[#allocation2 + $0x98] sm:$0xff] %v576
  %609 = vst [vmem:[#allocation2 + $0xa0] sm:$0xff] %v577
  %610 = vst [vmem:[#allocation2 + $0xa8] sm:$0xff] %v578
  %611 = vst [vmem:[#allocation2 + $0xb0] sm:$0xff] %v579
  %612 = vst [vmem:[#allocation2 + $0xb8] sm:$0xff] %v580
  %613 = vst [vmem:[#allocation2 + $0xc0] sm:$0xff] %v581
  %614 = vst [vmem:[#allocation2 + $0xc8] sm:$0xff] %v582
  %615 = vst [vmem:[#allocation2 + $0xd0] sm:$0xff] %v583
  %616 = vst [vmem:[#allocation2 + $0xd8] sm:$0xff] %v584
  %617 = vst [vmem:[#allocation2 + $0xe0] sm:$0xff] %v585
  %618 = vst [vmem:[#allocation2 + $0xe8] sm:$0xff] %v586
  %619 = vst [vmem:[#allocation2 + $0xf0] sm:$0xff] %v587
  %620 = vst [vmem:[#allocation2 + $0xf8] sm:$0xff] %v588
  // Predicated region
  $region26: #{dominant_forward.9} parent=0 // pred_check
    %p621 = pneg %p23
  $region27: #{dominant_forward.9} parent=0 // pred_check_branch
    %623 = sbr.rel (%p621) target = $region29
  $region28: #{dominant_forward.9} parent=0 // pred_region
    %v624 = vld [vmem:[#allocation2] sm:$0xff]
    %v625 = vld [vmem:[#allocation2 + $0x10] sm:$0xff]
    %v626 = vld [vmem:[#allocation2 + $0x20] sm:$0xff]
    %v627 = vld [vmem:[#allocation2 + $0x30] sm:$0xff]
    %v628 = vld [vmem:[#allocation2 + $0x40] sm:$0xff]
    %v629 = vld [vmem:[#allocation2 + $0x50] sm:$0xff]
    %v630 = vld [vmem:[#allocation2 + $0x60] sm:$0xff]
    %v631 = vld [vmem:[#allocation2 + $0x70] sm:$0xff]
    %v632 = vld [vmem:[#allocation2 + $0x80] sm:$0xff]
    %v633 = vld [vmem:[#allocation2 + $0x90] sm:$0xff]
    %v634 = vld [vmem:[#allocation2 + $0xa0] sm:$0xff]
    %v635 = vld [vmem:[#allocation2 + $0xb0] sm:$0xff]
    %v636 = vld [vmem:[#allocation2 + $0xc0] sm:$0xff]
    %v637 = vld [vmem:[#allocation2 + $0xd0] sm:$0xff]
    %v638 = vld [vmem:[#allocation2 + $0xe0] sm:$0xff]
    %v639 = vld [vmem:[#allocation2 + $0xf0] sm:$0xff]
    %v640 = vld [vmem:[%s3] sm:$0x1]
    %v642 = vlaneseq
    %v643 = vshrl.u32 %v642, 7
    %v644 = vsub.s32 0, %v643
    %v645 = vrot.slane %v640, %v644
    %v647 = vadd.f32 %v624, %v645
    %v648 = vadd.f32 %v625, %v645
    %v649 = vadd.f32 %v626, %v645
    %v650 = vadd.f32 %v627, %v645
    %v651 = vadd.f32 %v628, %v645
    %v652 = vadd.f32 %v629, %v645
    %v653 = vadd.f32 %v630, %v645
    %v654 = vadd.f32 %v631, %v645
    %v655 = vadd.f32 %v632, %v645
    %v656 = vadd.f32 %v633, %v645
    %v657 = vadd.f32 %v634, %v645
    %v658 = vadd.f32 %v635, %v645
    %v659 = vadd.f32 %v636, %v645
    %v660 = vadd.f32 %v637, %v645
    %v661 = vadd.f32 %v638, %v645
    %v662 = vadd.f32 %v639, %v645
    %v663 = vmax.f32 %v647, 0.0
    %v664 = vmax.f32 %v648, 0.0
    %v665 = vmax.f32 %v649, 0.0
    %v666 = vmax.f32 %v650, 0.0
    %v667 = vmax.f32 %v651, 0.0
    %v668 = vmax.f32 %v652, 0.0
    %v669 = vmax.f32 %v653, 0.0
    %v670 = vmax.f32 %v654, 0.0
    %v671 = vmax.f32 %v655, 0.0
    %v672 = vmax.f32 %v656, 0.0
    %v673 = vmax.f32 %v657, 0.0
    %v674 = vmax.f32 %v658, 0.0
    %v675 = vmax.f32 %v659, 0.0
    %v676 = vmax.f32 %v660, 0.0
    %v677 = vmax.f32 %v661, 0.0
    %v678 = vmax.f32 %v662, 0.0
    %v679 = vpack.c.bf16 %v664, %v663
    %v680 = vpack.c.bf16 %v666, %v665
    %v681 = vpack.c.bf16 %v668, %v667
    %v682 = vpack.c.bf16 %v670, %v669
    %v683 = vpack.c.bf16 %v672, %v671
    %v684 = vpack.c.bf16 %v674, %v673
    %v685 = vpack.c.bf16 %v676, %v675
    %v686 = vpack.c.bf16 %v678, %v677
    %v695 = vunpack.c.l.b16 %v679
    %v696 = vunpack.c.h.b16 %v679
    %v697 = vunpack.c.l.b16 %v680
    %v698 = vunpack.c.h.b16 %v680
    %v699 = vunpack.c.l.b16 %v681
    %v700 = vunpack.c.h.b16 %v681
    %v701 = vunpack.c.l.b16 %v682
    %v702 = vunpack.c.h.b16 %v682
    %v703 = vunpack.c.l.b16 %v683
    %v704 = vunpack.c.h.b16 %v683
    %v705 = vunpack.c.l.b16 %v684
    %v706 = vunpack.c.h.b16 %v684
    %v707 = vunpack.c.l.b16 %v685
    %v708 = vunpack.c.h.b16 %v685
    %v709 = vunpack.c.l.b16 %v686
    %v710 = vunpack.c.h.b16 %v686
    %v711 = vpack.c.b16 %v695, %v695
    %v712 = vpack.c.b16 %v696, %v696
    %v713 = vpack.c.b16 %v697, %v697
    %v714 = vpack.c.b16 %v698, %v698
    %v715 = vpack.c.b16 %v699, %v699
    %v716 = vpack.c.b16 %v700, %v700
    %v717 = vpack.c.b16 %v701, %v701
    %v718 = vpack.c.b16 %v702, %v702
    %v719 = vpack.c.b16 %v703, %v703
    %v720 = vpack.c.b16 %v704, %v704
    %v721 = vpack.c.b16 %v705, %v705
    %v722 = vpack.c.b16 %v706, %v706
    %v723 = vpack.c.b16 %v707, %v707
    %v724 = vpack.c.b16 %v708, %v708
    %v725 = vpack.c.b16 %v709, %v709
    %v726 = vpack.c.b16 %v710, %v710
    %743 = vst [vmem:[%s5] sm:$0xf] %v711
    %744 = vst [vmem:[%s5 + $0x4] sm:$0xf] %v712
    %745 = vst [vmem:[%s5 + $0x8] sm:$0xf] %v713
    %746 = vst [vmem:[%s5 + $0xc] sm:$0xf] %v714
    %747 = vst [vmem:[%s5 + $0x10] sm:$0xf] %v715
    %748 = vst [vmem:[%s5 + $0x14] sm:$0xf] %v716
    %749 = vst [vmem:[%s5 + $0x18] sm:$0xf] %v717
    %750 = vst [vmem:[%s5 + $0x1c] sm:$0xf] %v718
    %751 = vst [vmem:[%s5 + $0x20] sm:$0xf] %v719
    %752 = vst [vmem:[%s5 + $0x24] sm:$0xf] %v720
    %753 = vst [vmem:[%s5 + $0x28] sm:$0xf] %v721
    %754 = vst [vmem:[%s5 + $0x2c] sm:$0xf] %v722
    %755 = vst [vmem:[%s5 + $0x30] sm:$0xf] %v723
    %756 = vst [vmem:[%s5 + $0x34] sm:$0xf] %v724
    %757 = vst [vmem:[%s5 + $0x38] sm:$0xf] %v725
    %758 = vst [vmem:[%s5 + $0x3c] sm:$0xf] %v726
    %v759 = vld [vmem:[#allocation2 + $0x8] sm:$0xff]
    %v760 = vld [vmem:[#allocation2 + $0x18] sm:$0xff]
    %v761 = vld [vmem:[#allocation2 + $0x28] sm:$0xff]
    %v762 = vld [vmem:[#allocation2 + $0x38] sm:$0xff]
    %v763 = vld [vmem:[#allocation2 + $0x48] sm:$0xff]
    %v764 = vld [vmem:[#allocation2 + $0x58] sm:$0xff]
    %v765 = vld [vmem:[#allocation2 + $0x68] sm:$0xff]
    %v766 = vld [vmem:[#allocation2 + $0x78] sm:$0xff]
    %v767 = vld [vmem:[#allocation2 + $0x88] sm:$0xff]
    %v768 = vld [vmem:[#allocation2 + $0x98] sm:$0xff]
    %v769 = vld [vmem:[#allocation2 + $0xa8] sm:$0xff]
    %v770 = vld [vmem:[#allocation2 + $0xb8] sm:$0xff]
    %v771 = vld [vmem:[#allocation2 + $0xc8] sm:$0xff]
    %v772 = vld [vmem:[#allocation2 + $0xd8] sm:$0xff]
    %v773 = vld [vmem:[#allocation2 + $0xe8] sm:$0xff]
    %v774 = vld [vmem:[#allocation2 + $0xf8] sm:$0xff]
    %v775 = vld [vmem:[%s4] sm:$0x1]
    %v777 = vlaneseq
    %v778 = vshrl.u32 %v777, 7
    %v779 = vsub.s32 0, %v778
    %v780 = vrot.slane %v775, %v779
    %v782 = vadd.f32 %v759, %v780
    %v783 = vadd.f32 %v760, %v780
    %v784 = vadd.f32 %v761, %v780
    %v785 = vadd.f32 %v762, %v780
    %v786 = vadd.f32 %v763, %v780
    %v787 = vadd.f32 %v764, %v780
    %v788 = vadd.f32 %v765, %v780
    %v789 = vadd.f32 %v766, %v780
    %v790 = vadd.f32 %v767, %v780
    %v791 = vadd.f32 %v768, %v780
    %v792 = vadd.f32 %v769, %v780
    %v793 = vadd.f32 %v770, %v780
    %v794 = vadd.f32 %v771, %v780
    %v795 = vadd.f32 %v772, %v780
    %v796 = vadd.f32 %v773, %v780
    %v797 = vadd.f32 %v774, %v780
    %v798 = vpack.c.bf16 %v783, %v782
    %v799 = vpack.c.bf16 %v785, %v784
    %v800 = vpack.c.bf16 %v787, %v786
    %v801 = vpack.c.bf16 %v789, %v788
    %v802 = vpack.c.bf16 %v791, %v790
    %v803 = vpack.c.bf16 %v793, %v792
    %v804 = vpack.c.bf16 %v795, %v794
    %v805 = vpack.c.bf16 %v797, %v796
    %v814 = vunpack.c.l.b16 %v798
    %v815 = vunpack.c.h.b16 %v798
    %v816 = vunpack.c.l.b16 %v799
    %v817 = vunpack.c.h.b16 %v799
    %v818 = vunpack.c.l.b16 %v800
    %v819 = vunpack.c.h.b16 %v800
    %v820 = vunpack.c.l.b16 %v801
    %v821 = vunpack.c.h.b16 %v801
    %v822 = vunpack.c.l.b16 %v802
    %v823 = vunpack.c.h.b16 %v802
    %v824 = vunpack.c.l.b16 %v803
    %v825 = vunpack.c.h.b16 %v803
    %v826 = vunpack.c.l.b16 %v804
    %v827 = vunpack.c.h.b16 %v804
    %v828 = vunpack.c.l.b16 %v805
    %v829 = vunpack.c.h.b16 %v805
    %v830 = vpack.c.b16 %v814, %v814
    %v831 = vpack.c.b16 %v815, %v815
    %v832 = vpack.c.b16 %v816, %v816
    %v833 = vpack.c.b16 %v817, %v817
    %v834 = vpack.c.b16 %v818, %v818
    %v835 = vpack.c.b16 %v819, %v819
    %v836 = vpack.c.b16 %v820, %v820
    %v837 = vpack.c.b16 %v821, %v821
    %v838 = vpack.c.b16 %v822, %v822
    %v839 = vpack.c.b16 %v823, %v823
    %v840 = vpack.c.b16 %v824, %v824
    %v841 = vpack.c.b16 %v825, %v825
    %v842 = vpack.c.b16 %v826, %v826
    %v843 = vpack.c.b16 %v827, %v827
    %v844 = vpack.c.b16 %v828, %v828
    %v845 = vpack.c.b16 %v829, %v829
    %862 = vst [vmem:[%s6] sm:$0xf] %v830
    %863 = vst [vmem:[%s6 + $0x4] sm:$0xf] %v831
    %864 = vst [vmem:[%s6 + $0x8] sm:$0xf] %v832
    %865 = vst [vmem:[%s6 + $0xc] sm:$0xf] %v833
    %866 = vst [vmem:[%s6 + $0x10] sm:$0xf] %v834
    %867 = vst [vmem:[%s6 + $0x14] sm:$0xf] %v835
    %868 = vst [vmem:[%s6 + $0x18] sm:$0xf] %v836
    %869 = vst [vmem:[%s6 + $0x1c] sm:$0xf] %v837
    %870 = vst [vmem:[%s6 + $0x20] sm:$0xf] %v838
    %871 = vst [vmem:[%s6 + $0x24] sm:$0xf] %v839
    %872 = vst [vmem:[%s6 + $0x28] sm:$0xf] %v840
    %873 = vst [vmem:[%s6 + $0x2c] sm:$0xf] %v841
    %874 = vst [vmem:[%s6 + $0x30] sm:$0xf] %v842
    %875 = vst [vmem:[%s6 + $0x34] sm:$0xf] %v843
    %876 = vst [vmem:[%s6 + $0x38] sm:$0xf] %v844
    %877 = vst [vmem:[%s6 + $0x3c] sm:$0xf] %v845
  $region29: #{dominant_forward.9} parent=0 // pred_fallthru
    _
  // Predicated region
  $region30: #{dominant_forward.9} parent=0 // pred_check
    _
  $region31: #{dominant_forward.9} parent=0 // pred_check_branch
    %879 = sbr.rel (0) target = $region33
  $region32: #{dominant_forward.9} parent=0 // pred_region
    _
  $region33: #{dominant_forward.9} parent=0 // pred_fallthru
    _
  // Predicated region
  $region34: #{dominant_forward.9} parent=0 // pred_check
    _
  $region35: #{dominant_forward.9} parent=0 // pred_check_branch
    %881 = sbr.rel (0) target = $region37
  $region36: #{dominant_forward.9} parent=0 // pred_region
    _
  $region37: #{dominant_forward.9} parent=0 // pred_fallthru
    _
  // Predicated region
  $region38: #{dominant_forward.9} parent=0 // pred_check
    _
  $region39: #{dominant_forward.9} parent=0 // pred_check_branch
    %883 = sbr.rel (0) target = $region41
  $region40: #{dominant_forward.9} parent=0 // pred_region
    _
  $region41: #{dominant_forward.9} parent=0 // pred_fallthru
    _
  // Predicated region
  $region42: #{dominant_forward.9} parent=0 // pred_check
    _
  $region43: #{dominant_forward.9} parent=0 // pred_check_branch
    %885 = sbr.rel (0) target = $region45
  $region44: #{dominant_forward.9} parent=0 // pred_region
    _
  $region45: #{dominant_forward.9} parent=0 // pred_fallthru
    _

// kernel: dominant_forward.11
$region0: #{dominant_forward.11}
  #allocation0 [shape = 'u32[]', space=smem, size = 0x4, offset = 0x4, fixed_abs, tag = 'smem constant byte address 0x4 - core index']
  #allocation1 [shape = 'u32[144,128]{1,0:T(1,128)}', space=vmem, size = 0x12000, scoped, tag = 'internal scratch']
  %s0 = inlined_call_operand.vmem [shape: bf16[128,128], index: 0, kind: input, shape index: {}, may-alias: {0,1}]
  %s1 = inlined_call_operand.vmem [shape: bf16[128,128], index: 1, kind: input, shape index: {}, may-alias: {0,1}]
  %s2 = inlined_call_operand.vmem [shape: f32[128,128], index: 2, kind: output, shape index: {}]
  %s3 = sld [smem:[#allocation0]]
  $region18: #{dominant_forward.11} parent=0
    _
  %s5 = ssub.s32 1, %s3
  %s6 = scalar_select 0, %s5, %s3
  // Predicated region
  $region2: #{dominant_forward.11} parent=0 // pred_check
    _
  $region3: #{dominant_forward.11} parent=0 // pred_check_branch
    %8 = sbr.rel (0) target = $region5
  $region4: #{dominant_forward.11} parent=0 // pred_region
    _
  $region5: #{dominant_forward.11} parent=0 // pred_fallthru
    _
  // Predicated region
  $region6: #{dominant_forward.11} parent=0 // pred_check
    _
  $region7: #{dominant_forward.11} parent=0 // pred_check_branch
    %10 = sbr.rel (0) target = $region9
  $region8: #{dominant_forward.11} parent=0 // pred_region
    _
  $region9: #{dominant_forward.11} parent=0 // pred_fallthru
    _
  %v12 = vld [vmem:[%s0] sm:$0xf]
  %v13 = vld [vmem:[%s0 + $0x4] sm:$0xf]
  %v14 = vld [vmem:[%s0 + $0x8] sm:$0xf]
  %v15 = vld [vmem:[%s0 + $0xc] sm:$0xf]
  %v16 = vld [vmem:[%s0 + $0x10] sm:$0xf]
  %v17 = vld [vmem:[%s0 + $0x14] sm:$0xf]
  %v18 = vld [vmem:[%s0 + $0x18] sm:$0xf]
  %v19 = vld [vmem:[%s0 + $0x1c] sm:$0xf]
  %v20 = vld [vmem:[%s0 + $0x20] sm:$0xf]
  %v21 = vld [vmem:[%s0 + $0x24] sm:$0xf]
  %v22 = vld [vmem:[%s0 + $0x28] sm:$0xf]
  %v23 = vld [vmem:[%s0 + $0x2c] sm:$0xf]
  %v24 = vld [vmem:[%s0 + $0x30] sm:$0xf]
  %v25 = vld [vmem:[%s0 + $0x34] sm:$0xf]
  %v26 = vld [vmem:[%s0 + $0x38] sm:$0xf]
  %v27 = vld [vmem:[%s0 + $0x3c] sm:$0xf]
  %v28 = vld [vmem:[%s1] sm:$0xf]
  %v29 = vld [vmem:[%s1 + $0x4] sm:$0xf]
  %v30 = vld [vmem:[%s1 + $0x8] sm:$0xf]
  %v31 = vld [vmem:[%s1 + $0xc] sm:$0xf]
  %v32 = vld [vmem:[%s1 + $0x10] sm:$0xf]
  %v33 = vld [vmem:[%s1 + $0x14] sm:$0xf]
  %v34 = vld [vmem:[%s1 + $0x18] sm:$0xf]
  %v35 = vld [vmem:[%s1 + $0x1c] sm:$0xf]
  %v36 = vld [vmem:[%s1 + $0x20] sm:$0xf]
  %v37 = vld [vmem:[%s1 + $0x24] sm:$0xf]
  %v38 = vld [vmem:[%s1 + $0x28] sm:$0xf]
  %v39 = vld [vmem:[%s1 + $0x2c] sm:$0xf]
  %v40 = vld [vmem:[%s1 + $0x30] sm:$0xf]
  %v41 = vld [vmem:[%s1 + $0x34] sm:$0xf]
  %v42 = vld [vmem:[%s1 + $0x38] sm:$0xf]
  %v43 = vld [vmem:[%s1 + $0x3c] sm:$0xf]
  %v60 = vunpack.c.l.b16 %v12
  %v61 = vunpack.c.l.b16 %v13
  %v62 = vunpack.c.l.b16 %v14
  %v63 = vunpack.c.l.b16 %v15
  %v64 = vunpack.c.l.b16 %v16
  %v65 = vunpack.c.l.b16 %v17
  %v66 = vunpack.c.l.b16 %v18
  %v67 = vunpack.c.l.b16 %v19
  %v68 = vunpack.c.l.b16 %v20
  %v69 = vunpack.c.l.b16 %v21
  %v70 = vunpack.c.l.b16 %v22
  %v71 = vunpack.c.l.b16 %v23
  %v72 = vunpack.c.l.b16 %v24
  %v73 = vunpack.c.l.b16 %v25
  %v74 = vunpack.c.l.b16 %v26
  %v75 = vunpack.c.l.b16 %v27
  %v76 = vpack.c.b16 %v61, %v60
  %v77 = vpack.c.b16 %v63, %v62
  %v78 = vpack.c.b16 %v65, %v64
  %v79 = vpack.c.b16 %v67, %v66
  %v80 = vpack.c.b16 %v69, %v68
  %v81 = vpack.c.b16 %v71, %v70
  %v82 = vpack.c.b16 %v73, %v72
  %v83 = vpack.c.b16 %v75, %v74
  %v108 = vunpack.c.l.b16 %v28
  %v109 = vunpack.c.l.b16 %v29
  %v110 = vunpack.c.l.b16 %v30
  %v111 = vunpack.c.l.b16 %v31
  %v112 = vunpack.c.l.b16 %v32
  %v113 = vunpack.c.l.b16 %v33
  %v114 = vunpack.c.l.b16 %v34
  %v115 = vunpack.c.l.b16 %v35
  %v116 = vunpack.c.l.b16 %v36
  %v117 = vunpack.c.l.b16 %v37
  %v118 = vunpack.c.l.b16 %v38
  %v119 = vunpack.c.l.b16 %v39
  %v120 = vunpack.c.l.b16 %v40
  %v121 = vunpack.c.l.b16 %v41
  %v122 = vunpack.c.l.b16 %v42
  %v123 = vunpack.c.l.b16 %v43
  %v124 = vpack.c.b16 %v109, %v108
  %v125 = vpack.c.b16 %v111, %v110
  %v126 = vpack.c.b16 %v113, %v112
  %v127 = vpack.c.b16 %v115, %v114
  %v128 = vpack.c.b16 %v117, %v116
  %v129 = vpack.c.b16 %v119, %v118
  %v130 = vpack.c.b16 %v121, %v120
  %v131 = vpack.c.b16 %v123, %v122
  %140 = vmatprep.subr.bf16.mxu0 0
  %141 = vmatpush1.bf16.xpose.msra.mxu0 %v124
  %142 = vmatprep.subr.bf16.mxu0 0
  %143 = vmatpush1.bf16.xpose.msra.mxu0 %v125
  %144 = vmatprep.subr.bf16.mxu0 0
  %145 = vmatpush1.bf16.xpose.msra.mxu0 %v126
  %146 = vmatprep.subr.bf16.mxu0 0
  %147 = vmatpush1.bf16.xpose.msra.mxu0 %v127
  %148 = vmatprep.subr.bf16.mxu0 0
  %149 = vmatpush1.bf16.xpose.msra.mxu0 %v128
  %150 = vmatprep.subr.bf16.mxu0 0
  %151 = vmatpush1.bf16.xpose.msra.mxu0 %v129
  %152 = vmatprep.subr.bf16.mxu0 0
  %153 = vmatpush1.bf16.xpose.msra.mxu0 %v130
  %154 = vmatprep.subr.bf16.mxu0 0
  %155 = vmatpush1.bf16.xpose.msra.mxu0 %v131
  %156 = vmatprep.subr.bf16.mxu0 0
  %157 = vmatpush1.bf16.xpose.msra.mxu0 0
  %158 = vmatprep.subr.bf16.mxu0 0
  %159 = vmatpush1.bf16.xpose.msra.mxu0 0
  %160 = vmatprep.subr.bf16.mxu0 0
  %161 = vmatpush1.bf16.xpose.msra.mxu0 0
  %162 = vmatprep.subr.bf16.mxu0 0
  %163 = vmatpush1.bf16.xpose.msra.mxu0 0
  %164 = vmatprep.subr.bf16.mxu0 0
  %165 = vmatpush1.bf16.xpose.msra.mxu0 0
  %166 = vmatprep.subr.bf16.mxu0 0
  %167 = vmatpush1.bf16.xpose.msra.mxu0 0
  %168 = vmatprep.subr.bf16.mxu0 0
  %169 = vmatpush1.bf16.xpose.msra.mxu0 0
  %170 = vmatprep.subr.bf16.mxu0 0
  %171 = vmatpush1.bf16.xpose.msra.mxu0 0
  %172 = vmatprep.mubr.bf16.mxu0 0
  %173 = vmatmul.mubr.bf16.gmra.mrb[0].mxu0 %v76
  %v174 = vpop.f32.mrb[0].mxu0
  %v175 = vadd.f32 0.0, %v174
  %v176 = vpop.f32.mrb[0].mxu0
  %v177 = vpop.f32.mrb[0].mxu0
  %v178 = vadd.f32 0.0, %v177
  %v179 = vpop.f32.mrb[0].mxu0
  %180 = vmatprep.mubr.bf16.mxu0 0
  %181 = vmatmul.mubr.bf16.gmra.mrb[0].mxu0 %v77
  %v182 = vpop.f32.mrb[0].mxu0
  %v183 = vadd.f32 0.0, %v182
  %v184 = vpop.f32.mrb[0].mxu0
  %v185 = vpop.f32.mrb[0].mxu0
  %v186 = vadd.f32 0.0, %v185
  %v187 = vpop.f32.mrb[0].mxu0
  %188 = vmatprep.mubr.bf16.mxu0 0
  %189 = vmatmul.mubr.bf16.gmra.mrb[0].mxu0 %v78
  %v190 = vpop.f32.mrb[0].mxu0
  %v191 = vadd.f32 0.0, %v190
  %v192 = vpop.f32.mrb[0].mxu0
  %v193 = vpop.f32.mrb[0].mxu0
  %v194 = vadd.f32 0.0, %v193
  %v195 = vpop.f32.mrb[0].mxu0
  %196 = vmatprep.mubr.bf16.mxu0 0
  %197 = vmatmul.mubr.bf16.gmra.mrb[0].mxu0 %v79
  %v198 = vpop.f32.mrb[0].mxu0
  %v199 = vadd.f32 0.0, %v198
  %v200 = vpop.f32.mrb[0].mxu0
  %v201 = vpop.f32.mrb[0].mxu0
  %v202 = vadd.f32 0.0, %v201
  %v203 = vpop.f32.mrb[0].mxu0
  %204 = vmatprep.mubr.bf16.mxu0 0
  %205 = vmatmul.mubr.bf16.gmra.mrb[0].mxu0 %v80
  %v206 = vpop.f32.mrb[0].mxu0
  %v207 = vadd.f32 0.0, %v206
  %v208 = vpop.f32.mrb[0].mxu0
  %v209 = vpop.f32.mrb[0].mxu0
  %v210 = vadd.f32 0.0, %v209
  %v211 = vpop.f32.mrb[0].mxu0
  %212 = vmatprep.mubr.bf16.mxu0 0
  %213 = vmatmul.mubr.bf16.gmra.mrb[0].mxu0 %v81
  %v214 = vpop.f32.mrb[0].mxu0
  %v215 = vadd.f32 0.0, %v214
  %v216 = vpop.f32.mrb[0].mxu0
  %v217 = vpop.f32.mrb[0].mxu0
  %v218 = vadd.f32 0.0, %v217
  %v219 = vpop.f32.mrb[0].mxu0
  %220 = vmatprep.mubr.bf16.mxu0 0
  %221 = vmatmul.mubr.bf16.gmra.mrb[0].mxu0 %v82
  %v222 = vpop.f32.mrb[0].mxu0
  %v223 = vadd.f32 0.0, %v222
  %v224 = vpop.f32.mrb[0].mxu0
  %v225 = vpop.f32.mrb[0].mxu0
  %v226 = vadd.f32 0.0, %v225
  %v227 = vpop.f32.mrb[0].mxu0
  %228 = vmatprep.mubr.bf16.mxu0 0
  %229 = vmatmul.mubr.bf16.gmra.mrb[0].mxu0 %v83
  %v230 = vpop.f32.mrb[0].mxu0
  %v231 = vadd.f32 0.0, %v230
  %v232 = vpop.f32.mrb[0].mxu0
  %v233 = vpop.f32.mrb[0].mxu0
  %v234 = vadd.f32 0.0, %v233
  %v235 = vpop.f32.mrb[0].mxu0
  %236 = vdwg.mxu0
  %237 = vst [vmem:[%s2] sm:$0xff] %v175
  %238 = vst [vmem:[%s2 + $0x8] sm:$0xff] %v178
  %239 = vst [vmem:[%s2 + $0x10] sm:$0xff] %v183
  %240 = vst [vmem:[%s2 + $0x18] sm:$0xff] %v186
  %241 = vst [vmem:[%s2 + $0x20] sm:$0xff] %v191
  %242 = vst [vmem:[%s2 + $0x28] sm:$0xff] %v194
  %243 = vst [vmem:[%s2 + $0x30] sm:$0xff] %v199
  %244 = vst [vmem:[%s2 + $0x38] sm:$0xff] %v202
  %245 = vst [vmem:[%s2 + $0x40] sm:$0xff] %v207
  %246 = vst [vmem:[%s2 + $0x48] sm:$0xff] %v210
  %247 = vst [vmem:[%s2 + $0x50] sm:$0xff] %v215
  %248 = vst [vmem:[%s2 + $0x58] sm:$0xff] %v218
  %249 = vst [vmem:[%s2 + $0x60] sm:$0xff] %v223
  %250 = vst [vmem:[%s2 + $0x68] sm:$0xff] %v226
  %251 = vst [vmem:[%s2 + $0x70] sm:$0xff] %v231
  %252 = vst [vmem:[%s2 + $0x78] sm:$0xff] %v234
  // Predicated region
  $region10: #{dominant_forward.11} parent=0 // pred_check
    _
  $region11: #{dominant_forward.11} parent=0 // pred_check_branch
    %254 = sbr.rel (0) target = $region13
  $region12: #{dominant_forward.11} parent=0 // pred_region
    _
  $region13: #{dominant_forward.11} parent=0 // pred_fallthru
    _
  // Predicated region
  $region14: #{dominant_forward.11} parent=0 // pred_check
    _
  $region15: #{dominant_forward.11} parent=0 // pred_check_branch
    %256 = sbr.rel (0) target = $region17
  $region16: #{dominant_forward.11} parent=0 // pred_region
    _
  $region17: #{dominant_forward.11} parent=0 // pred_fallthru
    _

// kernel: dominant_forward.10
$region0: #{dominant_forward.10}
  #allocation0 [shape = 'u32[]', space=smem, size = 0x4, offset = 0x4, fixed_abs, tag = 'smem constant byte address 0x4 - core index']
  #allocation1 [shape = 'u32[144,128]{1,0:T(1,128)}', space=vmem, size = 0x12000, scoped, tag = 'internal scratch']
  #allocation2 [shape = 'f32[128,128]{1,0:T(8,128)}', space=vmem, size = 0x10000, scoped, tag = 'scratch operand']
  %s0 = inlined_call_operand.vmem [shape: bf16[128,128], index: 0, kind: input, shape index: {}]
  %s1 = inlined_call_operand.vmem [shape: bf16[128,128], index: 1, kind: input, shape index: {}]
  %s2 = inlined_call_operand.vmem [shape: bf16[128,128], index: 2, kind: input, shape index: {}]
  %s3 = inlined_call_operand.vmem [shape: f32[1,128], index: 3, kind: input, shape index: {}]
  %s4 = inlined_call_operand.vmem [shape: f32[128,128], index: 4, kind: output, shape index: {}]
  %s5 = sld [smem:[#allocation0]]
  $region34: #{dominant_forward.10} parent=0
    _
  %s7 = ssub.s32 1, %s5
  %s8 = scalar_select 0, %s7, %s5
  // Predicated region
  $region2: #{dominant_forward.10} parent=0 // pred_check
    _
  $region3: #{dominant_forward.10} parent=0 // pred_check_branch
    %10 = sbr.rel (0) target = $region5
  $region4: #{dominant_forward.10} parent=0 // pred_region
    _
  $region5: #{dominant_forward.10} parent=0 // pred_fallthru
    _
  // Predicated region
  $region6: #{dominant_forward.10} parent=0 // pred_check
    _
  $region7: #{dominant_forward.10} parent=0 // pred_check_branch
    %12 = sbr.rel (0) target = $region9
  $region8: #{dominant_forward.10} parent=0 // pred_region
    _
  $region9: #{dominant_forward.10} parent=0 // pred_fallthru
    _
  // Predicated region
  $region10: #{dominant_forward.10} parent=0 // pred_check
    _
  $region11: #{dominant_forward.10} parent=0 // pred_check_branch
    %14 = sbr.rel (0) target = $region13
  $region12: #{dominant_forward.10} parent=0 // pred_region
    _
  $region13: #{dominant_forward.10} parent=0 // pred_fallthru
    _
  // Predicated region
  $region14: #{dominant_forward.10} parent=0 // pred_check
    _
  $region15: #{dominant_forward.10} parent=0 // pred_check_branch
    %16 = sbr.rel (0) target = $region17
  $region16: #{dominant_forward.10} parent=0 // pred_region
    _
  $region17: #{dominant_forward.10} parent=0 // pred_fallthru
    _
  %p18 = scmp.eq.s32.totalorder 0, 0
  // Predicated region
  $region18: #{dominant_forward.10} parent=0 // pred_check
    %p19 = pneg %p18
  $region19: #{dominant_forward.10} parent=0 // pred_check_branch
    %21 = sbr.rel (%p19) target = $region21
  $region20: #{dominant_forward.10} parent=0 // pred_region
    %22 = vst [vmem:[#allocation2] sm:$0xff] 0.0
    %23 = vst [vmem:[#allocation2 + $0x8] sm:$0xff] 0.0
    %24 = vst [vmem:[#allocation2 + $0x10] sm:$0xff] 0.0
    %25 = vst [vmem:[#allocation2 + $0x18] sm:$0xff] 0.0
    %26 = vst [vmem:[#allocation2 + $0x20] sm:$0xff] 0.0
    %27 = vst [vmem:[#allocation2 + $0x28] sm:$0xff] 0.0
    %28 = vst [vmem:[#allocation2 + $0x30] sm:$0xff] 0.0
    %29 = vst [vmem:[#allocation2 + $0x38] sm:$0xff] 0.0
    %30 = vst [vmem:[#allocation2 + $0x40] sm:$0xff] 0.0
    %31 = vst [vmem:[#allocation2 + $0x48] sm:$0xff] 0.0
    %32 = vst [vmem:[#allocation2 + $0x50] sm:$0xff] 0.0
    %33 = vst [vmem:[#allocation2 + $0x58] sm:$0xff] 0.0
    %34 = vst [vmem:[#allocation2 + $0x60] sm:$0xff] 0.0
    %35 = vst [vmem:[#allocation2 + $0x68] sm:$0xff] 0.0
    %36 = vst [vmem:[#allocation2 + $0x70] sm:$0xff] 0.0
    %37 = vst [vmem:[#allocation2 + $0x78] sm:$0xff] 0.0
  $region21: #{dominant_forward.10} parent=0 // pred_fallthru
    _
  %v38 = vld [vmem:[%s1] sm:$0xf]
  %v39 = vld [vmem:[%s1 + $0x4] sm:$0xf]
  %v40 = vld [vmem:[%s1 + $0x8] sm:$0xf]
  %v41 = vld [vmem:[%s1 + $0xc] sm:$0xf]
  %v42 = vld [vmem:[%s1 + $0x10] sm:$0xf]
  %v43 = vld [vmem:[%s1 + $0x14] sm:$0xf]
  %v44 = vld [vmem:[%s1 + $0x18] sm:$0xf]
  %v45 = vld [vmem:[%s1 + $0x1c] sm:$0xf]
  %v46 = vld [vmem:[%s1 + $0x20] sm:$0xf]
  %v47 = vld [vmem:[%s1 + $0x24] sm:$0xf]
  %v48 = vld [vmem:[%s1 + $0x28] sm:$0xf]
  %v49 = vld [vmem:[%s1 + $0x2c] sm:$0xf]
  %v50 = vld [vmem:[%s1 + $0x30] sm:$0xf]
  %v51 = vld [vmem:[%s1 + $0x34] sm:$0xf]
  %v52 = vld [vmem:[%s1 + $0x38] sm:$0xf]
  %v53 = vld [vmem:[%s1 + $0x3c] sm:$0xf]
  %v54 = vld [vmem:[%s2] sm:$0xf]
  %v55 = vld [vmem:[%s2 + $0x4] sm:$0xf]
  %v56 = vld [vmem:[%s2 + $0x8] sm:$0xf]
  %v57 = vld [vmem:[%s2 + $0xc] sm:$0xf]
  %v58 = vld [vmem:[%s2 + $0x10] sm:$0xf]
  %v59 = vld [vmem:[%s2 + $0x14] sm:$0xf]
  %v60 = vld [vmem:[%s2 + $0x18] sm:$0xf]
  %v61 = vld [vmem:[%s2 + $0x1c] sm:$0xf]
  %v62 = vld [vmem:[%s2 + $0x20] sm:$0xf]
  %v63 = vld [vmem:[%s2 + $0x24] sm:$0xf]
  %v64 = vld [vmem:[%s2 + $0x28] sm:$0xf]
  %v65 = vld [vmem:[%s2 + $0x2c] sm:$0xf]
  %v66 = vld [vmem:[%s2 + $0x30] sm:$0xf]
  %v67 = vld [vmem:[%s2 + $0x34] sm:$0xf]
  %v68 = vld [vmem:[%s2 + $0x38] sm:$0xf]
  %v69 = vld [vmem:[%s2 + $0x3c] sm:$0xf]
  %v86 = vunpack.c.l.b16 %v38
  %v87 = vunpack.c.l.b16 %v39
  %v88 = vunpack.c.l.b16 %v40
  %v89 = vunpack.c.l.b16 %v41
  %v90 = vunpack.c.l.b16 %v42
  %v91 = vunpack.c.l.b16 %v43
  %v92 = vunpack.c.l.b16 %v44
  %v93 = vunpack.c.l.b16 %v45
  %v94 = vunpack.c.l.b16 %v46
  %v95 = vunpack.c.l.b16 %v47
  %v96 = vunpack.c.l.b16 %v48
  %v97 = vunpack.c.l.b16 %v49
  %v98 = vunpack.c.l.b16 %v50
  %v99 = vunpack.c.l.b16 %v51
  %v100 = vunpack.c.l.b16 %v52
  %v101 = vunpack.c.l.b16 %v53
  %v102 = vpack.c.b16 %v87, %v86
  %v103 = vpack.c.b16 %v89, %v88
  %v104 = vpack.c.b16 %v91, %v90
  %v105 = vpack.c.b16 %v93, %v92
  %v106 = vpack.c.b16 %v95, %v94
  %v107 = vpack.c.b16 %v97, %v96
  %v108 = vpack.c.b16 %v99, %v98
  %v109 = vpack.c.b16 %v101, %v100
  %v134 = vunpack.c.l.b16 %v54
  %v135 = vunpack.c.l.b16 %v55
  %v136 = vunpack.c.l.b16 %v56
  %v137 = vunpack.c.l.b16 %v57
  %v138 = vunpack.c.l.b16 %v58
  %v139 = vunpack.c.l.b16 %v59
  %v140 = vunpack.c.l.b16 %v60
  %v141 = vunpack.c.l.b16 %v61
  %v142 = vunpack.c.l.b16 %v62
  %v143 = vunpack.c.l.b16 %v63
  %v144 = vunpack.c.l.b16 %v64
  %v145 = vunpack.c.l.b16 %v65
  %v146 = vunpack.c.l.b16 %v66
  %v147 = vunpack.c.l.b16 %v67
  %v148 = vunpack.c.l.b16 %v68
  %v149 = vunpack.c.l.b16 %v69
  %v150 = vpack.c.b16 %v135, %v134
  %v151 = vpack.c.b16 %v137, %v136
  %v152 = vpack.c.b16 %v139, %v138
  %v153 = vpack.c.b16 %v141, %v140
  %v154 = vpack.c.b16 %v143, %v142
  %v155 = vpack.c.b16 %v145, %v144
  %v156 = vpack.c.b16 %v147, %v146
  %v157 = vpack.c.b16 %v149, %v148
  %166 = vmatprep.subr.bf16.mxu0 0
  %167 = vmatpush1.bf16.msra.mxu0 %v150
  %168 = vmatprep.subr.bf16.mxu0 0
  %169 = vmatpush1.bf16.msra.mxu0 %v151
  %170 = vmatprep.subr.bf16.mxu0 0
  %171 = vmatpush1.bf16.msra.mxu0 %v152
  %172 = vmatprep.subr.bf16.mxu0 0
  %173 = vmatpush1.bf16.msra.mxu0 %v153
  %174 = vmatprep.subr.bf16.mxu0 0
  %175 = vmatpush1.bf16.msra.mxu0 %v154
  %176 = vmatprep.subr.bf16.mxu0 0
  %177 = vmatpush1.bf16.msra.mxu0 %v155
  %178 = vmatprep.subr.bf16.mxu0 0
  %179 = vmatpush1.bf16.msra.mxu0 %v156
  %180 = vmatprep.subr.bf16.mxu0 0
  %181 = vmatpush1.bf16.msra.mxu0 %v157
  %182 = vmatprep.subr.bf16.mxu0 0
  %183 = vmatpush1.bf16.msra.mxu0 0
  %184 = vmatprep.subr.bf16.mxu0 0
  %185 = vmatpush1.bf16.msra.mxu0 0
  %186 = vmatprep.subr.bf16.mxu0 0
  %187 = vmatpush1.bf16.msra.mxu0 0
  %188 = vmatprep.subr.bf16.mxu0 0
  %189 = vmatpush1.bf16.msra.mxu0 0
  %190 = vmatprep.subr.bf16.mxu0 0
  %191 = vmatpush1.bf16.msra.mxu0 0
  %192 = vmatprep.subr.bf16.mxu0 0
  %193 = vmatpush1.bf16.msra.mxu0 0
  %194 = vmatprep.subr.bf16.mxu0 0
  %195 = vmatpush1.bf16.msra.mxu0 0
  %196 = vmatprep.subr.bf16.mxu0 0
  %197 = vmatpush1.bf16.msra.mxu0 0
  %198 = vmatprep.mubr.bf16.mxu0 0
  %199 = vmatmul.mubr.bf16.gmra.mrb[0].mxu0 %v102
  %v200 = vpop.f32.mrb[0].mxu0
  %v201 = vadd.f32 0.0, %v200
  %v202 = vpop.f32.mrb[0].mxu0
  %v203 = vpop.f32.mrb[0].mxu0
  %v204 = vadd.f32 0.0, %v203
  %v205 = vpop.f32.mrb[0].mxu0
  %206 = vmatprep.mubr.bf16.mxu0 0
  %207 = vmatmul.mubr.bf16.gmra.mrb[0].mxu0 %v103
  %v208 = vpop.f32.mrb[0].mxu0
  %v209 = vadd.f32 0.0, %v208
  %v210 = vpop.f32.mrb[0].mxu0
  %v211 = vpop.f32.mrb[0].mxu0
  %v212 = vadd.f32 0.0, %v211
  %v213 = vpop.f32.mrb[0].mxu0
  %214 = vmatprep.mubr.bf16.mxu0 0
  %215 = vmatmul.mubr.bf16.gmra.mrb[0].mxu0 %v104
  %v216 = vpop.f32.mrb[0].mxu0
  %v217 = vadd.f32 0.0, %v216
  %v218 = vpop.f32.mrb[0].mxu0
  %v219 = vpop.f32.mrb[0].mxu0
  %v220 = vadd.f32 0.0, %v219
  %v221 = vpop.f32.mrb[0].mxu0
  %222 = vmatprep.mubr.bf16.mxu0 0
  %223 = vmatmul.mubr.bf16.gmra.mrb[0].mxu0 %v105
  %v224 = vpop.f32.mrb[0].mxu0
  %v225 = vadd.f32 0.0, %v224
  %v226 = vpop.f32.mrb[0].mxu0
  %v227 = vpop.f32.mrb[0].mxu0
  %v228 = vadd.f32 0.0, %v227
  %v229 = vpop.f32.mrb[0].mxu0
  %230 = vmatprep.mubr.bf16.mxu0 0
  %231 = vmatmul.mubr.bf16.gmra.mrb[0].mxu0 %v106
  %v232 = vpop.f32.mrb[0].mxu0
  %v233 = vadd.f32 0.0, %v232
  %v234 = vpop.f32.mrb[0].mxu0
  %v235 = vpop.f32.mrb[0].mxu0
  %v236 = vadd.f32 0.0, %v235
  %v237 = vpop.f32.mrb[0].mxu0
  %238 = vmatprep.mubr.bf16.mxu0 0
  %239 = vmatmul.mubr.bf16.gmra.mrb[0].mxu0 %v107
  %v240 = vpop.f32.mrb[0].mxu0
  %v241 = vadd.f32 0.0, %v240
  %v242 = vpop.f32.mrb[0].mxu0
  %v243 = vpop.f32.mrb[0].mxu0
  %v244 = vadd.f32 0.0, %v243
  %v245 = vpop.f32.mrb[0].mxu0
  %246 = vmatprep.mubr.bf16.mxu0 0
  %247 = vmatmul.mubr.bf16.gmra.mrb[0].mxu0 %v108
  %v248 = vpop.f32.mrb[0].mxu0
  %v249 = vadd.f32 0.0, %v248
  %v250 = vpop.f32.mrb[0].mxu0
  %v251 = vpop.f32.mrb[0].mxu0
  %v252 = vadd.f32 0.0, %v251
  %v253 = vpop.f32.mrb[0].mxu0
  %254 = vmatprep.mubr.bf16.mxu0 0
  %255 = vmatmul.mubr.bf16.gmra.mrb[0].mxu0 %v109
  %v256 = vpop.f32.mrb[0].mxu0
  %v257 = vadd.f32 0.0, %v256
  %v258 = vpop.f32.mrb[0].mxu0
  %v259 = vpop.f32.mrb[0].mxu0
  %v260 = vadd.f32 0.0, %v259
  %v261 = vpop.f32.mrb[0].mxu0
  %262 = vdwg.mxu0
  %v263 = vpack.c.bf16 %v204, %v201
  %v264 = vpack.c.bf16 %v212, %v209
  %v265 = vpack.c.bf16 %v220, %v217
  %v266 = vpack.c.bf16 %v228, %v225
  %v267 = vpack.c.bf16 %v236, %v233
  %v268 = vpack.c.bf16 %v244, %v241
  %v269 = vpack.c.bf16 %v252, %v249
  %v270 = vpack.c.bf16 %v260, %v257
  %v271 = vld [vmem:[#allocation2] sm:$0xff]
  %v272 = vld [vmem:[#allocation2 + $0x8] sm:$0xff]
  %v273 = vld [vmem:[#allocation2 + $0x10] sm:$0xff]
  %v274 = vld [vmem:[#allocation2 + $0x18] sm:$0xff]
  %v275 = vld [vmem:[#allocation2 + $0x20] sm:$0xff]
  %v276 = vld [vmem:[#allocation2 + $0x28] sm:$0xff]
  %v277 = vld [vmem:[#allocation2 + $0x30] sm:$0xff]
  %v278 = vld [vmem:[#allocation2 + $0x38] sm:$0xff]
  %v279 = vld [vmem:[#allocation2 + $0x40] sm:$0xff]
  %v280 = vld [vmem:[#allocation2 + $0x48] sm:$0xff]
  %v281 = vld [vmem:[#allocation2 + $0x50] sm:$0xff]
  %v282 = vld [vmem:[#allocation2 + $0x58] sm:$0xff]
  %v283 = vld [vmem:[#allocation2 + $0x60] sm:$0xff]
  %v284 = vld [vmem:[#allocation2 + $0x68] sm:$0xff]
  %v285 = vld [vmem:[#allocation2 + $0x70] sm:$0xff]
  %v286 = vld [vmem:[#allocation2 + $0x78] sm:$0xff]
  %v287 = vld [vmem:[%s0] sm:$0xf]
  %v288 = vld [vmem:[%s0 + $0x4] sm:$0xf]
  %v289 = vld [vmem:[%s0 + $0x8] sm:$0xf]
  %v290 = vld [vmem:[%s0 + $0xc] sm:$0xf]
  %v291 = vld [vmem:[%s0 + $0x10] sm:$0xf]
  %v292 = vld [vmem:[%s0 + $0x14] sm:$0xf]
  %v293 = vld [vmem:[%s0 + $0x18] sm:$0xf]
  %v294 = vld [vmem:[%s0 + $0x1c] sm:$0xf]
  %v295 = vld [vmem:[%s0 + $0x20] sm:$0xf]
  %v296 = vld [vmem:[%s0 + $0x24] sm:$0xf]
  %v297 = vld [vmem:[%s0 + $0x28] sm:$0xf]
  %v298 = vld [vmem:[%s0 + $0x2c] sm:$0xf]
  %v299 = vld [vmem:[%s0 + $0x30] sm:$0xf]
  %v300 = vld [vmem:[%s0 + $0x34] sm:$0xf]
  %v301 = vld [vmem:[%s0 + $0x38] sm:$0xf]
  %v302 = vld [vmem:[%s0 + $0x3c] sm:$0xf]
  %v319 = vunpack.c.l.b16 %v287
  %v320 = vunpack.c.l.b16 %v288
  %v321 = vunpack.c.l.b16 %v289
  %v322 = vunpack.c.l.b16 %v290
  %v323 = vunpack.c.l.b16 %v291
  %v324 = vunpack.c.l.b16 %v292
  %v325 = vunpack.c.l.b16 %v293
  %v326 = vunpack.c.l.b16 %v294
  %v327 = vunpack.c.l.b16 %v295
  %v328 = vunpack.c.l.b16 %v296
  %v329 = vunpack.c.l.b16 %v297
  %v330 = vunpack.c.l.b16 %v298
  %v331 = vunpack.c.l.b16 %v299
  %v332 = vunpack.c.l.b16 %v300
  %v333 = vunpack.c.l.b16 %v301
  %v334 = vunpack.c.l.b16 %v302
  %v335 = vpack.c.b16 %v320, %v319
  %v336 = vpack.c.b16 %v322, %v321
  %v337 = vpack.c.b16 %v324, %v323
  %v338 = vpack.c.b16 %v326, %v325
  %v339 = vpack.c.b16 %v328, %v327
  %v340 = vpack.c.b16 %v330, %v329
  %v341 = vpack.c.b16 %v332, %v331
  %v342 = vpack.c.b16 %v334, %v333
  %351 = vmatprep.subr.bf16.mxu0 0
  %352 = vmatpush1.bf16.msra.mxu0 %v263
  %353 = vmatprep.subr.bf16.mxu0 0
  %354 = vmatpush1.bf16.msra.mxu0 %v264
  %355 = vmatprep.subr.bf16.mxu0 0
  %356 = vmatpush1.bf16.msra.mxu0 %v265
  %357 = vmatprep.subr.bf16.mxu0 0
  %358 = vmatpush1.bf16.msra.mxu0 %v266
  %359 = vmatprep.subr.bf16.mxu0 0
  %360 = vmatpush1.bf16.msra.mxu0 %v267
  %361 = vmatprep.subr.bf16.mxu0 0
  %362 = vmatpush1.bf16.msra.mxu0 %v268
  %363 = vmatprep.subr.bf16.mxu0 0
  %364 = vmatpush1.bf16.msra.mxu0 %v269
  %365 = vmatprep.subr.bf16.mxu0 0
  %366 = vmatpush1.bf16.msra.mxu0 %v270
  %367 = vmatprep.subr.bf16.mxu0 0
  %368 = vmatpush1.bf16.msra.mxu0 0
  %369 = vmatprep.subr.bf16.mxu0 0
  %370 = vmatpush1.bf16.msra.mxu0 0
  %371 = vmatprep.subr.bf16.mxu0 0
  %372 = vmatpush1.bf16.msra.mxu0 0
  %373 = vmatprep.subr.bf16.mxu0 0
  %374 = vmatpush1.bf16.msra.mxu0 0
  %375 = vmatprep.subr.bf16.mxu0 0
  %376 = vmatpush1.bf16.msra.mxu0 0
  %377 = vmatprep.subr.bf16.mxu0 0
  %378 = vmatpush1.bf16.msra.mxu0 0
  %379 = vmatprep.subr.bf16.mxu0 0
  %380 = vmatpush1.bf16.msra.mxu0 0
  %381 = vmatprep.subr.bf16.mxu0 0
  %382 = vmatpush1.bf16.msra.mxu0 0
  %383 = vmatprep.mubr.bf16.mxu0 0
  %384 = vmatmul.mubr.bf16.gmra.mrb[0].mxu0 %v335
  %v385 = vpop.f32.mrb[0].mxu0
  %v386 = vadd.f32 0.0, %v385
  %v387 = vpop.f32.mrb[0].mxu0
  %v388 = vpop.f32.mrb[0].mxu0
  %v389 = vadd.f32 0.0, %v388
  %v390 = vpop.f32.mrb[0].mxu0
  %391 = vmatprep.mubr.bf16.mxu0 0
  %392 = vmatmul.mubr.bf16.gmra.mrb[0].mxu0 %v336
  %v393 = vpop.f32.mrb[0].mxu0
  %v394 = vadd.f32 0.0, %v393
  %v395 = vpop.f32.mrb[0].mxu0
  %v396 = vpop.f32.mrb[0].mxu0
  %v397 = vadd.f32 0.0, %v396
  %v398 = vpop.f32.mrb[0].mxu0
  %399 = vmatprep.mubr.bf16.mxu0 0
  %400 = vmatmul.mubr.bf16.gmra.mrb[0].mxu0 %v337
  %v401 = vpop.f32.mrb[0].mxu0
  %v402 = vadd.f32 0.0, %v401
  %v403 = vpop.f32.mrb[0].mxu0
  %v404 = vpop.f32.mrb[0].mxu0
  %v405 = vadd.f32 0.0, %v404
  %v406 = vpop.f32.mrb[0].mxu0
  %407 = vmatprep.mubr.bf16.mxu0 0
  %408 = vmatmul.mubr.bf16.gmra.mrb[0].mxu0 %v338
  %v409 = vpop.f32.mrb[0].mxu0
  %v410 = vadd.f32 0.0, %v409
  %v411 = vpop.f32.mrb[0].mxu0
  %v412 = vpop.f32.mrb[0].mxu0
  %v413 = vadd.f32 0.0, %v412
  %v414 = vpop.f32.mrb[0].mxu0
  %415 = vmatprep.mubr.bf16.mxu0 0
  %416 = vmatmul.mubr.bf16.gmra.mrb[0].mxu0 %v339
  %v417 = vpop.f32.mrb[0].mxu0
  %v418 = vadd.f32 0.0, %v417
  %v419 = vpop.f32.mrb[0].mxu0
  %v420 = vpop.f32.mrb[0].mxu0
  %v421 = vadd.f32 0.0, %v420
  %v422 = vpop.f32.mrb[0].mxu0
  %423 = vmatprep.mubr.bf16.mxu0 0
  %424 = vmatmul.mubr.bf16.gmra.mrb[0].mxu0 %v340
  %v425 = vpop.f32.mrb[0].mxu0
  %v426 = vadd.f32 0.0, %v425
  %v427 = vpop.f32.mrb[0].mxu0
  %v428 = vpop.f32.mrb[0].mxu0
  %v429 = vadd.f32 0.0, %v428
  %v430 = vpop.f32.mrb[0].mxu0
  %431 = vmatprep.mubr.bf16.mxu0 0
  %432 = vmatmul.mubr.bf16.gmra.mrb[0].mxu0 %v341
  %v433 = vpop.f32.mrb[0].mxu0
  %v434 = vadd.f32 0.0, %v433
  %v435 = vpop.f32.mrb[0].mxu0
  %v436 = vpop.f32.mrb[0].mxu0
  %v437 = vadd.f32 0.0, %v436
  %v438 = vpop.f32.mrb[0].mxu0
  %439 = vmatprep.mubr.bf16.mxu0 0
  %440 = vmatmul.mubr.bf16.gmra.mrb[0].mxu0 %v342
  %v441 = vpop.f32.mrb[0].mxu0
  %v442 = vadd.f32 0.0, %v441
  %v443 = vpop.f32.mrb[0].mxu0
  %v444 = vpop.f32.mrb[0].mxu0
  %v445 = vadd.f32 0.0, %v444
  %v446 = vpop.f32.mrb[0].mxu0
  %447 = vdwg.mxu0
  %v448 = vadd.f32 %v271, %v386
  %v449 = vadd.f32 %v272, %v389
  %v450 = vadd.f32 %v273, %v394
  %v451 = vadd.f32 %v274, %v397
  %v452 = vadd.f32 %v275, %v402
  %v453 = vadd.f32 %v276, %v405
  %v454 = vadd.f32 %v277, %v410
  %v455 = vadd.f32 %v278, %v413
  %v456 = vadd.f32 %v279, %v418
  %v457 = vadd.f32 %v280, %v421
  %v458 = vadd.f32 %v281, %v426
  %v459 = vadd.f32 %v282, %v429
  %v460 = vadd.f32 %v283, %v434
  %v461 = vadd.f32 %v284, %v437
  %v462 = vadd.f32 %v285, %v442
  %v463 = vadd.f32 %v286, %v445
  %464 = vst [vmem:[#allocation2] sm:$0xff] %v448
  %465 = vst [vmem:[#allocation2 + $0x8] sm:$0xff] %v449
  %466 = vst [vmem:[#allocation2 + $0x10] sm:$0xff] %v450
  %467 = vst [vmem:[#allocation2 + $0x18] sm:$0xff] %v451
  %468 = vst [vmem:[#allocation2 + $0x20] sm:$0xff] %v452
  %469 = vst [vmem:[#allocation2 + $0x28] sm:$0xff] %v453
  %470 = vst [vmem:[#allocation2 + $0x30] sm:$0xff] %v454
  %471 = vst [vmem:[#allocation2 + $0x38] sm:$0xff] %v455
  %472 = vst [vmem:[#allocation2 + $0x40] sm:$0xff] %v456
  %473 = vst [vmem:[#allocation2 + $0x48] sm:$0xff] %v457
  %474 = vst [vmem:[#allocation2 + $0x50] sm:$0xff] %v458
  %475 = vst [vmem:[#allocation2 + $0x58] sm:$0xff] %v459
  %476 = vst [vmem:[#allocation2 + $0x60] sm:$0xff] %v460
  %477 = vst [vmem:[#allocation2 + $0x68] sm:$0xff] %v461
  %478 = vst [vmem:[#allocation2 + $0x70] sm:$0xff] %v462
  %479 = vst [vmem:[#allocation2 + $0x78] sm:$0xff] %v463
  // Predicated region
  $region22: #{dominant_forward.10} parent=0 // pred_check
    %p480 = pneg %p18
  $region23: #{dominant_forward.10} parent=0 // pred_check_branch
    %482 = sbr.rel (%p480) target = $region25
  $region24: #{dominant_forward.10} parent=0 // pred_region
    %v483 = vld [vmem:[#allocation2] sm:$0xff]
    %v484 = vld [vmem:[#allocation2 + $0x8] sm:$0xff]
    %v485 = vld [vmem:[#allocation2 + $0x10] sm:$0xff]
    %v486 = vld [vmem:[#allocation2 + $0x18] sm:$0xff]
    %v487 = vld [vmem:[#allocation2 + $0x20] sm:$0xff]
    %v488 = vld [vmem:[#allocation2 + $0x28] sm:$0xff]
    %v489 = vld [vmem:[#allocation2 + $0x30] sm:$0xff]
    %v490 = vld [vmem:[#allocation2 + $0x38] sm:$0xff]
    %v491 = vld [vmem:[#allocation2 + $0x40] sm:$0xff]
    %v492 = vld [vmem:[#allocation2 + $0x48] sm:$0xff]
    %v493 = vld [vmem:[#allocation2 + $0x50] sm:$0xff]
    %v494 = vld [vmem:[#allocation2 + $0x58] sm:$0xff]
    %v495 = vld [vmem:[#allocation2 + $0x60] sm:$0xff]
    %v496 = vld [vmem:[#allocation2 + $0x68] sm:$0xff]
    %v497 = vld [vmem:[#allocation2 + $0x70] sm:$0xff]
    %v498 = vld [vmem:[#allocation2 + $0x78] sm:$0xff]
    %v499 = vld [vmem:[%s3] sm:$0x1]
    %v501 = vlaneseq
    %v502 = vshrl.u32 %v501, 7
    %v503 = vsub.s32 0, %v502
    %v504 = vrot.slane %v499, %v503
    %v506 = vadd.f32 %v483, %v504
    %v507 = vadd.f32 %v484, %v504
    %v508 = vadd.f32 %v485, %v504
    %v509 = vadd.f32 %v486, %v504
    %v510 = vadd.f32 %v487, %v504
    %v511 = vadd.f32 %v488, %v504
    %v512 = vadd.f32 %v489, %v504
    %v513 = vadd.f32 %v490, %v504
    %v514 = vadd.f32 %v491, %v504
    %v515 = vadd.f32 %v492, %v504
    %v516 = vadd.f32 %v493, %v504
    %v517 = vadd.f32 %v494, %v504
    %v518 = vadd.f32 %v495, %v504
    %v519 = vadd.f32 %v496, %v504
    %v520 = vadd.f32 %v497, %v504
    %v521 = vadd.f32 %v498, %v504
    %522 = vst [vmem:[%s4] sm:$0xff] %v506
    %523 = vst [vmem:[%s4 + $0x8] sm:$0xff] %v507
    %524 = vst [vmem:[%s4 + $0x10] sm:$0xff] %v508
    %525 = vst [vmem:[%s4 + $0x18] sm:$0xff] %v509
    %526 = vst [vmem:[%s4 + $0x20] sm:$0xff] %v510
    %527 = vst [vmem:[%s4 + $0x28] sm:$0xff] %v511
    %528 = vst [vmem:[%s4 + $0x30] sm:$0xff] %v512
    %529 = vst [vmem:[%s4 + $0x38] sm:$0xff] %v513
    %530 = vst [vmem:[%s4 + $0x40] sm:$0xff] %v514
    %531 = vst [vmem:[%s4 + $0x48] sm:$0xff] %v515
    %532 = vst [vmem:[%s4 + $0x50] sm:$0xff] %v516
    %533 = vst [vmem:[%s4 + $0x58] sm:$0xff] %v517
    %534 = vst [vmem:[%s4 + $0x60] sm:$0xff] %v518
    %535 = vst [vmem:[%s4 + $0x68] sm:$0xff] %v519
    %536 = vst [vmem:[%s4 + $0x70] sm:$0xff] %v520
    %537 = vst [vmem:[%s4 + $0x78] sm:$0xff] %v521
  $region25: #{dominant_forward.10} parent=0 // pred_fallthru
    _
  // Predicated region
  $region26: #{dominant_forward.10} parent=0 // pred_check
    _
  $region27: #{dominant_forward.10} parent=0 // pred_check_branch
    %539 = sbr.rel (0) target = $region29
  $region28: #{dominant_forward.10} parent=0 // pred_region
    _
  $region29: #{dominant_forward.10} parent=0 // pred_fallthru
    _
  // Predicated region
  $region30: #{dominant_forward.10} parent=0 // pred_check
    _
  $region31: #{dominant_forward.10} parent=0 // pred_check_branch
    %541 = sbr.rel (0) target = $region33
  $region32: #{dominant_forward.10} parent=0 // pred_region
    _
  $region33: #{dominant_forward.10} parent=0 // pred_fallthru
    _

</llo_original>
